<compile_context>
chip_gen: v6e
topology: v6e:2x2x1
jax: 0.10.0
libtpu: 0.0.40
codegen_flags: <defaults>
</compile_context>

<pallas_src>
import math
from functools import partial

import jax
import jax.numpy as jnp
import numpy as np
from jax import lax
from jax.experimental import pallas as pl
from jax.experimental.pallas import tpu as pltpu

RMS_EPS = 1.1920928955078125e-07      # torch.finfo(float32).eps (F.rms_norm default)
NEG_INF = -1e30                        # finite "-inf": NaN-safe under max/exp
VMEM_LIMIT_BYTES = 48 * 1024 * 1024    # explicit scoped-VMEM budget (fits v7x)


def _rmsnorm(z):
    return z * lax.rsqrt(jnp.mean(z * z, axis=-1, keepdims=True) + RMS_EPS)


# ---------------------------------------------------------------------------
# Kernel 1: rms_norm(x) -> q / k / v projections (bf16 MXU, f32 statistics)
# ---------------------------------------------------------------------------
def _qkv_kernel(x_ref, wq_ref, wk_ref, wv_ref, q_ref, k_ref, v_ref):
    xn = _rmsnorm(x_ref[0]).astype(jnp.bfloat16)          # (tq, C)

    def proj(w_ref):
        return jnp.dot(xn, w_ref[...],
                       preferred_element_type=jnp.float32).astype(jnp.bfloat16)

    q_ref[0] = proj(wq_ref)
    k_ref[0] = proj(wk_ref)
    v_ref[0] = proj(wv_ref)                               # raw v == v1 stream


# ---------------------------------------------------------------------------
# Kernel 2: rotary + head rms_norm + flash (online-softmax) causal attention
# ---------------------------------------------------------------------------
def _make_flash_kernel(tq, tk, head_dim):
    d2 = head_dim // 2
    scale = 1.0 / math.sqrt(head_dim)
    use_roll = (head_dim % 128 == 0)     # lane-aligned heads -> single XLU roll

    def rope(z, cs, sn):
        # z: (H, t, hd) f32 ; cs = [cos|cos], sn = [sin|-sin], both (t, hd)
        if use_roll:
            return z * cs[None] + pltpu.roll(z, shift=d2, axis=-1) * sn[None]
        c = cs[None, :, :d2]
        s = sn[None, :, :d2]
        z1 = z[..., :d2]
        z2 = z[..., d2:]
        return jnp.concatenate([z1 * c + z2 * s, -z1 * s + z2 * c], axis=-1)

    def kernel(q_ref, k_ref, v_ref, cq_ref, sq_ref, ck_ref, sk_ref, o_ref,
               qs_sc, m_sc, l_sc, acc_sc):
        qi = pl.program_id(1)
        ki = pl.program_id(2)
        nk = pl.num_programs(2)

        @pl.when(ki == 0)
        def _init():
            qh = rope(q_ref[0].astype(jnp.float32), cq_ref[...], sq_ref[...])
            qh = _rmsnorm(qh) * scale           # fold 1/sqrt(hd) into q once
            qs_sc[...] = qh.astype(jnp.bfloat16)
            m_sc[...] = jnp.full_like(m_sc, NEG_INF)
            l_sc[...] = jnp.zeros_like(l_sc)
            acc_sc[...] = jnp.zeros_like(acc_sc)

        @pl.when(ki <= qi)                      # skip fully-masked KV tiles
        def _compute():
            kh = rope(k_ref[0].astype(jnp.float32), ck_ref[...], sk_ref[...])
            kh = _rmsnorm(kh).astype(jnp.bfloat16)            # (H, tk, hd)
            s = jnp.einsum("hqd,hkd->hqk", qs_sc[...], kh,
                           preferred_element_type=jnp.float32)
            row = qi * tq + lax.broadcasted_iota(jnp.int32, (tq, tk), 0)
            col = ki * tk + lax.broadcasted_iota(jnp.int32, (tq, tk), 1)
            s = jnp.where((col <= row)[None], s, NEG_INF)     # per-tile mask
            m_prev = m_sc[...]
            m_new = jnp.maximum(m_prev, jnp.max(s, axis=-1, keepdims=True))
            alpha = jnp.exp(m_prev - m_new)
            p = jnp.exp(s - m_new)
            l_sc[...] = alpha * l_sc[...] + jnp.sum(p, axis=-1, keepdims=True)
            acc_sc[...] = alpha * acc_sc[...] + jnp.einsum(
                "hqk,hkd->hqd", p.astype(jnp.bfloat16), v_ref[0],
                preferred_element_type=jnp.float32)
            m_sc[...] = m_new

        @pl.when(ki == nk - 1)
        def _finalize():
            inv_l = pl.reciprocal(l_sc[...], approx=True)
            o_ref[0] = (acc_sc[...] * inv_l).astype(o_ref.dtype)

    return kernel


# ---------------------------------------------------------------------------
# Kernel 3: c_proj + residual + rms_norm + MLP(relu^2) + residual,
#           streaming the 4C hidden dim over a reduction grid axis
# ---------------------------------------------------------------------------
def _proj_mlp_kernel(x_ref, y_ref, wo_ref, wfc_ref, wpj_ref, o_ref,
                     x1_sc, x1n_sc, acc_sc):
    f = pl.program_id(2)
    nf = pl.num_programs(2)

    @pl.when(f == 0)
    def _init():
        attn = jnp.dot(y_ref[0], wo_ref[...], preferred_element_type=jnp.float32)
        x1 = x_ref[0] + attn
        x1_sc[...] = x1
        x1n_sc[...] = _rmsnorm(x1).astype(jnp.bfloat16)
        acc_sc[...] = jnp.zeros_like(acc_sc)

    h = jnp.dot(x1n_sc[...], wfc_ref[...], preferred_element_type=jnp.float32)
    h = jnp.maximum(h, 0.0)
    h = (h * h).astype(jnp.bfloat16)                       # relu(x)^2
    acc_sc[...] += jnp.dot(h, wpj_ref[...], preferred_element_type=jnp.float32)

    @pl.when(f == nf - 1)
    def _finalize():
        o_ref[0] = x1_sc[...] + acc_sc[...]


# ---------------------------------------------------------------------------
# Wrapper
# ---------------------------------------------------------------------------
def _tile(n, pref):
    t = min(n, pref)
    assert n % t == 0, f"{n} not divisible by tile {t}"
    return t


@partial(jax.jit, static_argnames=("n_head",))
def block_forward(x, cos, sin, params, *, n_head):
    B, T, C = x.shape
    hd = C // n_head
    F = 4 * C

    tq = _tile(T, 128)       # query / row tile
    tk = _tile(T, 128)       # kv tile
    tf = _tile(F, 512)       # MLP hidden tile
    nq, nk, nf = T // tq, T // tk, F // tf

    # --- one-time, wrapper-side weight prep: pre-transposed bf16 (in, out) ---
    lamb_sum = params["lamb"][0] + params["lamb"][1]
    wq_t = params["wq"].T.astype(jnp.bfloat16)
    wk_t = params["wk"].T.astype(jnp.bfloat16)
    wv_t = params["wv"].T.astype(jnp.bfloat16)
    # v1 is None in the training path -> mixed value stream is (lamb1+lamb2)*v,
    # folded into the linear output projection.
    wo_t = (params["wo"].T * lamb_sum).astype(jnp.bfloat16)
    wfc_t = params["wfc"].T.astype(jnp.bfloat16)           # (C, 4C)
    wpj_t = params["wproj"].T.astype(jnp.bfloat16)         # (4C, C)

    # rotary tables at full head width: [cos|cos] and [sin|-sin]
    cos2 = jnp.concatenate([cos, cos], axis=-1).astype(jnp.float32)    # (T, hd)
    sin2 = jnp.concatenate([sin, -sin], axis=-1).astype(jnp.float32)   # (T, hd)

    cparams_2d = pltpu.CompilerParams(
        dimension_semantics=("parallel", "parallel"),
        vmem_limit_bytes=VMEM_LIMIT_BYTES)
    cparams_3d = pltpu.CompilerParams(
        dimension_semantics=("parallel", "parallel", "arbitrary"),
        vmem_limit_bytes=VMEM_LIMIT_BYTES)

    # --- kernel 1: qkv projections (lane-dense (B,T,C) bf16 outputs) ---------
    q_bf, k_bf, v_bf = pl.pallas_call(
        _qkv_kernel,
        out_shape=tuple(jax.ShapeDtypeStruct((B, T, C), jnp.bfloat16)
                        for _ in range(3)),
        grid_spec=pltpu.PrefetchScalarGridSpec(
            num_scalar_prefetch=0,
            grid=(B, nq),
            in_specs=[
                pl.BlockSpec((1, tq, C), lambda b, r: (b, r, 0)),
                pl.BlockSpec((C, C), lambda b, r: (0, 0)),
                pl.BlockSpec((C, C), lambda b, r: (0, 0)),
                pl.BlockSpec((C, C), lambda b, r: (0, 0)),
            ],
            out_specs=tuple(pl.BlockSpec((1, tq, C), lambda b, r: (b, r, 0))
                            for _ in range(3)),
        ),
        compiler_params=cparams_2d,
    )(x, wq_t, wk_t, wv_t)

    # wrapper-side layout plumbing to head-major (B, H, T, hd)
    def to_heads(a):
        return a.reshape(B, T, n_head, hd).transpose(0, 2, 1, 3)

    qh, kh, vh = to_heads(q_bf), to_heads(k_bf), to_heads(v_bf)

    # --- kernel 2: flash attention -------------------------------------------
    flash = _make_flash_kernel(tq, tk, hd)
    y = pl.pallas_call(
        flash,
        out_shape=jax.ShapeDtypeStruct((B, n_head, T, hd), jnp.bfloat16),
        grid_spec=pltpu.PrefetchScalarGridSpec(
            num_scalar_prefetch=0,
            grid=(B, nq, nk),
            in_specs=[
                pl.BlockSpec((1, n_head, tq, hd), lambda b, qi, ki: (b, 0, qi, 0)),
                pl.BlockSpec((1, n_head, tk, hd), lambda b, qi, ki: (b, 0, ki, 0)),
                pl.BlockSpec((1, n_head, tk, hd), lambda b, qi, ki: (b, 0, ki, 0)),
                pl.BlockSpec((tq, hd), lambda b, qi, ki: (qi, 0)),   # cos (q rows)
                pl.BlockSpec((tq, hd), lambda b, qi, ki: (qi, 0)),   # sin (q rows)
                pl.BlockSpec((tk, hd), lambda b, qi, ki: (ki, 0)),   # cos (k rows)
                pl.BlockSpec((tk, hd), lambda b, qi, ki: (ki, 0)),   # sin (k rows)
            ],
            out_specs=pl.BlockSpec((1, n_head, tq, hd),
                                   lambda b, qi, ki: (b, 0, qi, 0)),
            scratch_shapes=[
                pltpu.VMEM((n_head, tq, hd), jnp.bfloat16),   # roped+normed q
                pltpu.VMEM((n_head, tq, 1), jnp.float32),     # running max
                pltpu.VMEM((n_head, tq, 1), jnp.float32),     # running sum
                pltpu.VMEM((n_head, tq, hd), jnp.float32),    # output accumulator
            ],
        ),
        compiler_params=cparams_3d,
    )(qh, kh, vh, cos2, sin2, cos2, sin2)

    y_flat = y.transpose(0, 2, 1, 3).reshape(B, T, C)     # lane-dense (B,T,C)

    # --- kernel 3: out-proj + residual + rms_norm + MLP + residual -----------
    out = pl.pallas_call(
        _proj_mlp_kernel,
        out_shape=jax.ShapeDtypeStruct((B, T, C), jnp.float32),
        grid_spec=pltpu.PrefetchScalarGridSpec(
            num_scalar_prefetch=0,
            grid=(B, nq, nf),
            in_specs=[
                pl.BlockSpec((1, tq, C), lambda b, r, f: (b, r, 0)),   # x
                pl.BlockSpec((1, tq, C), lambda b, r, f: (b, r, 0)),   # attn y
                pl.BlockSpec((C, C), lambda b, r, f: (0, 0)),          # wo (scaled)
                pl.BlockSpec((C, tf), lambda b, r, f: (0, f)),         # wfc tile
                pl.BlockSpec((tf, C), lambda b, r, f: (f, 0)),         # wproj tile
            ],
            out_specs=pl.BlockSpec((1, tq, C), lambda b, r, f: (b, r, 0)),
            scratch_shapes=[
                pltpu.VMEM((tq, C), jnp.float32),    # x1 (residual)
                pltpu.VMEM((tq, C), jnp.bfloat16),   # rms_norm(x1)
                pltpu.VMEM((tq, C), jnp.float32),    # MLP accumulator
            ],
        ),
        compiler_params=cparams_3d,
    )(x, y_flat, wo_t, wfc_t, wpj_t)

    # v1 (== raw v, since incoming v1 is None): wrapper-side reshape is free.
    v1 = v_bf.astype(jnp.float32).reshape(B, T, n_head, hd)
    return out, v1


# ---------------------------------------------------------------------------
# Pure-JAX reference mirroring the PyTorch Block.forward semantics (all f32)
# ---------------------------------------------------------------------------
def block_reference(x, cos, sin, p, n_head):
    def rmsnorm(z):
        return z * jax.lax.rsqrt(jnp.mean(z * z, -1, keepdims=True) + RMS_EPS)

    B, T, C = x.shape
    hd = C // n_head
    d = hd // 2
    xn = rmsnorm(x)
    q = (xn @ p["wq"].T).reshape(B, T, n_head, hd)
    k = (xn @ p["wk"].T).reshape(B, T, n_head, hd)
    v = (xn @ p["wv"].T).reshape(B, T, n_head, hd)
    v1 = v
    vm = p["lamb"][0] * v + p["lamb"][1] * v1

    def rope(z):
        z1, z2 = z[..., :d], z[..., d:]
        c = cos[None, :, None, :]
        s = sin[None, :, None, :]
        return jnp.concatenate([z1 * c + z2 * s, -z1 * s + z2 * c], -1)

    q = rmsnorm(rope(q))
    k = rmsnorm(rope(k))
    qt, kt, vt = (a.transpose(0, 2, 1, 3) for a in (q, k, vm))
    s = jnp.einsum("bhqd,bhkd->bhqk", qt, kt) / math.sqrt(hd)
    mask = jnp.tril(jnp.ones((T, T), bool))
    s = jnp.where(mask, s, -jnp.inf)
    y = jnp.einsum("bhqk,bhkd->bhqd", jax.nn.softmax(s, -1), vt)
    y = y.transpose(0, 2, 1, 3).reshape(B, T, C)
    x1 = x + y @ p["wo"].T
    h = jnp.maximum(rmsnorm(x1) @ p["wfc"].T, 0.0) ** 2
    return x1 + h @ p["wproj"].T, v1


if __name__ == "__main__":
    B, T, C, n_head = 2, 8, 32, 4
    head_dim = C // n_head
    d2 = head_dim // 2

    key = jax.random.PRNGKey(0)
    ks = jax.random.split(key, 8)
    # NOTE: PyTorch zero-inits the c_proj weights; random values here exercise
    # the full datapath (forward semantics are identical).
    params = {
        "wq": 0.05 * jax.random.normal(ks[0], (C, C), jnp.float32),
        "wk": 0.05 * jax.random.normal(ks[1], (C, C), jnp.float32),
        "wv": 0.05 * jax.random.normal(ks[2], (C, C), jnp.float32),
        "wo": 0.05 * jax.random.normal(ks[3], (C, C), jnp.float32),
        "wfc": 0.05 * jax.random.normal(ks[4], (4 * C, C), jnp.float32),
        "wproj": 0.05 * jax.random.normal(ks[5], (C, 4 * C), jnp.float32),
        "lamb": jnp.array([0.5, 0.5], jnp.float32),
    }
    x = jax.random.normal(ks[6], (B, T, C), jnp.float32)

    # rotary frequencies (cos/sin of shape (T, head_dim // 2))
    inv_freq = 1.0 / (10000.0 ** (jnp.arange(d2, dtype=jnp.float32) / d2))
    angles = jnp.arange(T, dtype=jnp.float32)[:, None] * inv_freq[None, :]
    cos, sin = jnp.cos(angles), jnp.sin(angles)

    out, v1_out = block_forward(x, cos, sin, params, n_head=n_head)
    jax.block_until_ready(out)
    jax.block_until_ready(v1_out)

    ref_out, ref_v1 = block_reference(x, cos, sin, params, n_head)
    # bf16 MXU operands (and approx reciprocal) inside the kernels vs. an
    # all-f32 reference -> compare at bf16-level tolerance.
    np.testing.assert_allclose(np.asarray(out), np.asarray(ref_out),
                               rtol=2e-2, atol=2e-2)
    np.testing.assert_allclose(np.asarray(v1_out), np.asarray(ref_v1),
                               rtol=2e-2, atol=2e-2)
    print("KERNEL_OK")
</pallas_src>

<mosaic_0001>
module attributes {stable_mosaic.version = 11 : i64} {
  func.func @_qkv_kernel(%arg0: i32, %arg1: i32, %arg2: memref<1x8x32xf32, #tpu.memory_space<vmem>>, %arg3: memref<32x32xbf16, #tpu.memory_space<vmem>>, %arg4: memref<32x32xbf16, #tpu.memory_space<vmem>>, %arg5: memref<32x32xbf16, #tpu.memory_space<vmem>>, %arg6: memref<1x8x32xbf16, #tpu.memory_space<vmem>>, %arg7: memref<1x8x32xbf16, #tpu.memory_space<vmem>>, %arg8: memref<1x8x32xbf16, #tpu.memory_space<vmem>>) attributes {dimension_semantics = [#tpu.dimension_semantics<parallel>, #tpu.dimension_semantics<parallel>], iteration_bounds = array<i64: 2, 1>, scalar_prefetch = 0 : i64, scratch_operands = 0 : i64, tpu.core_type = #tpu.core_type<tc>, window_params = [{transform_indices = @transform_0, window_bounds = array<i64: 1, 8, 32>}, {pipeline_mode = #tpu.pipeline_mode<synchronous>, transform_indices = @transform_1, window_bounds = array<i64: 32, 32>}, {pipeline_mode = #tpu.pipeline_mode<synchronous>, transform_indices = @transform_2, window_bounds = array<i64: 32, 32>}, {pipeline_mode = #tpu.pipeline_mode<synchronous>, transform_indices = @transform_3, window_bounds = array<i64: 32, 32>}, {transform_indices = @transform_4, window_bounds = array<i64: 1, 8, 32>}, {transform_indices = @transform_5, window_bounds = array<i64: 1, 8, 32>}, {transform_indices = @transform_6, window_bounds = array<i64: 1, 8, 32>}]} {
    %c0 = arith.constant 0 : index
    %c0_0 = arith.constant 0 : index
    %c0_1 = arith.constant 0 : index
    %0 = vector.load %arg2[%c0, %c0_0, %c0_1] : memref<1x8x32xf32, #tpu.memory_space<vmem>>, vector<1x8x32xf32>
    %1 = vector.shape_cast %0 : vector<1x8x32xf32> to vector<8x32xf32>
    %2 = arith.mulf %1, %1 : vector<8x32xf32>
    %cst = arith.constant dense<0.000000e+00> : vector<8xf32>
    %3 = vector.multi_reduction <add>, %2, %cst [1] : vector<8x32xf32> to vector<8xf32>
    %4 = vector.shape_cast %3 : vector<8xf32> to vector<8x1xf32>
    %cst_2 = arith.constant 3.200000e+01 : f32
    %5 = vector.broadcast %cst_2 : f32 to vector<8x1xf32>
    %6 = arith.divf %4, %5 : vector<8x1xf32>
    %cst_3 = arith.constant 1.1920929E-7 : f32
    %7 = vector.broadcast %cst_3 : f32 to vector<8x1xf32>
    %8 = arith.addf %6, %7 : vector<8x1xf32>
    %9 = math.rsqrt %8 : vector<8x1xf32>
    %10 = vector.broadcast %9 : vector<8x1xf32> to vector<8x32xf32>
    %11 = arith.mulf %1, %10 : vector<8x32xf32>
    %12 = arith.truncf %11 : vector<8x32xf32> to vector<8x32xbf16>
    %c0_4 = arith.constant 0 : index
    %c0_5 = arith.constant 0 : index
    %13 = vector.load %arg3[%c0_4, %c0_5] : memref<32x32xbf16, #tpu.memory_space<vmem>>, vector<32x32xbf16>
    %cst_6 = arith.constant dense<0.000000e+00> : vector<8x32xf32>
    %14 = tpu.matmul %12, %13, %cst_6 {dimension_numbers = #tpu.dot_dimension_numbers<[1], [0], [0], [1], [0, 0, 1, 1], [], []>} : vector<8x32xbf16>, vector<32x32xbf16>, vector<8x32xf32> -> vector<8x32xf32>
    %15 = arith.truncf %14 : vector<8x32xf32> to vector<8x32xbf16>
    %c0_7 = arith.constant 0 : index
    %c0_8 = arith.constant 0 : index
    %c0_9 = arith.constant 0 : index
    %16 = vector.load %arg6[%c0_7, %c0_8, %c0_9] : memref<1x8x32xbf16, #tpu.memory_space<vmem>>, vector<1x8x32xbf16>
    %17 = vector.shape_cast %16 : vector<1x8x32xbf16> to vector<8x32xbf16>
    %18 = vector.shape_cast %15 : vector<8x32xbf16> to vector<1x8x32xbf16>
    tpu.vector_store %arg6[%c0_7, %c0_8, %c0_9], %18 {strides = array<i32>} : memref<1x8x32xbf16, #tpu.memory_space<vmem>>, vector<1x8x32xbf16>,
    %c0_10 = arith.constant 0 : index
    %c0_11 = arith.constant 0 : index
    %19 = vector.load %arg4[%c0_10, %c0_11] : memref<32x32xbf16, #tpu.memory_space<vmem>>, vector<32x32xbf16>
    %cst_12 = arith.constant dense<0.000000e+00> : vector<8x32xf32>
    %20 = tpu.matmul %12, %19, %cst_12 {dimension_numbers = #tpu.dot_dimension_numbers<[1], [0], [0], [1], [0, 0, 1, 1], [], []>} : vector<8x32xbf16>, vector<32x32xbf16>, vector<8x32xf32> -> vector<8x32xf32>
    %21 = arith.truncf %20 : vector<8x32xf32> to vector<8x32xbf16>
    %c0_13 = arith.constant 0 : index
    %c0_14 = arith.constant 0 : index
    %c0_15 = arith.constant 0 : index
    %22 = vector.load %arg7[%c0_13, %c0_14, %c0_15] : memref<1x8x32xbf16, #tpu.memory_space<vmem>>, vector<1x8x32xbf16>
    %23 = vector.shape_cast %22 : vector<1x8x32xbf16> to vector<8x32xbf16>
    %24 = vector.shape_cast %21 : vector<8x32xbf16> to vector<1x8x32xbf16>
    tpu.vector_store %arg7[%c0_13, %c0_14, %c0_15], %24 {strides = array<i32>} : memref<1x8x32xbf16, #tpu.memory_space<vmem>>, vector<1x8x32xbf16>,
    %c0_16 = arith.constant 0 : index
    %c0_17 = arith.constant 0 : index
    %25 = vector.load %arg5[%c0_16, %c0_17] : memref<32x32xbf16, #tpu.memory_space<vmem>>, vector<32x32xbf16>
    %cst_18 = arith.constant dense<0.000000e+00> : vector<8x32xf32>
    %26 = tpu.matmul %12, %25, %cst_18 {dimension_numbers = #tpu.dot_dimension_numbers<[1], [0], [0], [1], [0, 0, 1, 1], [], []>} : vector<8x32xbf16>, vector<32x32xbf16>, vector<8x32xf32> -> vector<8x32xf32>
    %27 = arith.truncf %26 : vector<8x32xf32> to vector<8x32xbf16>
    %c0_19 = arith.constant 0 : index
    %c0_20 = arith.constant 0 : index
    %c0_21 = arith.constant 0 : index
    %28 = vector.load %arg8[%c0_19, %c0_20, %c0_21] : memref<1x8x32xbf16, #tpu.memory_space<vmem>>, vector<1x8x32xbf16>
    %29 = vector.shape_cast %28 : vector<1x8x32xbf16> to vector<8x32xbf16>
    %30 = vector.shape_cast %27 : vector<8x32xbf16> to vector<1x8x32xbf16>
    tpu.vector_store %arg8[%c0_19, %c0_20, %c0_21], %30 {strides = array<i32>} : memref<1x8x32xbf16, #tpu.memory_space<vmem>>, vector<1x8x32xbf16>,
    return
  }
  func.func @transform_0(%arg0: i32, %arg1: i32) -> (i32, i32, i32) {
    %c0_i32 = arith.constant 0 : i32
    %c0_i32_0 = arith.constant 0 : i32
    return %arg0, %arg1, %c0_i32 : i32, i32, i32
  }
  func.func @transform_1(%arg0: i32, %arg1: i32) -> (i32, i32) {
    %c0_i32 = arith.constant 0 : i32
    %c0_i32_0 = arith.constant 0 : i32
    %c0_i32_1 = arith.constant 0 : i32
    return %c0_i32, %c0_i32_0 : i32, i32
  }
  func.func @transform_2(%arg0: i32, %arg1: i32) -> (i32, i32) {
    %c0_i32 = arith.constant 0 : i32
    %c0_i32_0 = arith.constant 0 : i32
    %c0_i32_1 = arith.constant 0 : i32
    return %c0_i32, %c0_i32_0 : i32, i32
  }
  func.func @transform_3(%arg0: i32, %arg1: i32) -> (i32, i32) {
    %c0_i32 = arith.constant 0 : i32
    %c0_i32_0 = arith.constant 0 : i32
    %c0_i32_1 = arith.constant 0 : i32
    return %c0_i32, %c0_i32_0 : i32, i32
  }
  func.func @transform_4(%arg0: i32, %arg1: i32) -> (i32, i32, i32) {
    %c0_i32 = arith.constant 0 : i32
    %c0_i32_0 = arith.constant 0 : i32
    return %arg0, %arg1, %c0_i32 : i32, i32, i32
  }
  func.func @transform_5(%arg0: i32, %arg1: i32) -> (i32, i32, i32) {
    %c0_i32 = arith.constant 0 : i32
    %c0_i32_0 = arith.constant 0 : i32
    return %arg0, %arg1, %c0_i32 : i32, i32, i32
  }
  func.func @transform_6(%arg0: i32, %arg1: i32) -> (i32, i32, i32) {
    %c0_i32 = arith.constant 0 : i32
    %c0_i32_0 = arith.constant 0 : i32
    return %arg0, %arg1, %c0_i32 : i32, i32, i32
  }
}

module attributes {stable_mosaic.version = 11 : i64} {
  func.func @kernel(%arg0: i32, %arg1: i32, %arg2: i32, %arg3: memref<1x4x8x8xbf16, #tpu.memory_space<vmem>>, %arg4: memref<1x4x8x8xbf16, #tpu.memory_space<vmem>>, %arg5: memref<1x4x8x8xbf16, #tpu.memory_space<vmem>>, %arg6: memref<8x8xf32, #tpu.memory_space<vmem>>, %arg7: memref<8x8xf32, #tpu.memory_space<vmem>>, %arg8: memref<8x8xf32, #tpu.memory_space<vmem>>, %arg9: memref<8x8xf32, #tpu.memory_space<vmem>>, %arg10: memref<1x4x8x8xbf16, #tpu.memory_space<vmem>>, %arg11: memref<4x8x8xbf16, #tpu.memory_space<vmem>>, %arg12: memref<4x8x1xf32, #tpu.memory_space<vmem>>, %arg13: memref<4x8x1xf32, #tpu.memory_space<vmem>>, %arg14: memref<4x8x8xf32, #tpu.memory_space<vmem>>) attributes {dimension_semantics = [#tpu.dimension_semantics<parallel>, #tpu.dimension_semantics<parallel>, #tpu.dimension_semantics<arbitrary>], iteration_bounds = array<i64: 2, 1, 1>, scalar_prefetch = 0 : i64, scratch_operands = 4 : i64, tpu.core_type = #tpu.core_type<tc>, window_params = [{transform_indices = @transform_0, window_bounds = array<i64: 1, 4, 8, 8>}, {transform_indices = @transform_1, window_bounds = array<i64: 1, 4, 8, 8>}, {transform_indices = @transform_2, window_bounds = array<i64: 1, 4, 8, 8>}, {transform_indices = @transform_3, window_bounds = array<i64: 8, 8>}, {transform_indices = @transform_4, window_bounds = array<i64: 8, 8>}, {transform_indices = @transform_5, window_bounds = array<i64: 8, 8>}, {transform_indices = @transform_6, window_bounds = array<i64: 8, 8>}, {transform_indices = @transform_7, window_bounds = array<i64: 1, 4, 8, 8>}]} {
    %c0_i32 = arith.constant 0 : i32
    %0 = arith.cmpi eq, %arg2, %c0_i32 : i32
    %1 = arith.extui %0 : i1 to i32
    %c0_i32_0 = arith.constant 0 : i32
    %2 = arith.cmpi ne, %1, %c0_i32_0 : i32
    scf.if %2 {
      %c0 = arith.constant 0 : index
      %c0_4 = arith.constant 0 : index
      %c0_5 = arith.constant 0 : index
      %c0_6 = arith.constant 0 : index
      %9 = vector.load %arg3[%c0, %c0_4, %c0_5, %c0_6] : memref<1x4x8x8xbf16, #tpu.memory_space<vmem>>, vector<1x4x8x8xbf16>
      %10 = vector.shape_cast %9 : vector<1x4x8x8xbf16> to vector<4x8x8xbf16>
      %11 = arith.extf %10 : vector<4x8x8xbf16> to vector<4x8x8xf32>
      %c0_7 = arith.constant 0 : index
      %c0_8 = arith.constant 0 : index
      %12 = vector.load %arg6[%c0_7, %c0_8] : memref<8x8xf32, #tpu.memory_space<vmem>>, vector<8x8xf32>
      %c0_9 = arith.constant 0 : index
      %c0_10 = arith.constant 0 : index
      %13 = vector.load %arg7[%c0_9, %c0_10] : memref<8x8xf32, #tpu.memory_space<vmem>>, vector<8x8xf32>
      %14 = vector.extract_strided_slice %12 {offsets = [0, 0], sizes = [8, 4], strides = [1, 1]} : vector<8x8xf32> to vector<8x4xf32>
      %15 = vector.shape_cast %14 : vector<8x4xf32> to vector<1x8x4xf32>
      %16 = vector.extract_strided_slice %13 {offsets = [0, 0], sizes = [8, 4], strides = [1, 1]} : vector<8x8xf32> to vector<8x4xf32>
      %17 = vector.shape_cast %16 : vector<8x4xf32> to vector<1x8x4xf32>
      %18 = vector.extract_strided_slice %11 {offsets = [0, 0, 0], sizes = [4, 8, 4], strides = [1, 1, 1]} : vector<4x8x8xf32> to vector<4x8x4xf32>
      %19 = vector.extract_strided_slice %11 {offsets = [0, 0, 4], sizes = [4, 8, 4], strides = [1, 1, 1]} : vector<4x8x8xf32> to vector<4x8x4xf32>
      %20 = vector.broadcast %15 : vector<1x8x4xf32> to vector<4x8x4xf32>
      %21 = arith.mulf %18, %20 : vector<4x8x4xf32>
      %22 = vector.broadcast %17 : vector<1x8x4xf32> to vector<4x8x4xf32>
      %23 = arith.mulf %19, %22 : vector<4x8x4xf32>
      %24 = arith.addf %21, %23 : vector<4x8x4xf32>
      %cst = arith.constant 0.000000e+00 : f32
      %25 = vector.broadcast %cst : f32 to vector<4x8x4xf32>
      %26 = arith.subf %25, %18 : vector<4x8x4xf32>
      %27 = vector.broadcast %17 : vector<1x8x4xf32> to vector<4x8x4xf32>
      %28 = arith.mulf %26, %27 : vector<4x8x4xf32>
      %29 = vector.broadcast %15 : vector<1x8x4xf32> to vector<4x8x4xf32>
      %30 = arith.mulf %19, %29 : vector<4x8x4xf32>
      %31 = arith.addf %28, %30 : vector<4x8x4xf32>
      %32 = tpu.concatenate %24, %31 in 2 : vector<4x8x4xf32>, vector<4x8x4xf32> -> vector<4x8x8xf32>
      %33 = arith.mulf %32, %32 : vector<4x8x8xf32>
      %cst_11 = arith.constant dense<0.000000e+00> : vector<4x8xf32>
      %34 = vector.multi_reduction <add>, %33, %cst_11 [2] : vector<4x8x8xf32> to vector<4x8xf32>
      %35 = vector.shape_cast %34 : vector<4x8xf32> to vector<4x8x1xf32>
      %cst_12 = arith.constant 8.000000e+00 : f32
      %36 = vector.broadcast %cst_12 : f32 to vector<4x8x1xf32>
      %37 = arith.divf %35, %36 : vector<4x8x1xf32>
      %cst_13 = arith.constant 1.1920929E-7 : f32
      %38 = vector.broadcast %cst_13 : f32 to vector<4x8x1xf32>
      %39 = arith.addf %37, %38 : vector<4x8x1xf32>
      %40 = math.rsqrt %39 : vector<4x8x1xf32>
      %41 = vector.broadcast %40 : vector<4x8x1xf32> to vector<4x8x8xf32>
      %42 = arith.mulf %32, %41 : vector<4x8x8xf32>
      %cst_14 = arith.constant 0.353553385 : f32
      %43 = vector.broadcast %cst_14 : f32 to vector<4x8x8xf32>
      %44 = arith.mulf %42, %43 : vector<4x8x8xf32>
      %45 = arith.truncf %44 : vector<4x8x8xf32> to vector<4x8x8xbf16>
      %c0_15 = arith.constant 0 : index
      %c0_16 = arith.constant 0 : index
      %c0_17 = arith.constant 0 : index
      %46 = vector.load %arg11[%c0_15, %c0_16, %c0_17] : memref<4x8x8xbf16, #tpu.memory_space<vmem>>, vector<4x8x8xbf16>
      tpu.vector_store %arg11[%c0_15, %c0_16, %c0_17], %45 {strides = array<i32>} : memref<4x8x8xbf16, #tpu.memory_space<vmem>>, vector<4x8x8xbf16>,
      %cst_18 = arith.constant -1.000000e+30 : f32
      %47 = vector.broadcast %cst_18 : f32 to vector<4x8x1xf32>
      %c0_19 = arith.constant 0 : index
      %c0_20 = arith.constant 0 : index
      %c0_21 = arith.constant 0 : index
      %48 = vector.load %arg12[%c0_19, %c0_20, %c0_21] : memref<4x8x1xf32, #tpu.memory_space<vmem>>, vector<4x8x1xf32>
      tpu.vector_store %arg12[%c0_19, %c0_20, %c0_21], %47 {strides = array<i32>} : memref<4x8x1xf32, #tpu.memory_space<vmem>>, vector<4x8x1xf32>,
      %cst_22 = arith.constant 0.000000e+00 : f32
      %49 = vector.broadcast %cst_22 : f32 to vector<4x8x1xf32>
      %c0_23 = arith.constant 0 : index
      %c0_24 = arith.constant 0 : index
      %c0_25 = arith.constant 0 : index
      %50 = vector.load %arg13[%c0_23, %c0_24, %c0_25] : memref<4x8x1xf32, #tpu.memory_space<vmem>>, vector<4x8x1xf32>
      tpu.vector_store %arg13[%c0_23, %c0_24, %c0_25], %49 {strides = array<i32>} : memref<4x8x1xf32, #tpu.memory_space<vmem>>, vector<4x8x1xf32>,
      %cst_26 = arith.constant 0.000000e+00 : f32
      %51 = vector.broadcast %cst_26 : f32 to vector<4x8x8xf32>
      %c0_27 = arith.constant 0 : index
      %c0_28 = arith.constant 0 : index
      %c0_29 = arith.constant 0 : index
      %52 = vector.load %arg14[%c0_27, %c0_28, %c0_29] : memref<4x8x8xf32, #tpu.memory_space<vmem>>, vector<4x8x8xf32>
      tpu.vector_store %arg14[%c0_27, %c0_28, %c0_29], %51 {strides = array<i32>} : memref<4x8x8xf32, #tpu.memory_space<vmem>>, vector<4x8x8xf32>,
    } else {
    }
    %3 = arith.cmpi sle, %arg2, %arg1 : i32
    %4 = arith.extui %3 : i1 to i32
    %c0_i32_1 = arith.constant 0 : i32
    %5 = arith.cmpi ne, %4, %c0_i32_1 : i32
    scf.if %5 {
      %c0 = arith.constant 0 : index
      %c0_4 = arith.constant 0 : index
      %c0_5 = arith.constant 0 : index
      %c0_6 = arith.constant 0 : index
      %9 = vector.load %arg4[%c0, %c0_4, %c0_5, %c0_6] : memref<1x4x8x8xbf16, #tpu.memory_space<vmem>>, vector<1x4x8x8xbf16>
      %10 = vector.shape_cast %9 : vector<1x4x8x8xbf16> to vector<4x8x8xbf16>
      %11 = arith.extf %10 : vector<4x8x8xbf16> to vector<4x8x8xf32>
      %c0_7 = arith.constant 0 : index
      %c0_8 = arith.constant 0 : index
      %12 = vector.load %arg8[%c0_7, %c0_8] : memref<8x8xf32, #tpu.memory_space<vmem>>, vector<8x8xf32>
      %c0_9 = arith.constant 0 : index
      %c0_10 = arith.constant 0 : index
      %13 = vector.load %arg9[%c0_9, %c0_10] : memref<8x8xf32, #tpu.memory_space<vmem>>, vector<8x8xf32>
      %14 = vector.extract_strided_slice %12 {offsets = [0, 0], sizes = [8, 4], strides = [1, 1]} : vector<8x8xf32> to vector<8x4xf32>
      %15 = vector.shape_cast %14 : vector<8x4xf32> to vector<1x8x4xf32>
      %16 = vector.extract_strided_slice %13 {offsets = [0, 0], sizes = [8, 4], strides = [1, 1]} : vector<8x8xf32> to vector<8x4xf32>
      %17 = vector.shape_cast %16 : vector<8x4xf32> to vector<1x8x4xf32>
      %18 = vector.extract_strided_slice %11 {offsets = [0, 0, 0], sizes = [4, 8, 4], strides = [1, 1, 1]} : vector<4x8x8xf32> to vector<4x8x4xf32>
      %19 = vector.extract_strided_slice %11 {offsets = [0, 0, 4], sizes = [4, 8, 4], strides = [1, 1, 1]} : vector<4x8x8xf32> to vector<4x8x4xf32>
      %20 = vector.broadcast %15 : vector<1x8x4xf32> to vector<4x8x4xf32>
      %21 = arith.mulf %18, %20 : vector<4x8x4xf32>
      %22 = vector.broadcast %17 : vector<1x8x4xf32> to vector<4x8x4xf32>
      %23 = arith.mulf %19, %22 : vector<4x8x4xf32>
      %24 = arith.addf %21, %23 : vector<4x8x4xf32>
      %cst = arith.constant 0.000000e+00 : f32
      %25 = vector.broadcast %cst : f32 to vector<4x8x4xf32>
      %26 = arith.subf %25, %18 : vector<4x8x4xf32>
      %27 = vector.broadcast %17 : vector<1x8x4xf32> to vector<4x8x4xf32>
      %28 = arith.mulf %26, %27 : vector<4x8x4xf32>
      %29 = vector.broadcast %15 : vector<1x8x4xf32> to vector<4x8x4xf32>
      %30 = arith.mulf %19, %29 : vector<4x8x4xf32>
      %31 = arith.addf %28, %30 : vector<4x8x4xf32>
      %32 = tpu.concatenate %24, %31 in 2 : vector<4x8x4xf32>, vector<4x8x4xf32> -> vector<4x8x8xf32>
      %33 = arith.mulf %32, %32 : vector<4x8x8xf32>
      %cst_11 = arith.constant dense<0.000000e+00> : vector<4x8xf32>
      %34 = vector.multi_reduction <add>, %33, %cst_11 [2] : vector<4x8x8xf32> to vector<4x8xf32>
      %35 = vector.shape_cast %34 : vector<4x8xf32> to vector<4x8x1xf32>
      %cst_12 = arith.constant 8.000000e+00 : f32
      %36 = vector.broadcast %cst_12 : f32 to vector<4x8x1xf32>
      %37 = arith.divf %35, %36 : vector<4x8x1xf32>
      %cst_13 = arith.constant 1.1920929E-7 : f32
      %38 = vector.broadcast %cst_13 : f32 to vector<4x8x1xf32>
      %39 = arith.addf %37, %38 : vector<4x8x1xf32>
      %40 = math.rsqrt %39 : vector<4x8x1xf32>
      %41 = vector.broadcast %40 : vector<4x8x1xf32> to vector<4x8x8xf32>
      %42 = arith.mulf %32, %41 : vector<4x8x8xf32>
      %43 = arith.truncf %42 : vector<4x8x8xf32> to vector<4x8x8xbf16>
      %c0_14 = arith.constant 0 : index
      %c0_15 = arith.constant 0 : index
      %c0_16 = arith.constant 0 : index
      %44 = vector.load %arg11[%c0_14, %c0_15, %c0_16] : memref<4x8x8xbf16, #tpu.memory_space<vmem>>, vector<4x8x8xbf16>
      "tpu.trace_start"() <{level = 10 : i32, message = "hqd,hkd->hqk"}> : () -> ()
      %cst_17 = arith.constant dense<0.000000e+00> : vector<4x8x8xf32>
      %45 = tpu.matmul %44, %43, %cst_17 {dimension_numbers = #tpu.dot_dimension_numbers<[2], [2], [1], [1], [0, 0, 0, 1, 1, 1], [0], [0]>} : vector<4x8x8xbf16>, vector<4x8x8xbf16>, vector<4x8x8xf32> -> vector<4x8x8xf32>
      "tpu.trace_stop"() : () -> ()
      %c8_i32 = arith.constant 8 : i32
      %46 = arith.muli %arg1, %c8_i32 : i32
      %47 = tpu.iota {dimensions = array<i32: 0>} : vector<8x8xi32>
      %48 = vector.broadcast %46 : i32 to vector<8x8xi32>
      %49 = arith.addi %48, %47 : vector<8x8xi32>
      %c8_i32_18 = arith.constant 8 : i32
      %50 = arith.muli %arg2, %c8_i32_18 : i32
      %51 = tpu.iota {dimensions = array<i32: 1>} : vector<8x8xi32>
      %52 = vector.broadcast %50 : i32 to vector<8x8xi32>
      %53 = arith.addi %52, %51 : vector<8x8xi32>
      %54 = arith.cmpi sle, %53, %49 : vector<8x8xi32>
      %55 = vector.shape_cast %54 : vector<8x8xi1> to vector<1x8x8xi1>
      %cst_19 = arith.constant -1.000000e+30 : f32
      %56 = vector.shape_cast %55 : vector<1x8x8xi1> to vector<1x8x8xi1>
      %57 = vector.broadcast %56 : vector<1x8x8xi1> to vector<4x8x8xi1>
      %58 = vector.broadcast %cst_19 : f32 to vector<4x8x8xf32>
      %59 = arith.select %57, %45, %58 : vector<4x8x8xi1>, vector<4x8x8xf32>
      %c0_20 = arith.constant 0 : index
      %c0_21 = arith.constant 0 : index
      %c0_22 = arith.constant 0 : index
      %60 = vector.load %arg12[%c0_20, %c0_21, %c0_22] : memref<4x8x1xf32, #tpu.memory_space<vmem>>, vector<4x8x1xf32>
      %cst_23 = arith.constant dense<0xFF800000> : vector<4x8xf32>
      %61 = vector.multi_reduction <maximumf>, %59, %cst_23 [2] : vector<4x8x8xf32> to vector<4x8xf32>
      %62 = vector.shape_cast %61 : vector<4x8xf32> to vector<4x8x1xf32>
      %63 = arith.maximumf %60, %62 : vector<4x8x1xf32>
      %64 = arith.subf %60, %63 : vector<4x8x1xf32>
      %65 = math.exp %64 : vector<4x8x1xf32>
      %66 = vector.broadcast %63 : vector<4x8x1xf32> to vector<4x8x8xf32>
      %67 = arith.subf %59, %66 : vector<4x8x8xf32>
      %68 = math.exp %67 : vector<4x8x8xf32>
      %c0_24 = arith.constant 0 : index
      %c0_25 = arith.constant 0 : index
      %c0_26 = arith.constant 0 : index
      %69 = vector.load %arg13[%c0_24, %c0_25, %c0_26] : memref<4x8x1xf32, #tpu.memory_space<vmem>>, vector<4x8x1xf32>
      %70 = arith.mulf %65, %69 : vector<4x8x1xf32>
      %cst_27 = arith.constant dense<0.000000e+00> : vector<4x8xf32>
      %71 = vector.multi_reduction <add>, %68, %cst_27 [2] : vector<4x8x8xf32> to vector<4x8xf32>
      %72 = vector.shape_cast %71 : vector<4x8xf32> to vector<4x8x1xf32>
      %73 = arith.addf %70, %72 : vector<4x8x1xf32>
      %c0_28 = arith.constant 0 : index
      %c0_29 = arith.constant 0 : index
      %c0_30 = arith.constant 0 : index
      %74 = vector.load %arg13[%c0_28, %c0_29, %c0_30] : memref<4x8x1xf32, #tpu.memory_space<vmem>>, vector<4x8x1xf32>
      tpu.vector_store %arg13[%c0_28, %c0_29, %c0_30], %73 {strides = array<i32>} : memref<4x8x1xf32, #tpu.memory_space<vmem>>, vector<4x8x1xf32>,
      %c0_31 = arith.constant 0 : index
      %c0_32 = arith.constant 0 : index
      %c0_33 = arith.constant 0 : index
      %75 = vector.load %arg14[%c0_31, %c0_32, %c0_33] : memref<4x8x8xf32, #tpu.memory_space<vmem>>, vector<4x8x8xf32>
      %76 = vector.broadcast %65 : vector<4x8x1xf32> to vector<4x8x8xf32>
      %77 = arith.mulf %76, %75 : vector<4x8x8xf32>
      %78 = arith.truncf %68 : vector<4x8x8xf32> to vector<4x8x8xbf16>
      %c0_34 = arith.constant 0 : index
      %c0_35 = arith.constant 0 : index
      %c0_36 = arith.constant 0 : index
      %c0_37 = arith.constant 0 : index
      %79 = vector.load %arg5[%c0_34, %c0_35, %c0_36, %c0_37] : memref<1x4x8x8xbf16, #tpu.memory_space<vmem>>, vector<1x4x8x8xbf16>
      %80 = vector.shape_cast %79 : vector<1x4x8x8xbf16> to vector<4x8x8xbf16>
      "tpu.trace_start"() <{level = 10 : i32, message = "hqk,hkd->hqd"}> : () -> ()
      %cst_38 = arith.constant dense<0.000000e+00> : vector<4x8x8xf32>
      %81 = tpu.matmul %78, %80, %cst_38 {dimension_numbers = #tpu.dot_dimension_numbers<[2], [1], [1], [2], [0, 0, 0, 1, 1, 2], [0], [0]>} : vector<4x8x8xbf16>, vector<4x8x8xbf16>, vector<4x8x8xf32> -> vector<4x8x8xf32>
      "tpu.trace_stop"() : () -> ()
      %82 = arith.addf %77, %81 : vector<4x8x8xf32>
      %c0_39 = arith.constant 0 : index
      %c0_40 = arith.constant 0 : index
      %c0_41 = arith.constant 0 : index
      %83 = vector.load %arg14[%c0_39, %c0_40, %c0_41] : memref<4x8x8xf32, #tpu.memory_space<vmem>>, vector<4x8x8xf32>
      tpu.vector_store %arg14[%c0_39, %c0_40, %c0_41], %82 {strides = array<i32>} : memref<4x8x8xf32, #tpu.memory_space<vmem>>, vector<4x8x8xf32>,
      %c0_42 = arith.constant 0 : index
      %c0_43 = arith.constant 0 : index
      %c0_44 = arith.constant 0 : index
      %84 = vector.load %arg12[%c0_42, %c0_43, %c0_44] : memref<4x8x1xf32, #tpu.memory_space<vmem>>, vector<4x8x1xf32>
      tpu.vector_store %arg12[%c0_42, %c0_43, %c0_44], %63 {strides = array<i32>} : memref<4x8x1xf32, #tpu.memory_space<vmem>>, vector<4x8x1xf32>,
    } else {
    }
    %c0_i32_2 = arith.constant 0 : i32
    %6 = arith.cmpi eq, %arg2, %c0_i32_2 : i32
    %7 = arith.extui %6 : i1 to i32
    %c0_i32_3 = arith.constant 0 : i32
    %8 = arith.cmpi ne, %7, %c0_i32_3 : i32
    scf.if %8 {
      %c0 = arith.constant 0 : index
      %c0_4 = arith.constant 0 : index
      %c0_5 = arith.constant 0 : index
      %9 = vector.load %arg13[%c0, %c0_4, %c0_5] : memref<4x8x1xf32, #tpu.memory_space<vmem>>, vector<4x8x1xf32>
      %10 = tpu.reciprocal %9 {approx = true} : vector<4x8x1xf32> -> vector<4x8x1xf32>
      %c0_6 = arith.constant 0 : index
      %c0_7 = arith.constant 0 : index
      %c0_8 = arith.constant 0 : index
      %11 = vector.load %arg14[%c0_6, %c0_7, %c0_8] : memref<4x8x8xf32, #tpu.memory_space<vmem>>, vector<4x8x8xf32>
      %12 = vector.broadcast %10 : vector<4x8x1xf32> to vector<4x8x8xf32>
      %13 = arith.mulf %11, %12 : vector<4x8x8xf32>
      %14 = arith.truncf %13 : vector<4x8x8xf32> to vector<4x8x8xbf16>
      %c0_9 = arith.constant 0 : index
      %c0_10 = arith.constant 0 : index
      %c0_11 = arith.constant 0 : index
      %c0_12 = arith.constant 0 : index
      %15 = vector.load %arg10[%c0_9, %c0_10, %c0_11, %c0_12] : memref<1x4x8x8xbf16, #tpu.memory_space<vmem>>, vector<1x4x8x8xbf16>
      %16 = vector.shape_cast %15 : vector<1x4x8x8xbf16> to vector<4x8x8xbf16>
      %17 = vector.shape_cast %14 : vector<4x8x8xbf16> to vector<1x4x8x8xbf16>
      tpu.vector_store %arg10[%c0_9, %c0_10, %c0_11, %c0_12], %17 {strides = array<i32>} : memref<1x4x8x8xbf16, #tpu.memory_space<vmem>>, vector<1x4x8x8xbf16>,
    } else {
    }
    return
  }
  func.func @transform_0(%arg0: i32, %arg1: i32, %arg2: i32) -> (i32, i32, i32, i32) {
    %c0_i32 = arith.constant 0 : i32
    %c0_i32_0 = arith.constant 0 : i32
    %c0_i32_1 = arith.constant 0 : i32
    return %arg0, %c0_i32, %arg1, %c0_i32_0 : i32, i32, i32, i32
  }
  func.func @transform_1(%arg0: i32, %arg1: i32, %arg2: i32) -> (i32, i32, i32, i32) {
    %c0_i32 = arith.constant 0 : i32
    %c0_i32_0 = arith.constant 0 : i32
    %c0_i32_1 = arith.constant 0 : i32
    return %arg0, %c0_i32, %arg2, %c0_i32_0 : i32, i32, i32, i32
  }
  func.func @transform_2(%arg0: i32, %arg1: i32, %arg2: i32) -> (i32, i32, i32, i32) {
    %c0_i32 = arith.constant 0 : i32
    %c0_i32_0 = arith.constant 0 : i32
    %c0_i32_1 = arith.constant 0 : i32
    return %arg0, %c0_i32, %arg2, %c0_i32_0 : i32, i32, i32, i32
  }
  func.func @transform_3(%arg0: i32, %arg1: i32, %arg2: i32) -> (i32, i32) {
    %c0_i32 = arith.constant 0 : i32
    %c0_i32_0 = arith.constant 0 : i32
    return %arg1, %c0_i32 : i32, i32
  }
  func.func @transform_4(%arg0: i32, %arg1: i32, %arg2: i32) -> (i32, i32) {
    %c0_i32 = arith.constant 0 : i32
    %c0_i32_0 = arith.constant 0 : i32
    return %arg1, %c0_i32 : i32, i32
  }
  func.func @transform_5(%arg0: i32, %arg1: i32, %arg2: i32) -> (i32, i32) {
    %c0_i32 = arith.constant 0 : i32
    %c0_i32_0 = arith.constant 0 : i32
    return %arg2, %c0_i32 : i32, i32
  }
  func.func @transform_6(%arg0: i32, %arg1: i32, %arg2: i32) -> (i32, i32) {
    %c0_i32 = arith.constant 0 : i32
    %c0_i32_0 = arith.constant 0 : i32
    return %arg2, %c0_i32 : i32, i32
  }
  func.func @transform_7(%arg0: i32, %arg1: i32, %arg2: i32) -> (i32, i32, i32, i32) {
    %c0_i32 = arith.constant 0 : i32
    %c0_i32_0 = arith.constant 0 : i32
    %c0_i32_1 = arith.constant 0 : i32
    return %arg0, %c0_i32, %arg1, %c0_i32_0 : i32, i32, i32, i32
  }
}

module attributes {stable_mosaic.version = 11 : i64} {
  func.func @_proj_mlp_kernel(%arg0: i32, %arg1: i32, %arg2: i32, %arg3: memref<1x8x32xf32, #tpu.memory_space<vmem>>, %arg4: memref<1x8x32xbf16, #tpu.memory_space<vmem>>, %arg5: memref<32x32xbf16, #tpu.memory_space<vmem>>, %arg6: memref<32x128xbf16, #tpu.memory_space<vmem>>, %arg7: memref<128x32xbf16, #tpu.memory_space<vmem>>, %arg8: memref<1x8x32xf32, #tpu.memory_space<vmem>>, %arg9: memref<8x32xf32, #tpu.memory_space<vmem>>, %arg10: memref<8x32xbf16, #tpu.memory_space<vmem>>, %arg11: memref<8x32xf32, #tpu.memory_space<vmem>>) attributes {dimension_semantics = [#tpu.dimension_semantics<parallel>, #tpu.dimension_semantics<parallel>, #tpu.dimension_semantics<arbitrary>], iteration_bounds = array<i64: 2, 1, 1>, scalar_prefetch = 0 : i64, scratch_operands = 3 : i64, tpu.core_type = #tpu.core_type<tc>, window_params = [{transform_indices = @transform_0, window_bounds = array<i64: 1, 8, 32>}, {transform_indices = @transform_1, window_bounds = array<i64: 1, 8, 32>}, {pipeline_mode = #tpu.pipeline_mode<synchronous>, transform_indices = @transform_2, window_bounds = array<i64: 32, 32>}, {transform_indices = @transform_3, window_bounds = array<i64: 32, 128>}, {transform_indices = @transform_4, window_bounds = array<i64: 128, 32>}, {transform_indices = @transform_5, window_bounds = array<i64: 1, 8, 32>}]} {
    %c0_i32 = arith.constant 0 : i32
    %0 = arith.cmpi eq, %arg2, %c0_i32 : i32
    %1 = arith.extui %0 : i1 to i32
    %c0_i32_0 = arith.constant 0 : i32
    %2 = arith.cmpi ne, %1, %c0_i32_0 : i32
    scf.if %2 {
      %c0_14 = arith.constant 0 : index
      %c0_15 = arith.constant 0 : index
      %c0_16 = arith.constant 0 : index
      %18 = vector.load %arg4[%c0_14, %c0_15, %c0_16] : memref<1x8x32xbf16, #tpu.memory_space<vmem>>, vector<1x8x32xbf16>
      %19 = vector.shape_cast %18 : vector<1x8x32xbf16> to vector<8x32xbf16>
      %c0_17 = arith.constant 0 : index
      %c0_18 = arith.constant 0 : index
      %20 = vector.load %arg5[%c0_17, %c0_18] : memref<32x32xbf16, #tpu.memory_space<vmem>>, vector<32x32xbf16>
      %cst_19 = arith.constant dense<0.000000e+00> : vector<8x32xf32>
      %21 = tpu.matmul %19, %20, %cst_19 {dimension_numbers = #tpu.dot_dimension_numbers<[1], [0], [0], [1], [0, 0, 1, 1], [], []>} : vector<8x32xbf16>, vector<32x32xbf16>, vector<8x32xf32> -> vector<8x32xf32>
      %c0_20 = arith.constant 0 : index
      %c0_21 = arith.constant 0 : index
      %c0_22 = arith.constant 0 : index
      %22 = vector.load %arg3[%c0_20, %c0_21, %c0_22] : memref<1x8x32xf32, #tpu.memory_space<vmem>>, vector<1x8x32xf32>
      %23 = vector.shape_cast %22 : vector<1x8x32xf32> to vector<8x32xf32>
      %24 = arith.addf %23, %21 : vector<8x32xf32>
      %c0_23 = arith.constant 0 : index
      %c0_24 = arith.constant 0 : index
      %25 = vector.load %arg9[%c0_23, %c0_24] : memref<8x32xf32, #tpu.memory_space<vmem>>, vector<8x32xf32>
      tpu.vector_store %arg9[%c0_23, %c0_24], %24 {strides = array<i32>} : memref<8x32xf32, #tpu.memory_space<vmem>>, vector<8x32xf32>,
      %26 = arith.mulf %24, %24 : vector<8x32xf32>
      %cst_25 = arith.constant dense<0.000000e+00> : vector<8xf32>
      %27 = vector.multi_reduction <add>, %26, %cst_25 [1] : vector<8x32xf32> to vector<8xf32>
      %28 = vector.shape_cast %27 : vector<8xf32> to vector<8x1xf32>
      %cst_26 = arith.constant 3.200000e+01 : f32
      %29 = vector.broadcast %cst_26 : f32 to vector<8x1xf32>
      %30 = arith.divf %28, %29 : vector<8x1xf32>
      %cst_27 = arith.constant 1.1920929E-7 : f32
      %31 = vector.broadcast %cst_27 : f32 to vector<8x1xf32>
      %32 = arith.addf %30, %31 : vector<8x1xf32>
      %33 = math.rsqrt %32 : vector<8x1xf32>
      %34 = vector.broadcast %33 : vector<8x1xf32> to vector<8x32xf32>
      %35 = arith.mulf %24, %34 : vector<8x32xf32>
      %36 = arith.truncf %35 : vector<8x32xf32> to vector<8x32xbf16>
      %c0_28 = arith.constant 0 : index
      %c0_29 = arith.constant 0 : index
      %37 = vector.load %arg10[%c0_28, %c0_29] : memref<8x32xbf16, #tpu.memory_space<vmem>>, vector<8x32xbf16>
      tpu.vector_store %arg10[%c0_28, %c0_29], %36 {strides = array<i32>} : memref<8x32xbf16, #tpu.memory_space<vmem>>, vector<8x32xbf16>,
      %cst_30 = arith.constant 0.000000e+00 : f32
      %38 = vector.broadcast %cst_30 : f32 to vector<8x32xf32>
      %c0_31 = arith.constant 0 : index
      %c0_32 = arith.constant 0 : index
      %39 = vector.load %arg11[%c0_31, %c0_32] : memref<8x32xf32, #tpu.memory_space<vmem>>, vector<8x32xf32>
      tpu.vector_store %arg11[%c0_31, %c0_32], %38 {strides = array<i32>} : memref<8x32xf32, #tpu.memory_space<vmem>>, vector<8x32xf32>,
    } else {
    }
    %c0 = arith.constant 0 : index
    %c0_1 = arith.constant 0 : index
    %3 = vector.load %arg10[%c0, %c0_1] : memref<8x32xbf16, #tpu.memory_space<vmem>>, vector<8x32xbf16>
    %c0_2 = arith.constant 0 : index
    %c0_3 = arith.constant 0 : index
    %4 = vector.load %arg6[%c0_2, %c0_3] : memref<32x128xbf16, #tpu.memory_space<vmem>>, vector<32x128xbf16>
    %cst = arith.constant dense<0.000000e+00> : vector<8x128xf32>
    %5 = tpu.matmul %3, %4, %cst {dimension_numbers = #tpu.dot_dimension_numbers<[1], [0], [0], [1], [0, 0, 1, 1], [], []>} : vector<8x32xbf16>, vector<32x128xbf16>, vector<8x128xf32> -> vector<8x128xf32>
    %cst_4 = arith.constant 0.000000e+00 : f32
    %6 = vector.broadcast %cst_4 : f32 to vector<8x128xf32>
    %7 = arith.maximumf %5, %6 : vector<8x128xf32>
    %8 = arith.mulf %7, %7 : vector<8x128xf32>
    %9 = arith.truncf %8 : vector<8x128xf32> to vector<8x128xbf16>
    %c0_5 = arith.constant 0 : index
    %c0_6 = arith.constant 0 : index
    %10 = vector.load %arg11[%c0_5, %c0_6] : memref<8x32xf32, #tpu.memory_space<vmem>>, vector<8x32xf32>
    %c0_7 = arith.constant 0 : index
    %c0_8 = arith.constant 0 : index
    %11 = vector.load %arg7[%c0_7, %c0_8] : memref<128x32xbf16, #tpu.memory_space<vmem>>, vector<128x32xbf16>
    %cst_9 = arith.constant dense<0.000000e+00> : vector<8x32xf32>
    %12 = tpu.matmul %9, %11, %cst_9 {dimension_numbers = #tpu.dot_dimension_numbers<[1], [0], [0], [1], [0, 0, 1, 1], [], []>} : vector<8x128xbf16>, vector<128x32xbf16>, vector<8x32xf32> -> vector<8x32xf32>
    %13 = arith.addf %10, %12 : vector<8x32xf32>
    %c0_10 = arith.constant 0 : index
    %c0_11 = arith.constant 0 : index
    %14 = vector.load %arg11[%c0_10, %c0_11] : memref<8x32xf32, #tpu.memory_space<vmem>>, vector<8x32xf32>
    tpu.vector_store %arg11[%c0_10, %c0_11], %13 {strides = array<i32>} : memref<8x32xf32, #tpu.memory_space<vmem>>, vector<8x32xf32>,
    %c0_i32_12 = arith.constant 0 : i32
    %15 = arith.cmpi eq, %arg2, %c0_i32_12 : i32
    %16 = arith.extui %15 : i1 to i32
    %c0_i32_13 = arith.constant 0 : i32
    %17 = arith.cmpi ne, %16, %c0_i32_13 : i32
    scf.if %17 {
      %c0_14 = arith.constant 0 : index
      %c0_15 = arith.constant 0 : index
      %18 = vector.load %arg9[%c0_14, %c0_15] : memref<8x32xf32, #tpu.memory_space<vmem>>, vector<8x32xf32>
      %c0_16 = arith.constant 0 : index
      %c0_17 = arith.constant 0 : index
      %19 = vector.load %arg11[%c0_16, %c0_17] : memref<8x32xf32, #tpu.memory_space<vmem>>, vector<8x32xf32>
      %20 = arith.addf %18, %19 : vector<8x32xf32>
      %c0_18 = arith.constant 0 : index
      %c0_19 = arith.constant 0 : index
      %c0_20 = arith.constant 0 : index
      %21 = vector.load %arg8[%c0_18, %c0_19, %c0_20] : memref<1x8x32xf32, #tpu.memory_space<vmem>>, vector<1x8x32xf32>
      %22 = vector.shape_cast %21 : vector<1x8x32xf32> to vector<8x32xf32>
      %23 = vector.shape_cast %20 : vector<8x32xf32> to vector<1x8x32xf32>
      tpu.vector_store %arg8[%c0_18, %c0_19, %c0_20], %23 {strides = array<i32>} : memref<1x8x32xf32, #tpu.memory_space<vmem>>, vector<1x8x32xf32>,
    } else {
    }
    return
  }
  func.func @transform_0(%arg0: i32, %arg1: i32, %arg2: i32) -> (i32, i32, i32) {
    %c0_i32 = arith.constant 0 : i32
    %c0_i32_0 = arith.constant 0 : i32
    return %arg0, %arg1, %c0_i32 : i32, i32, i32
  }
  func.func @transform_1(%arg0: i32, %arg1: i32, %arg2: i32) -> (i32, i32, i32) {
    %c0_i32 = arith.constant 0 : i32
    %c0_i32_0 = arith.constant 0 : i32
    return %arg0, %arg1, %c0_i32 : i32, i32, i32
  }
  func.func @transform_2(%arg0: i32, %arg1: i32, %arg2: i32) -> (i32, i32) {
    %c0_i32 = arith.constant 0 : i32
    %c0_i32_0 = arith.constant 0 : i32
    %c0_i32_1 = arith.constant 0 : i32
    return %c0_i32, %c0_i32_0 : i32, i32
  }
  func.func @transform_3(%arg0: i32, %arg1: i32, %arg2: i32) -> (i32, i32) {
    %c0_i32 = arith.constant 0 : i32
    %c0_i32_0 = arith.constant 0 : i32
    return %c0_i32, %arg2 : i32, i32
  }
  func.func @transform_4(%arg0: i32, %arg1: i32, %arg2: i32) -> (i32, i32) {
    %c0_i32 = arith.constant 0 : i32
    %c0_i32_0 = arith.constant 0 : i32
    return %arg2, %c0_i32 : i32, i32
  }
  func.func @transform_5(%arg0: i32, %arg1: i32, %arg2: i32) -> (i32, i32, i32) {
    %c0_i32 = arith.constant 0 : i32
    %c0_i32_0 = arith.constant 0 : i32
    return %arg0, %arg1, %c0_i32 : i32, i32, i32
  }
}

</mosaic_0001>

<llo_original>
// kernel: neg.1
$region0: #{neg.1}
  #allocation0 [shape = 's32[1]{0}', space=sflag, size = 0x4, scoped, tag = 'scoped memory for neg.1']
  %s0 = inlined_call_operand.vmem [shape: f32[8,4], index: 0, kind: input, shape index: {}]
  %s1 = inlined_call_operand.vmem [shape: f32[8,4], index: 1, kind: output, shape index: {}]
  %v2 = vld [vmem:[%s0] sm:$0xff]
  %3 = xla_tuple %v2
  %4 = xla_tuple %3
  %v5 = vxor.u32 %v2, 2147483648
  %6 = xla_tuple %v5
  %7 = vst [vmem:[%s1] sm:$0xff] %v5

// kernel: block_forward.3
$region0: #{block_forward.3}
  #allocation0 [shape = 'u32[]', space=smem, size = 0x4, offset = 0x4, fixed_abs, tag = 'smem constant byte address 0x4 - core index']
  #allocation1 [shape = 'u32[144,128]{1,0:T(1,128)}', space=vmem, size = 0x12000, scoped, tag = 'internal scratch']
  %s0 = inlined_call_operand.vmem [shape: f32[2,8,32], index: 0, kind: input, shape index: {}]
  %s1 = inlined_call_operand.vmem [shape: bf16[32,32], index: 1, kind: input, shape index: {}]
  %s2 = inlined_call_operand.vmem [shape: bf16[32,32], index: 2, kind: input, shape index: {}]
  %s3 = inlined_call_operand.vmem [shape: bf16[32,32], index: 3, kind: input, shape index: {}]
  %s4 = inlined_call_operand.vmem [shape: bf16[2,8,32], index: 4, kind: output, shape index: {0}]
  %s5 = inlined_call_operand.vmem [shape: bf16[2,8,32], index: 5, kind: output, shape index: {1}]
  %s6 = inlined_call_operand.vmem [shape: bf16[2,8,32], index: 6, kind: output, shape index: {2}]
  %7 = xla_tuple %s4, %s5, %s6
  %s8 = sld [smem:[#allocation0]]
  $region65: #{block_forward.3} parent=0
    _
  %s10 = ssub.s32 1, %s8
  %s11 = scalar_select 0, %s10, %s8
  loop: start=0, step=1, limit=4
  $region2: #{block_forward.3} parent=0 // loop_pre_header
    _
  $region3: #{block_forward.3} parent=0 // loop_header
    %s13 = sphi 0, %s17
    %p14 = scmp.ge.s32.totalorder %s13, 4
    %s20 = sphi 0, %s32
    %s21 = sphi 0, %s28
    %s22 = sphi 0, %s20
    %s23 = sphi 0, %s21
    %s24 = sphi 0, %s22
    %s25 = sphi 0, %s23
    %s37 = sphi 0, %s39
    %s40 = sphi 0, %s37
    %s41 = sphi 0, %s40
    %s57 = sphi 0, %s41
    %s61 = sphi 0, %s61
    %s63 = sphi 0, %s61
    %s64 = sphi 0, %s63
    %s78 = sphi 0, %s64
    %s82 = sphi 0, %s82
    %s84 = sphi 0, %s82
    %s85 = sphi 0, %s84
    %s99 = sphi 0, %s85
    %s103 = sphi 0, %s103
    %s105 = sphi 0, %s103
    %s106 = sphi 0, %s105
    %s120 = sphi 0, %s106
    %s128 = sphi 0, %s130
    %s131 = sphi 0, %s128
    %s132 = sphi 0, %s131
    %s148 = sphi 0, %s132
    %s156 = sphi 0, %s158
    %s159 = sphi 0, %s156
    %s160 = sphi 0, %s159
    %s176 = sphi 0, %s160
    %s184 = sphi 0, %s186
    %s187 = sphi 0, %s184
    %s188 = sphi 0, %s187
    %s204 = sphi 0, %s188
  $region4: #{block_forward.3} parent=0 // loop_header_branch
    %16 = sbr.rel (%p14) target = $region8
  $region5: #{block_forward.3} parent=0 // loop_body
    %s18 = ssub.s32 %s13, 1
    %s19 = ssub.s32 %s13, 2
    %s26 = sadd.s32 1, %s21
    %p27 = scmp.ge.s32.totalorder %s26, 1
    %s28 = scalar_select %p27, 0, %s26
    %s29 = sadd.s32 1, %s20
    %s30 = scalar_select %p27, %s29, %s20
    %p31 = scmp.ge.s32.totalorder %s30, 2
    %s32 = scalar_select %p31, 0, %s30
    %s33 = ssub.s32 %s20, %s32
    %s34 = ssub.s32 %s21, %s28
    %s35 = sor.u32 %s33, %s34
    %p36 = scmp.eq.s32.totalorder %s35, 0
    %s38 = sadd.s32 %s37, 1
    %s39 = scalar_select %p36, %s37, %s38
    %p42 = pneg %p36
    %p43 = scmp.eq.s32.totalorder %s13, 1
    %p44 = por %p42, %p43
    %p45 = scmp.ne.s32.totalorder %s37, %s40
    %p46 = scmp.eq.s32.totalorder %s13, 0
    %p47 = por %p45, %p46
    %p48 = scmp.ne.s32.totalorder %s37, %s40
    %p49 = scmp.eq.s32.totalorder %s18, 1
    %p50 = por %p48, %p49
    %p51 = scmp.ne.s32.totalorder %s40, %s41
    %p52 = scmp.eq.s32.totalorder %s18, 0
    %p53 = por %p51, %p52
    %p54 = scmp.ne.s32.totalorder %s40, %s41
    %p55 = scmp.eq.s32.totalorder %s19, 1
    %p56 = por %p54, %p55
    %p58 = scmp.ne.s32.totalorder %s41, %s57
    %p59 = scmp.eq.s32.totalorder %s19, 0
    %p60 = por %p58, %p59
    %s62 = sadd.s32 %s61, 1
    %p65 = scmp.eq.s32.totalorder %s13, 1
    %p66 = scmp.ne.s32.totalorder %s61, %s63
    %p67 = scmp.eq.s32.totalorder %s13, 0
    %p68 = por %p66, %p67
    %p69 = scmp.ne.s32.totalorder %s61, %s63
    %p70 = scmp.eq.s32.totalorder %s18, 1
    %p71 = por %p69, %p70
    %p72 = scmp.ne.s32.totalorder %s63, %s64
    %p73 = scmp.eq.s32.totalorder %s18, 0
    %p74 = por %p72, %p73
    %p75 = scmp.ne.s32.totalorder %s63, %s64
    %p76 = scmp.eq.s32.totalorder %s19, 1
    %p77 = por %p75, %p76
    %p79 = scmp.ne.s32.totalorder %s64, %s78
    %p80 = scmp.eq.s32.totalorder %s19, 0
    %p81 = por %p79, %p80
    %s83 = sadd.s32 %s82, 1
    %p86 = scmp.eq.s32.totalorder %s13, 1
    %p87 = scmp.ne.s32.totalorder %s82, %s84
    %p88 = scmp.eq.s32.totalorder %s13, 0
    %p89 = por %p87, %p88
    %p90 = scmp.ne.s32.totalorder %s82, %s84
    %p91 = scmp.eq.s32.totalorder %s18, 1
    %p92 = por %p90, %p91
    %p93 = scmp.ne.s32.totalorder %s84, %s85
    %p94 = scmp.eq.s32.totalorder %s18, 0
    %p95 = por %p93, %p94
    %p96 = scmp.ne.s32.totalorder %s84, %s85
    %p97 = scmp.eq.s32.totalorder %s19, 1
    %p98 = por %p96, %p97
    %p100 = scmp.ne.s32.totalorder %s85, %s99
    %p101 = scmp.eq.s32.totalorder %s19, 0
    %p102 = por %p100, %p101
    %s104 = sadd.s32 %s103, 1
    %p107 = scmp.eq.s32.totalorder %s13, 1
    %p108 = scmp.ne.s32.totalorder %s103, %s105
    %p109 = scmp.eq.s32.totalorder %s13, 0
    %p110 = por %p108, %p109
    %p111 = scmp.ne.s32.totalorder %s103, %s105
    %p112 = scmp.eq.s32.totalorder %s18, 1
    %p113 = por %p111, %p112
    %p114 = scmp.ne.s32.totalorder %s105, %s106
    %p115 = scmp.eq.s32.totalorder %s18, 0
    %p116 = por %p114, %p115
    %p117 = scmp.ne.s32.totalorder %s105, %s106
    %p118 = scmp.eq.s32.totalorder %s19, 1
    %p119 = por %p117, %p118
    %p121 = scmp.ne.s32.totalorder %s106, %s120
    %p122 = scmp.eq.s32.totalorder %s19, 0
    %p123 = por %p121, %p122
    %s124 = ssub.s32 %s20, %s32
    %s125 = ssub.s32 %s21, %s28
    %s126 = sor.u32 %s124, %s125
    %p127 = scmp.eq.s32.totalorder %s126, 0
    %s129 = sadd.s32 %s128, 1
    %s130 = scalar_select %p127, %s128, %s129
    %p133 = pneg %p127
    %p134 = scmp.eq.s32.totalorder %s13, 1
    %p135 = por %p133, %p134
    %p136 = scmp.ne.s32.totalorder %s128, %s131
    %p137 = scmp.eq.s32.totalorder %s13, 0
    %p138 = por %p136, %p137
    %p139 = scmp.ne.s32.totalorder %s128, %s131
    %p140 = scmp.eq.s32.totalorder %s18, 1
    %p141 = por %p139, %p140
    %p142 = scmp.ne.s32.totalorder %s131, %s132
    %p143 = scmp.eq.s32.totalorder %s18, 0
    %p144 = por %p142, %p143
    %p145 = scmp.ne.s32.totalorder %s131, %s132
    %p146 = scmp.eq.s32.totalorder %s19, 1
    %p147 = por %p145, %p146
    %p149 = scmp.ne.s32.totalorder %s132, %s148
    %p150 = scmp.eq.s32.totalorder %s19, 0
    %p151 = por %p149, %p150
    %s152 = ssub.s32 %s20, %s32
    %s153 = ssub.s32 %s21, %s28
    %s154 = sor.u32 %s152, %s153
    %p155 = scmp.eq.s32.totalorder %s154, 0
    %s157 = sadd.s32 %s156, 1
    %s158 = scalar_select %p155, %s156, %s157
    %p161 = pneg %p155
    %p162 = scmp.eq.s32.totalorder %s13, 1
    %p163 = por %p161, %p162
    %p164 = scmp.ne.s32.totalorder %s156, %s159
    %p165 = scmp.eq.s32.totalorder %s13, 0
    %p166 = por %p164, %p165
    %p167 = scmp.ne.s32.totalorder %s156, %s159
    %p168 = scmp.eq.s32.totalorder %s18, 1
    %p169 = por %p167, %p168
    %p170 = scmp.ne.s32.totalorder %s159, %s160
    %p171 = scmp.eq.s32.totalorder %s18, 0
    %p172 = por %p170, %p171
    %p173 = scmp.ne.s32.totalorder %s159, %s160
    %p174 = scmp.eq.s32.totalorder %s19, 1
    %p175 = por %p173, %p174
    %p177 = scmp.ne.s32.totalorder %s160, %s176
    %p178 = scmp.eq.s32.totalorder %s19, 0
    %p179 = por %p177, %p178
    %s180 = ssub.s32 %s20, %s32
    %s181 = ssub.s32 %s21, %s28
    %s182 = sor.u32 %s180, %s181
    %p183 = scmp.eq.s32.totalorder %s182, 0
    %s185 = sadd.s32 %s184, 1
    %s186 = scalar_select %p183, %s184, %s185
    %p189 = pneg %p183
    %p190 = scmp.eq.s32.totalorder %s13, 1
    %p191 = por %p189, %p190
    %p192 = scmp.ne.s32.totalorder %s184, %s187
    %p193 = scmp.eq.s32.totalorder %s13, 0
    %p194 = por %p192, %p193
    %p195 = scmp.ne.s32.totalorder %s184, %s187
    %p196 = scmp.eq.s32.totalorder %s18, 1
    %p197 = por %p195, %p196
    %p198 = scmp.ne.s32.totalorder %s187, %s188
    %p199 = scmp.eq.s32.totalorder %s18, 0
    %p200 = por %p198, %p199
    %p201 = scmp.ne.s32.totalorder %s187, %s188
    %p202 = scmp.eq.s32.totalorder %s19, 1
    %p203 = por %p201, %p202
    %p205 = scmp.ne.s32.totalorder %s188, %s204
    %p206 = scmp.eq.s32.totalorder %s19, 0
    %p207 = por %p205, %p206
    %p208 = scmp.le.s32.totalorder 1, %s13
    %p209 = scmp.lt.s32.totalorder %s13, 3
    %p210 = pnand %p208, %p209
    %p211 = pneg %p210
    // Predicated region
    $region9: #{block_forward.3} parent=5 // pred_check
      _
    $region10: #{block_forward.3} parent=5 // pred_check_branch
      %213 = sbr.rel (%p210) target = $region12
    $region11: #{block_forward.3} parent=5 // pred_region
      %s214 = ssub.s32 %s13, 1
      // Predicated region
      $region13: #{block_forward.3} parent=11 // pred_check
        %p215 = pneg %p74
      $region14: #{block_forward.3} parent=11 // pred_check_branch
        %217 = sbr.rel (%p215) target = $region16
      $region15: #{block_forward.3} parent=11 // pred_region
        _
      $region16: #{block_forward.3} parent=11 // pred_fallthru
        _
      // Predicated region
      $region17: #{block_forward.3} parent=11 // pred_check
        %p218 = pneg %p95
      $region18: #{block_forward.3} parent=11 // pred_check_branch
        %220 = sbr.rel (%p218) target = $region20
      $region19: #{block_forward.3} parent=11 // pred_region
        _
      $region20: #{block_forward.3} parent=11 // pred_fallthru
        _
      // Predicated region
      $region21: #{block_forward.3} parent=11 // pred_check
        %p221 = pneg %p116
      $region22: #{block_forward.3} parent=11 // pred_check_branch
        %223 = sbr.rel (%p221) target = $region24
      $region23: #{block_forward.3} parent=11 // pred_region
        _
      $region24: #{block_forward.3} parent=11 // pred_fallthru
        _
    $region12: #{block_forward.3} parent=5 // pred_fallthru
      _
    %p224 = scmp.lt.s32.totalorder %s13, 2
    // Predicated region
    $region25: #{block_forward.3} parent=5 // pred_check
      %p225 = pneg %p224
    $region26: #{block_forward.3} parent=5 // pred_check_branch
      %227 = sbr.rel (%p225) target = $region28
    $region27: #{block_forward.3} parent=5 // pred_region
      // Predicated region
      $region29: #{block_forward.3} parent=27 // pred_check
        %p228 = pneg %p47
      $region30: #{block_forward.3} parent=27 // pred_check_branch
        %230 = sbr.rel (%p228) target = $region32
      $region31: #{block_forward.3} parent=27 // pred_region
        %p231 = scmp.lt.s32.totalorder %s20, 1
        %s232 = scalar_select %p231, %s20, 1
        %p233 = scmp.lt.s32.totalorder %s21, 0
        %s234 = scalar_select %p233, %s21, 0
        %s235 = sadd.s32 %s234, %s232
        %s236 = smul.addr %s235, 8
        %s237 = scalar_lea.vmem %s0, %s236
      $region32: #{block_forward.3} parent=27 // pred_fallthru
        _
    $region28: #{block_forward.3} parent=5 // pred_fallthru
      _
    %p238 = scmp.le.s32.totalorder 1, %s13
    %p239 = scmp.lt.s32.totalorder %s13, 3
    %p240 = pnand %p238, %p239
    %p241 = pneg %p240
    // Predicated region
    $region33: #{block_forward.3} parent=5 // pred_check
      _
    $region34: #{block_forward.3} parent=5 // pred_check_branch
      %243 = sbr.rel (%p240) target = $region36
    $region35: #{block_forward.3} parent=5 // pred_region
      %s244 = ssub.s32 %s13, 1
      %p245 = scmp.lt.s32.totalorder %s22, 1
      %s246 = scalar_select %p245, %s22, 1
      %p247 = scmp.lt.s32.totalorder %s23, 0
      %s248 = scalar_select %p247, %s23, 0
      %s249 = sadd.s32 %s248, %s246
      %s250 = smul.addr %s249, 8
      %s251 = scalar_lea.vmem %s0, %s250
      %p252 = pneg %p53
      %p253 = pneg %p50
      %p254 = pneg %p74
      %p255 = pneg %p71
      %p256 = pneg %p95
      %p257 = pneg %p92
      %p258 = pneg %p116
      %p259 = pneg %p113
      %p260 = pneg %p144
      %p261 = pneg %p141
      %p262 = scmp.lt.s32.totalorder %s22, 1
      %s263 = scalar_select %p262, %s22, 1
      %p264 = scmp.lt.s32.totalorder %s23, 0
      %s265 = scalar_select %p264, %s23, 0
      %s266 = sadd.s32 %s265, %s263
      %s267 = smul.addr %s266, 4
      %s268 = scalar_lea.vmem %s4, %s267
      %p269 = pneg %p172
      %p270 = pneg %p169
      %p271 = scmp.lt.s32.totalorder %s22, 1
      %s272 = scalar_select %p271, %s22, 1
      %p273 = scmp.lt.s32.totalorder %s23, 0
      %s274 = scalar_select %p273, %s23, 0
      %s275 = sadd.s32 %s274, %s272
      %s276 = smul.addr %s275, 4
      %s277 = scalar_lea.vmem %s5, %s276
      %p278 = pneg %p200
      %p279 = pneg %p197
      %p280 = scmp.lt.s32.totalorder %s22, 1
      %s281 = scalar_select %p280, %s22, 1
      %p282 = scmp.lt.s32.totalorder %s23, 0
      %s283 = scalar_select %p282, %s23, 0
      %s284 = sadd.s32 %s283, %s281
      %s285 = smul.addr %s284, 4
      %s286 = scalar_lea.vmem %s6, %s285
      %p287 = scmp.lt.s32.totalorder %s22, 1
      %s288 = scalar_select %p287, %s22, 1
      %p289 = scmp.lt.s32.totalorder %s23, 0
      %s290 = scalar_select %p289, %s23, 0
      %s291 = sadd.s32 %s290, %s288
      %s292 = smul.addr %s291, 8
      %s293 = scalar_lea.vmem %s0, %s292
      %p294 = scmp.lt.s32.totalorder %s22, 1
      %s295 = scalar_select %p294, %s22, 1
      %p296 = scmp.lt.s32.totalorder %s23, 0
      %s297 = scalar_select %p296, %s23, 0
      %s298 = sadd.s32 %s297, %s295
      %s299 = smul.addr %s298, 4
      %s300 = scalar_lea.vmem %s4, %s299
      %p301 = scmp.lt.s32.totalorder %s22, 1
      %s302 = scalar_select %p301, %s22, 1
      %p303 = scmp.lt.s32.totalorder %s23, 0
      %s304 = scalar_select %p303, %s23, 0
      %s305 = sadd.s32 %s304, %s302
      %s306 = smul.addr %s305, 4
      %s307 = scalar_lea.vmem %s5, %s306
      %p308 = scmp.lt.s32.totalorder %s22, 1
      %s309 = scalar_select %p308, %s22, 1
      %p310 = scmp.lt.s32.totalorder %s23, 0
      %s311 = scalar_select %p310, %s23, 0
      %s312 = sadd.s32 %s311, %s309
      %s313 = smul.addr %s312, 4
      %s314 = scalar_lea.vmem %s6, %s313
      %v316 = vld [vmem:[%s293] sm:$0xff]
      %v317 = vmul.f32 %v316, %v316
      %vm318 = vcmask 261120
      %v319 = vsel %vm318, %v317, 0.0
      %320 = vadd.xlane.f32.xlu0 %v319
      %v321 = vpop.xlane.xlu0 %320
      %v322 = vrcp.pop 32.0
      %v323 = vmul.f32 %v321, %v322
      %v324 = vadd.f32 %v323, 1.1920929e-07
      %v325 = vrsqrt.pop %v324
      %v326 = vmul.f32 %v316, %v325
      %v327 = vpack.c.bf16 %v326, %v326
      %v328 = vld [vmem:[%s1] sm:$0xf]
      %v329 = vld [vmem:[%s1 + $0x4] sm:$0xf]
      %v330 = vld [vmem:[%s1 + $0x8] sm:$0xf]
      %v331 = vld [vmem:[%s1 + $0xc] sm:$0xf]
      %v336 = vunpack.c.l.b16 %v328
      %v337 = vunpack.c.l.b16 %v329
      %v338 = vunpack.c.l.b16 %v330
      %v339 = vunpack.c.l.b16 %v331
      %v340 = vpack.c.b16 %v337, %v336
      %v341 = vpack.c.b16 %v339, %v338
      %v345 = vsel %vm318, %v327, 0
      %347 = vmatprep.subr.bf16.mxu0 0
      %348 = vmatpush1.bf16.msra.mxu0 0
      %349 = vmatprep.subr.bf16.mxu0 0
      %350 = vmatpush1.bf16.msra.mxu0 0
      %351 = vmatprep.subr.bf16.mxu0 0
      %352 = vmatpush1.bf16.msra.mxu0 0
      %353 = vmatprep.subr.bf16.mxu0 0
      %354 = vmatpush1.bf16.msra.mxu0 0
      %355 = vmatprep.subr.bf16.mxu0 0
      %356 = vmatpush1.bf16.msra.mxu0 0
      %357 = vmatprep.subr.bf16.mxu0 0
      %358 = vmatpush1.bf16.msra.mxu0 0
      %359 = vmatprep.subr.bf16.mxu0 0
      %360 = vmatpush1.bf16.msra.mxu0 %v341
      %361 = vmatprep.subr.bf16.mxu0 0
      %362 = vmatpush1.bf16.msra.mxu0 %v340
      %363 = vmatprep.subr.bf16.mxu0 0
      %364 = vmatpush2.bf16.msra.mxu0 0
      %365 = vmatprep.subr.bf16.mxu0 0
      %366 = vmatpush2.bf16.msra.mxu0 0
      %367 = vmatprep.subr.bf16.mxu0 0
      %368 = vmatpush2.bf16.msra.mxu0 0
      %369 = vmatprep.subr.bf16.mxu0 0
      %370 = vmatpush2.bf16.msra.mxu0 0
      %371 = vmatprep.subr.bf16.mxu0 0
      %372 = vmatpush2.bf16.msra.mxu0 0
      %373 = vmatprep.subr.bf16.mxu0 0
      %374 = vmatpush2.bf16.msra.mxu0 0
      %375 = vmatprep.subr.bf16.mxu0 0
      %376 = vmatpush2.bf16.msra.mxu0 0
      %377 = vmatprep.subr.bf16.mxu0 0
      %378 = vmatpush2.bf16.msra.mxu0 0
      %379 = vmatprep.mubr.bf16.mxu0 0
      %380 = vmatmul.mubr.bf16.gmra.mxu0 %v345
      %v381 = vpop.f32.mrf.mxu0
      %v382 = vadd.f32 0.0, %v381
      %v383 = vpop.f32.mrf.mxu0
      %v384 = vpop.f32.mrf.mxu0
      %v385 = vpop.f32.mrf.mxu0
      %386 = vdwg.mxu0
      %v387 = vpack.c.bf16 %v382, %v382
      %vm388 = vcmask 257024
      %389 = vst.msk [vmem:[%s300] sm:$0xf] %vm388, %v387
      %v390 = vld [vmem:[%s2] sm:$0xf]
      %v391 = vld [vmem:[%s2 + $0x4] sm:$0xf]
      %v392 = vld [vmem:[%s2 + $0x8] sm:$0xf]
      %v393 = vld [vmem:[%s2 + $0xc] sm:$0xf]
      %v398 = vunpack.c.l.b16 %v390
      %v399 = vunpack.c.l.b16 %v391
      %v400 = vunpack.c.l.b16 %v392
      %v401 = vunpack.c.l.b16 %v393
      %v402 = vpack.c.b16 %v399, %v398
      %v403 = vpack.c.b16 %v401, %v400
      %406 = vmatprep.subr.bf16.mxu0 0
      %407 = vmatpush1.bf16.msra.mxu0 0
      %408 = vmatprep.subr.bf16.mxu0 0
      %409 = vmatpush1.bf16.msra.mxu0 0
      %410 = vmatprep.subr.bf16.mxu0 0
      %411 = vmatpush1.bf16.msra.mxu0 0
      %412 = vmatprep.subr.bf16.mxu0 0
      %413 = vmatpush1.bf16.msra.mxu0 0
      %414 = vmatprep.subr.bf16.mxu0 0
      %415 = vmatpush1.bf16.msra.mxu0 0
      %416 = vmatprep.subr.bf16.mxu0 0
      %417 = vmatpush1.bf16.msra.mxu0 0
      %418 = vmatprep.subr.bf16.mxu0 0
      %419 = vmatpush1.bf16.msra.mxu0 %v403
      %420 = vmatprep.subr.bf16.mxu0 0
      %421 = vmatpush1.bf16.msra.mxu0 %v402
      %422 = vmatprep.subr.bf16.mxu0 0
      %423 = vmatpush2.bf16.msra.mxu0 0
      %424 = vmatprep.subr.bf16.mxu0 0
      %425 = vmatpush2.bf16.msra.mxu0 0
      %426 = vmatprep.subr.bf16.mxu0 0
      %427 = vmatpush2.bf16.msra.mxu0 0
      %428 = vmatprep.subr.bf16.mxu0 0
      %429 = vmatpush2.bf16.msra.mxu0 0
      %430 = vmatprep.subr.bf16.mxu0 0
      %431 = vmatpush2.bf16.msra.mxu0 0
      %432 = vmatprep.subr.bf16.mxu0 0
      %433 = vmatpush2.bf16.msra.mxu0 0
      %434 = vmatprep.subr.bf16.mxu0 0
      %435 = vmatpush2.bf16.msra.mxu0 0
      %436 = vmatprep.subr.bf16.mxu0 0
      %437 = vmatpush2.bf16.msra.mxu0 0
      %438 = vmatprep.mubr.bf16.mxu0 0
      %439 = vmatmul.mubr.bf16.gmra.mxu0 %v345
      %v440 = vpop.f32.mrf.mxu0
      %v441 = vadd.f32 0.0, %v440
      %v442 = vpop.f32.mrf.mxu0
      %v443 = vpop.f32.mrf.mxu0
      %v444 = vpop.f32.mrf.mxu0
      %445 = vdwg.mxu0
      %v446 = vpack.c.bf16 %v441, %v441
      %447 = vst.msk [vmem:[%s307] sm:$0xf] %vm388, %v446
      %v448 = vld [vmem:[%s3] sm:$0xf]
      %v449 = vld [vmem:[%s3 + $0x4] sm:$0xf]
      %v450 = vld [vmem:[%s3 + $0x8] sm:$0xf]
      %v451 = vld [vmem:[%s3 + $0xc] sm:$0xf]
      %v456 = vunpack.c.l.b16 %v448
      %v457 = vunpack.c.l.b16 %v449
      %v458 = vunpack.c.l.b16 %v450
      %v459 = vunpack.c.l.b16 %v451
      %v460 = vpack.c.b16 %v457, %v456
      %v461 = vpack.c.b16 %v459, %v458
      %464 = vmatprep.subr.bf16.mxu0 0
      %465 = vmatpush1.bf16.msra.mxu0 0
      %466 = vmatprep.subr.bf16.mxu0 0
      %467 = vmatpush1.bf16.msra.mxu0 0
      %468 = vmatprep.subr.bf16.mxu0 0
      %469 = vmatpush1.bf16.msra.mxu0 0
      %470 = vmatprep.subr.bf16.mxu0 0
      %471 = vmatpush1.bf16.msra.mxu0 0
      %472 = vmatprep.subr.bf16.mxu0 0
      %473 = vmatpush1.bf16.msra.mxu0 0
      %474 = vmatprep.subr.bf16.mxu0 0
      %475 = vmatpush1.bf16.msra.mxu0 0
      %476 = vmatprep.subr.bf16.mxu0 0
      %477 = vmatpush1.bf16.msra.mxu0 %v461
      %478 = vmatprep.subr.bf16.mxu0 0
      %479 = vmatpush1.bf16.msra.mxu0 %v460
      %480 = vmatprep.subr.bf16.mxu0 0
      %481 = vmatpush2.bf16.msra.mxu0 0
      %482 = vmatprep.subr.bf16.mxu0 0
      %483 = vmatpush2.bf16.msra.mxu0 0
      %484 = vmatprep.subr.bf16.mxu0 0
      %485 = vmatpush2.bf16.msra.mxu0 0
      %486 = vmatprep.subr.bf16.mxu0 0
      %487 = vmatpush2.bf16.msra.mxu0 0
      %488 = vmatprep.subr.bf16.mxu0 0
      %489 = vmatpush2.bf16.msra.mxu0 0
      %490 = vmatprep.subr.bf16.mxu0 0
      %491 = vmatpush2.bf16.msra.mxu0 0
      %492 = vmatprep.subr.bf16.mxu0 0
      %493 = vmatpush2.bf16.msra.mxu0 0
      %494 = vmatprep.subr.bf16.mxu0 0
      %495 = vmatpush2.bf16.msra.mxu0 0
      %496 = vmatprep.mubr.bf16.mxu0 0
      %497 = vmatmul.mubr.bf16.gmra.mxu0 %v345
      %v498 = vpop.f32.mrf.mxu0
      %v499 = vadd.f32 0.0, %v498
      %v500 = vpop.f32.mrf.mxu0
      %v501 = vpop.f32.mrf.mxu0
      %v502 = vpop.f32.mrf.mxu0
      %503 = vdwg.mxu0
      %v504 = vpack.c.bf16 %v499, %v499
      %505 = vst.msk [vmem:[%s314] sm:$0xf] %vm388, %v504
      %p506 = scmp.lt.s32.totalorder %s22, 1
      %s507 = scalar_select %p506, %s22, 1
      %p508 = scmp.lt.s32.totalorder %s23, 0
      %s509 = scalar_select %p508, %s23, 0
      %s510 = sadd.s32 %s509, %s507
      %s511 = smul.addr %s510, 4
      %s512 = scalar_lea.vmem %s4, %s511
      %p513 = scmp.lt.s32.totalorder %s22, 1
      %s514 = scalar_select %p513, %s22, 1
      %p515 = scmp.lt.s32.totalorder %s23, 0
      %s516 = scalar_select %p515, %s23, 0
      %s517 = sadd.s32 %s516, %s514
      %s518 = smul.addr %s517, 4
      %s519 = scalar_lea.vmem %s5, %s518
      %p520 = scmp.lt.s32.totalorder %s22, 1
      %s521 = scalar_select %p520, %s22, 1
      %p522 = scmp.lt.s32.totalorder %s23, 0
      %s523 = scalar_select %p522, %s23, 0
      %s524 = sadd.s32 %s523, %s521
      %s525 = smul.addr %s524, 4
      %s526 = scalar_lea.vmem %s6, %s525
      // Predicated region
      $region37: #{block_forward.3} parent=35 // pred_check
        %p527 = pneg %p141
      $region38: #{block_forward.3} parent=35 // pred_check_branch
        %529 = sbr.rel (%p527) target = $region40
      $region39: #{block_forward.3} parent=35 // pred_region
        _
      $region40: #{block_forward.3} parent=35 // pred_fallthru
        _
      // Predicated region
      $region41: #{block_forward.3} parent=35 // pred_check
        %p530 = pneg %p169
      $region42: #{block_forward.3} parent=35 // pred_check_branch
        %532 = sbr.rel (%p530) target = $region44
      $region43: #{block_forward.3} parent=35 // pred_region
        _
      $region44: #{block_forward.3} parent=35 // pred_fallthru
        _
      // Predicated region
      $region45: #{block_forward.3} parent=35 // pred_check
        %p533 = pneg %p197
      $region46: #{block_forward.3} parent=35 // pred_check_branch
        %535 = sbr.rel (%p533) target = $region48
      $region47: #{block_forward.3} parent=35 // pred_region
        _
      $region48: #{block_forward.3} parent=35 // pred_fallthru
        _
    $region36: #{block_forward.3} parent=5 // pred_fallthru
      _
    %p536 = scmp.le.s32.totalorder 2, %s13
    // Predicated region
    $region49: #{block_forward.3} parent=5 // pred_check
      %p537 = pneg %p536
    $region50: #{block_forward.3} parent=5 // pred_check_branch
      %539 = sbr.rel (%p537) target = $region52
    $region51: #{block_forward.3} parent=5 // pred_region
      %s540 = ssub.s32 %s13, 2
      // Predicated region
      $region53: #{block_forward.3} parent=51 // pred_check
        %p541 = pneg %p147
      $region54: #{block_forward.3} parent=51 // pred_check_branch
        %543 = sbr.rel (%p541) target = $region56
      $region55: #{block_forward.3} parent=51 // pred_region
        %p544 = scmp.lt.s32.totalorder %s24, 1
        %s545 = scalar_select %p544, %s24, 1
        %p546 = scmp.lt.s32.totalorder %s25, 0
        %s547 = scalar_select %p546, %s25, 0
        %s548 = sadd.s32 %s547, %s545
        %s549 = smul.addr %s548, 4
        %s550 = scalar_lea.vmem %s4, %s549
      $region56: #{block_forward.3} parent=51 // pred_fallthru
        _
      // Predicated region
      $region57: #{block_forward.3} parent=51 // pred_check
        %p551 = pneg %p175
      $region58: #{block_forward.3} parent=51 // pred_check_branch
        %553 = sbr.rel (%p551) target = $region60
      $region59: #{block_forward.3} parent=51 // pred_region
        %p554 = scmp.lt.s32.totalorder %s24, 1
        %s555 = scalar_select %p554, %s24, 1
        %p556 = scmp.lt.s32.totalorder %s25, 0
        %s557 = scalar_select %p556, %s25, 0
        %s558 = sadd.s32 %s557, %s555
        %s559 = smul.addr %s558, 4
        %s560 = scalar_lea.vmem %s5, %s559
      $region60: #{block_forward.3} parent=51 // pred_fallthru
        _
      // Predicated region
      $region61: #{block_forward.3} parent=51 // pred_check
        %p561 = pneg %p203
      $region62: #{block_forward.3} parent=51 // pred_check_branch
        %563 = sbr.rel (%p561) target = $region64
      $region63: #{block_forward.3} parent=51 // pred_region
        %p564 = scmp.lt.s32.totalorder %s24, 1
        %s565 = scalar_select %p564, %s24, 1
        %p566 = scmp.lt.s32.totalorder %s25, 0
        %s567 = scalar_select %p566, %s25, 0
        %s568 = sadd.s32 %s567, %s565
        %s569 = smul.addr %s568, 4
        %s570 = scalar_lea.vmem %s6, %s569
      $region64: #{block_forward.3} parent=51 // pred_fallthru
        _
    $region52: #{block_forward.3} parent=5 // pred_fallthru
      _
  $region6: #{block_forward.3} parent=0 // loop_footer
    %s17 = sadd.s32 1, %s13
  $region7: #{block_forward.3} parent=0 // loop_footer_branch
    %12 = sbr.rel target = $region3
  $region8: #{block_forward.3} parent=0 // loop_exit
    _

// kernel: block_forward.5
$region0: #{block_forward.5}
  #allocation0 [shape = 'u32[]', space=smem, size = 0x4, offset = 0x4, fixed_abs, tag = 'smem constant byte address 0x4 - core index']
  #allocation1 [shape = 'u32[144,128]{1,0:T(1,128)}', space=vmem, size = 0x12000, scoped, tag = 'internal scratch']
  #allocation2 [shape = 'f32[8,32]{1,0:T(8,128)}', space=vmem, size = 0x1000, scoped, tag = 'scratch operand']
  #allocation3 [shape = 'bf16[8,32]{1,0:T(8,128)(2,1)}', space=vmem, size = 0x800, scoped, tag = 'scratch operand']
  #allocation4 [shape = 'f32[8,32]{1,0:T(8,128)}', space=vmem, size = 0x1000, scoped, tag = 'scratch operand']
  %s0 = inlined_call_operand.vmem [shape: f32[2,8,32], index: 0, kind: input, shape index: {}]
  %s1 = inlined_call_operand.vmem [shape: bf16[2,8,32], index: 1, kind: input, shape index: {}]
  %s2 = inlined_call_operand.vmem [shape: bf16[32,32], index: 2, kind: input, shape index: {}]
  %s3 = inlined_call_operand.vmem [shape: bf16[32,128], index: 3, kind: input, shape index: {}]
  %s4 = inlined_call_operand.vmem [shape: bf16[128,32], index: 4, kind: input, shape index: {}]
  %s5 = inlined_call_operand.hbm [shape: f32[2,8,32], index: 5, kind: output, shape index: {}]
  %s6 = sld [smem:[#allocation0]]
  $region61: #{block_forward.5} parent=0
    _
  %s8 = ssub.s32 1, %s6
  %s9 = scalar_select 0, %s8, %s6
  $region1: #{block_forward.5} parent=0
    #allocation5 [shape = 'u8[8192]{0}', space=vmem, size = 0x2000, scoped, tag = 'output window, operand 0']
    #allocation6 [shape = 's32[2]{0}', space=sflag, size = 0x8, scoped, tag = 'scoped memory for block_forward.5']
    %10 = vsyncpa [#allocation6], 0
    %s11 = scalar_lea.sflag [#allocation6], 1
    %12 = vsyncpa %s11, 0
    loop: start=0, step=1, limit=4
    $region2: #{block_forward.5} parent=1 // loop_pre_header
      _
    $region3: #{block_forward.5} parent=1 // loop_header
      %s14 = sphi 0, %s18
      %p15 = scmp.ge.s32.totalorder %s14, 4
      %s21 = sphi 0, %s40
      %s22 = sphi 0, %s36
      %s23 = sphi 0, %s32
      %s24 = sphi 0, %s21
      %s25 = sphi 0, %s22
      %s26 = sphi 0, %s23
      %s27 = sphi 0, %s24
      %s28 = sphi 0, %s25
      %s29 = sphi 0, %s26
      %s45 = sphi 0, %s47
      %s48 = sphi 0, %s45
      %s49 = sphi 0, %s48
      %s65 = sphi 0, %s49
      %s73 = sphi 0, %s75
      %s76 = sphi 0, %s73
      %s77 = sphi 0, %s76
      %s93 = sphi 0, %s77
      %s97 = sphi 0, %s97
      %s99 = sphi 0, %s97
      %s100 = sphi 0, %s99
      %s114 = sphi 0, %s100
      %s120 = sphi 0, %s122
      %s123 = sphi 0, %s120
      %s124 = sphi 0, %s123
      %s140 = sphi 0, %s124
      %s146 = sphi 0, %s148
      %s149 = sphi 0, %s146
      %s150 = sphi 0, %s149
      %s166 = sphi 0, %s150
      %s174 = sphi 0, %s176
      %s177 = sphi 0, %s174
      %s178 = sphi 0, %s177
      %s194 = sphi 0, %s178
    $region4: #{block_forward.5} parent=1 // loop_header_branch
      %17 = sbr.rel (%p15) target = $region8
    $region5: #{block_forward.5} parent=1 // loop_body
      %s19 = ssub.s32 %s14, 1
      %s20 = ssub.s32 %s14, 2
      %s30 = sadd.s32 1, %s23
      %p31 = scmp.ge.s32.totalorder %s30, 1
      %s32 = scalar_select %p31, 0, %s30
      %s33 = sadd.s32 1, %s22
      %s34 = scalar_select %p31, %s33, %s22
      %p35 = scmp.ge.s32.totalorder %s34, 1
      %s36 = scalar_select %p35, 0, %s34
      %s37 = sadd.s32 1, %s21
      %s38 = scalar_select %p35, %s37, %s21
      %p39 = scmp.ge.s32.totalorder %s38, 2
      %s40 = scalar_select %p39, 0, %s38
      %s41 = ssub.s32 %s21, %s40
      %s42 = ssub.s32 %s22, %s36
      %s43 = sor.u32 %s41, %s42
      %p44 = scmp.eq.s32.totalorder %s43, 0
      %s46 = sadd.s32 %s45, 1
      %s47 = scalar_select %p44, %s45, %s46
      %p50 = pneg %p44
      %p51 = scmp.eq.s32.totalorder %s14, 1
      %p52 = por %p50, %p51
      %p53 = scmp.ne.s32.totalorder %s45, %s48
      %p54 = scmp.eq.s32.totalorder %s14, 0
      %p55 = por %p53, %p54
      %p56 = scmp.ne.s32.totalorder %s45, %s48
      %p57 = scmp.eq.s32.totalorder %s19, 1
      %p58 = por %p56, %p57
      %p59 = scmp.ne.s32.totalorder %s48, %s49
      %p60 = scmp.eq.s32.totalorder %s19, 0
      %p61 = por %p59, %p60
      %p62 = scmp.ne.s32.totalorder %s48, %s49
      %p63 = scmp.eq.s32.totalorder %s20, 1
      %p64 = por %p62, %p63
      %p66 = scmp.ne.s32.totalorder %s49, %s65
      %p67 = scmp.eq.s32.totalorder %s20, 0
      %p68 = por %p66, %p67
      %s69 = ssub.s32 %s21, %s40
      %s70 = ssub.s32 %s22, %s36
      %s71 = sor.u32 %s69, %s70
      %p72 = scmp.eq.s32.totalorder %s71, 0
      %s74 = sadd.s32 %s73, 1
      %s75 = scalar_select %p72, %s73, %s74
      %p78 = pneg %p72
      %p79 = scmp.eq.s32.totalorder %s14, 1
      %p80 = por %p78, %p79
      %p81 = scmp.ne.s32.totalorder %s73, %s76
      %p82 = scmp.eq.s32.totalorder %s14, 0
      %p83 = por %p81, %p82
      %p84 = scmp.ne.s32.totalorder %s73, %s76
      %p85 = scmp.eq.s32.totalorder %s19, 1
      %p86 = por %p84, %p85
      %p87 = scmp.ne.s32.totalorder %s76, %s77
      %p88 = scmp.eq.s32.totalorder %s19, 0
      %p89 = por %p87, %p88
      %p90 = scmp.ne.s32.totalorder %s76, %s77
      %p91 = scmp.eq.s32.totalorder %s20, 1
      %p92 = por %p90, %p91
      %p94 = scmp.ne.s32.totalorder %s77, %s93
      %p95 = scmp.eq.s32.totalorder %s20, 0
      %p96 = por %p94, %p95
      %s98 = sadd.s32 %s97, 1
      %p101 = scmp.eq.s32.totalorder %s14, 1
      %p102 = scmp.ne.s32.totalorder %s97, %s99
      %p103 = scmp.eq.s32.totalorder %s14, 0
      %p104 = por %p102, %p103
      %p105 = scmp.ne.s32.totalorder %s97, %s99
      %p106 = scmp.eq.s32.totalorder %s19, 1
      %p107 = por %p105, %p106
      %p108 = scmp.ne.s32.totalorder %s99, %s100
      %p109 = scmp.eq.s32.totalorder %s19, 0
      %p110 = por %p108, %p109
      %p111 = scmp.ne.s32.totalorder %s99, %s100
      %p112 = scmp.eq.s32.totalorder %s20, 1
      %p113 = por %p111, %p112
      %p115 = scmp.ne.s32.totalorder %s100, %s114
      %p116 = scmp.eq.s32.totalorder %s20, 0
      %p117 = por %p115, %p116
      %s118 = ssub.s32 %s23, %s32
      %p119 = scmp.eq.s32.totalorder %s118, 0
      %s121 = sadd.s32 %s120, 1
      %s122 = scalar_select %p119, %s120, %s121
      %p125 = pneg %p119
      %p126 = scmp.eq.s32.totalorder %s14, 1
      %p127 = por %p125, %p126
      %p128 = scmp.ne.s32.totalorder %s120, %s123
      %p129 = scmp.eq.s32.totalorder %s14, 0
      %p130 = por %p128, %p129
      %p131 = scmp.ne.s32.totalorder %s120, %s123
      %p132 = scmp.eq.s32.totalorder %s19, 1
      %p133 = por %p131, %p132
      %p134 = scmp.ne.s32.totalorder %s123, %s124
      %p135 = scmp.eq.s32.totalorder %s19, 0
      %p136 = por %p134, %p135
      %p137 = scmp.ne.s32.totalorder %s123, %s124
      %p138 = scmp.eq.s32.totalorder %s20, 1
      %p139 = por %p137, %p138
      %p141 = scmp.ne.s32.totalorder %s124, %s140
      %p142 = scmp.eq.s32.totalorder %s20, 0
      %p143 = por %p141, %p142
      %s144 = ssub.s32 %s23, %s32
      %p145 = scmp.eq.s32.totalorder %s144, 0
      %s147 = sadd.s32 %s146, 1
      %s148 = scalar_select %p145, %s146, %s147
      %p151 = pneg %p145
      %p152 = scmp.eq.s32.totalorder %s14, 1
      %p153 = por %p151, %p152
      %p154 = scmp.ne.s32.totalorder %s146, %s149
      %p155 = scmp.eq.s32.totalorder %s14, 0
      %p156 = por %p154, %p155
      %p157 = scmp.ne.s32.totalorder %s146, %s149
      %p158 = scmp.eq.s32.totalorder %s19, 1
      %p159 = por %p157, %p158
      %p160 = scmp.ne.s32.totalorder %s149, %s150
      %p161 = scmp.eq.s32.totalorder %s19, 0
      %p162 = por %p160, %p161
      %p163 = scmp.ne.s32.totalorder %s149, %s150
      %p164 = scmp.eq.s32.totalorder %s20, 1
      %p165 = por %p163, %p164
      %p167 = scmp.ne.s32.totalorder %s150, %s166
      %p168 = scmp.eq.s32.totalorder %s20, 0
      %p169 = por %p167, %p168
      %s170 = ssub.s32 %s21, %s40
      %s171 = ssub.s32 %s22, %s36
      %s172 = sor.u32 %s170, %s171
      %p173 = scmp.eq.s32.totalorder %s172, 0
      %s175 = sadd.s32 %s174, 1
      %s176 = scalar_select %p173, %s174, %s175
      %p179 = pneg %p173
      %p180 = scmp.eq.s32.totalorder %s14, 1
      %p181 = por %p179, %p180
      %p182 = scmp.ne.s32.totalorder %s174, %s177
      %p183 = scmp.eq.s32.totalorder %s14, 0
      %p184 = por %p182, %p183
      %p185 = scmp.ne.s32.totalorder %s174, %s177
      %p186 = scmp.eq.s32.totalorder %s19, 1
      %p187 = por %p185, %p186
      %p188 = scmp.ne.s32.totalorder %s177, %s178
      %p189 = scmp.eq.s32.totalorder %s19, 0
      %p190 = por %p188, %p189
      %p191 = scmp.ne.s32.totalorder %s177, %s178
      %p192 = scmp.eq.s32.totalorder %s20, 1
      %p193 = por %p191, %p192
      %p195 = scmp.ne.s32.totalorder %s178, %s194
      %p196 = scmp.eq.s32.totalorder %s20, 0
      %p197 = por %p195, %p196
      %p198 = scmp.le.s32.totalorder 1, %s14
      %p199 = scmp.lt.s32.totalorder %s14, 3
      %p200 = pnand %p198, %p199
      %p201 = pneg %p200
      // Predicated region
      $region9: #{block_forward.5} parent=5 // pred_check
        _
      $region10: #{block_forward.5} parent=5 // pred_check_branch
        %203 = sbr.rel (%p200) target = $region12
      $region11: #{block_forward.5} parent=5 // pred_region
        %s204 = ssub.s32 %s14, 1
        // Predicated region
        $region13: #{block_forward.5} parent=11 // pred_check
          %p205 = pneg %p110
        $region14: #{block_forward.5} parent=11 // pred_check_branch
          %207 = sbr.rel (%p205) target = $region16
        $region15: #{block_forward.5} parent=11 // pred_region
          _
        $region16: #{block_forward.5} parent=11 // pred_fallthru
          _
        // Predicated region
        $region17: #{block_forward.5} parent=11 // pred_check
          %p208 = pneg %p136
        $region18: #{block_forward.5} parent=11 // pred_check_branch
          %210 = sbr.rel (%p208) target = $region20
        $region19: #{block_forward.5} parent=11 // pred_region
          %p211 = scmp.lt.s32.totalorder %s26, 0
          %s212 = scalar_select %p211, %s26, 0
          %s213 = smul.addr %s212, 4
          %s214 = scalar_lea.vmem %s3, %s213
        $region20: #{block_forward.5} parent=11 // pred_fallthru
          _
        // Predicated region
        $region21: #{block_forward.5} parent=11 // pred_check
          %p215 = pneg %p162
        $region22: #{block_forward.5} parent=11 // pred_check_branch
          %217 = sbr.rel (%p215) target = $region24
        $region23: #{block_forward.5} parent=11 // pred_region
          %s218 = smul.u32 16, %s26
          %p219 = scmp.lt.s32.totalorder %s218, 15
          %s220 = scalar_select %p219, %s218, 15
          %s221 = smul.addr %s220, 4
          %s222 = scalar_lea.vmem %s4, %s221
          %s223 = smul.u32 16, %s26
        $region24: #{block_forward.5} parent=11 // pred_fallthru
          _
      $region12: #{block_forward.5} parent=5 // pred_fallthru
        _
      %p224 = scmp.lt.s32.totalorder %s14, 2
      // Predicated region
      $region25: #{block_forward.5} parent=5 // pred_check
        %p225 = pneg %p224
      $region26: #{block_forward.5} parent=5 // pred_check_branch
        %227 = sbr.rel (%p225) target = $region28
      $region27: #{block_forward.5} parent=5 // pred_region
        // Predicated region
        $region29: #{block_forward.5} parent=27 // pred_check
          %p228 = pneg %p55
        $region30: #{block_forward.5} parent=27 // pred_check_branch
          %230 = sbr.rel (%p228) target = $region32
        $region31: #{block_forward.5} parent=27 // pred_region
          %p231 = scmp.lt.s32.totalorder %s21, 1
          %s232 = scalar_select %p231, %s21, 1
          %p233 = scmp.lt.s32.totalorder %s22, 0
          %s234 = scalar_select %p233, %s22, 0
          %s235 = sadd.s32 %s234, %s232
          %s236 = smul.addr %s235, 8
          %s237 = scalar_lea.vmem %s0, %s236
        $region32: #{block_forward.5} parent=27 // pred_fallthru
          _
        // Predicated region
        $region33: #{block_forward.5} parent=27 // pred_check
          %p238 = pneg %p83
        $region34: #{block_forward.5} parent=27 // pred_check_branch
          %240 = sbr.rel (%p238) target = $region36
        $region35: #{block_forward.5} parent=27 // pred_region
          %p241 = scmp.lt.s32.totalorder %s21, 1
          %s242 = scalar_select %p241, %s21, 1
          %p243 = scmp.lt.s32.totalorder %s22, 0
          %s244 = scalar_select %p243, %s22, 0
          %s245 = sadd.s32 %s244, %s242
          %s246 = smul.addr %s245, 4
          %s247 = scalar_lea.vmem %s1, %s246
        $region36: #{block_forward.5} parent=27 // pred_fallthru
          _
      $region28: #{block_forward.5} parent=5 // pred_fallthru
        _
      %p248 = scmp.le.s32.totalorder 1, %s14
      %p249 = scmp.lt.s32.totalorder %s14, 3
      %p250 = pnand %p248, %p249
      %p251 = pneg %p250
      // Predicated region
      $region37: #{block_forward.5} parent=5 // pred_check
        _
      $region38: #{block_forward.5} parent=5 // pred_check_branch
        %253 = sbr.rel (%p250) target = $region40
      $region39: #{block_forward.5} parent=5 // pred_region
        %s254 = ssub.s32 %s14, 1
        %p255 = scmp.lt.s32.totalorder %s24, 1
        %s256 = scalar_select %p255, %s24, 1
        %p257 = scmp.lt.s32.totalorder %s25, 0
        %s258 = scalar_select %p257, %s25, 0
        %s259 = sadd.s32 %s258, %s256
        %s260 = smul.addr %s259, 8
        %s261 = scalar_lea.vmem %s0, %s260
        %p262 = pneg %p61
        %p263 = pneg %p58
        %p264 = scmp.lt.s32.totalorder %s24, 1
        %s265 = scalar_select %p264, %s24, 1
        %p266 = scmp.lt.s32.totalorder %s25, 0
        %s267 = scalar_select %p266, %s25, 0
        %s268 = sadd.s32 %s267, %s265
        %s269 = smul.addr %s268, 4
        %s270 = scalar_lea.vmem %s1, %s269
        %p271 = pneg %p89
        %p272 = pneg %p86
        %p273 = pneg %p110
        %p274 = pneg %p107
        %p275 = scmp.lt.s32.totalorder %s26, 0
        %s276 = scalar_select %p275, %s26, 0
        %s277 = smul.addr %s276, 4
        %s278 = scalar_lea.vmem %s3, %s277
        %p279 = pneg %p136
        %p280 = pneg %p133
        %s281 = smul.u32 16, %s26
        %p282 = scmp.lt.s32.totalorder %s281, 15
        %s283 = scalar_select %p282, %s281, 15
        %s284 = smul.addr %s283, 4
        %s285 = scalar_lea.vmem %s4, %s284
        %p286 = pneg %p162
        %p287 = pneg %p159
        %p288 = pneg %p190
        %p289 = pneg %p187
        %s290 = sand.u32 %s177, 1
        %s291 = scalar_lea.sflag [#allocation6], %s290
        %s292 = sand.u32 %s177, 1
        %s293 = smul.addr %s292, 8
        %s294 = scalar_lea.vmem [#allocation5], %s293
        %p295 = scmp.lt.s32.totalorder %s24, 1
        %s296 = scalar_select %p295, %s24, 1
        %p297 = scmp.lt.s32.totalorder %s25, 0
        %s298 = scalar_select %p297, %s25, 0
        %s299 = sadd.s32 %s298, %s296
        %s300 = smul.addr %s299, 8
        %s301 = scalar_lea.vmem %s0, %s300
        %p302 = scmp.lt.s32.totalorder %s24, 1
        %s303 = scalar_select %p302, %s24, 1
        %p304 = scmp.lt.s32.totalorder %s25, 0
        %s305 = scalar_select %p304, %s25, 0
        %s306 = sadd.s32 %s305, %s303
        %s307 = smul.addr %s306, 4
        %s308 = scalar_lea.vmem %s1, %s307
        %p309 = scmp.lt.s32.totalorder %s26, 0
        %s310 = scalar_select %p309, %s26, 0
        %s311 = smul.addr %s310, 4
        %s312 = scalar_lea.vmem %s3, %s311
        %s313 = smul.u32 16, %s26
        %p314 = scmp.lt.s32.totalorder %s313, 15
        %s315 = scalar_select %p314, %s313, 15
        %s316 = smul.addr %s315, 4
        %s317 = scalar_lea.vmem %s4, %s316
        %s318 = smul.u32 16, %s26
        %p320 = scmp.eq.s32.totalorder %s26, 0
        // Predicated region
        $region41: #{block_forward.5} parent=39 // pred_check
          %p321 = pneg %p320
        $region42: #{block_forward.5} parent=39 // pred_check_branch
          %323 = sbr.rel (%p321) target = $region44
        $region43: #{block_forward.5} parent=39 // pred_region
          %v324 = vld [vmem:[%s308] sm:$0xf]
          %v325 = vld [vmem:[%s2] sm:$0xf]
          %v326 = vld [vmem:[%s2 + $0x4] sm:$0xf]
          %v327 = vld [vmem:[%s2 + $0x8] sm:$0xf]
          %v328 = vld [vmem:[%s2 + $0xc] sm:$0xf]
          %v333 = vunpack.c.l.b16 %v325
          %v334 = vunpack.c.l.b16 %v326
          %v335 = vunpack.c.l.b16 %v327
          %v336 = vunpack.c.l.b16 %v328
          %v337 = vpack.c.b16 %v334, %v333
          %v338 = vpack.c.b16 %v336, %v335
          %vm341 = vcmask 261120
          %v343 = vsel %vm341, %v324, 0
          %345 = vmatprep.subr.bf16.mxu0 0
          %346 = vmatpush1.bf16.msra.mxu0 0
          %347 = vmatprep.subr.bf16.mxu0 0
          %348 = vmatpush1.bf16.msra.mxu0 0
          %349 = vmatprep.subr.bf16.mxu0 0
          %350 = vmatpush1.bf16.msra.mxu0 0
          %351 = vmatprep.subr.bf16.mxu0 0
          %352 = vmatpush1.bf16.msra.mxu0 0
          %353 = vmatprep.subr.bf16.mxu0 0
          %354 = vmatpush1.bf16.msra.mxu0 0
          %355 = vmatprep.subr.bf16.mxu0 0
          %356 = vmatpush1.bf16.msra.mxu0 0
          %357 = vmatprep.subr.bf16.mxu0 0
          %358 = vmatpush1.bf16.msra.mxu0 %v338
          %359 = vmatprep.subr.bf16.mxu0 0
          %360 = vmatpush1.bf16.msra.mxu0 %v337
          %361 = vmatprep.subr.bf16.mxu0 0
          %362 = vmatpush2.bf16.msra.mxu0 0
          %363 = vmatprep.subr.bf16.mxu0 0
          %364 = vmatpush2.bf16.msra.mxu0 0
          %365 = vmatprep.subr.bf16.mxu0 0
          %366 = vmatpush2.bf16.msra.mxu0 0
          %367 = vmatprep.subr.bf16.mxu0 0
          %368 = vmatpush2.bf16.msra.mxu0 0
          %369 = vmatprep.subr.bf16.mxu0 0
          %370 = vmatpush2.bf16.msra.mxu0 0
          %371 = vmatprep.subr.bf16.mxu0 0
          %372 = vmatpush2.bf16.msra.mxu0 0
          %373 = vmatprep.subr.bf16.mxu0 0
          %374 = vmatpush2.bf16.msra.mxu0 0
          %375 = vmatprep.subr.bf16.mxu0 0
          %376 = vmatpush2.bf16.msra.mxu0 0
          %377 = vmatprep.mubr.bf16.mxu0 0
          %378 = vmatmul.mubr.bf16.gmra.mxu0 %v343
          %v379 = vpop.f32.mrf.mxu0
          %v380 = vadd.f32 0.0, %v379
          %v381 = vpop.f32.mrf.mxu0
          %v382 = vpop.f32.mrf.mxu0
          %v383 = vpop.f32.mrf.mxu0
          %384 = vdwg.mxu0
          %v385 = vld [vmem:[%s301] sm:$0xff]
          %v386 = vadd.f32 %v385, %v380
          %387 = vst.msk [vmem:[#allocation2] sm:$0xff] %vm341, %v386
          %v388 = vmul.f32 %v386, %v386
          %v389 = vsel %vm341, %v388, 0.0
          %390 = vadd.xlane.f32.xlu0 %v389
          %v391 = vpop.xlane.xlu0 %390
          %v392 = vrcp.pop 32.0
          %v393 = vmul.f32 %v391, %v392
          %v394 = vadd.f32 %v393, 1.1920929e-07
          %v395 = vrsqrt.pop %v394
          %v396 = vmul.f32 %v386, %v395
          %v397 = vpack.c.bf16 %v396, %v396
          %vm398 = vcmask 257024
          %399 = vst.msk [vmem:[#allocation3] sm:$0xf] %vm398, %v397
          %400 = vst.msk [vmem:[#allocation4] sm:$0xff] %vm341, 0.0
        $region44: #{block_forward.5} parent=39 // pred_fallthru
          _
        %v401 = vld [vmem:[#allocation3] sm:$0xf]
        %v402 = vld [vmem:[%s312] sm:$0xf]
        %v403 = vld [vmem:[%s312 + $0x4] sm:$0xf]
        %v404 = vld [vmem:[%s312 + $0x8] sm:$0xf]
        %v405 = vld [vmem:[%s312 + $0xc] sm:$0xf]
        %v410 = vunpack.c.l.b16 %v402
        %v411 = vunpack.c.l.b16 %v403
        %v412 = vunpack.c.l.b16 %v404
        %v413 = vunpack.c.l.b16 %v405
        %v414 = vpack.c.b16 %v411, %v410
        %v415 = vpack.c.b16 %v413, %v412
        %vm418 = vcmask 261120
        %v420 = vsel %vm418, %v401, 0
        %422 = vmatprep.subr.bf16.mxu0 0
        %423 = vmatpush1.bf16.msra.mxu0 0
        %424 = vmatprep.subr.bf16.mxu0 0
        %425 = vmatpush1.bf16.msra.mxu0 0
        %426 = vmatprep.subr.bf16.mxu0 0
        %427 = vmatpush1.bf16.msra.mxu0 0
        %428 = vmatprep.subr.bf16.mxu0 0
        %429 = vmatpush1.bf16.msra.mxu0 0
        %430 = vmatprep.subr.bf16.mxu0 0
        %431 = vmatpush1.bf16.msra.mxu0 0
        %432 = vmatprep.subr.bf16.mxu0 0
        %433 = vmatpush1.bf16.msra.mxu0 0
        %434 = vmatprep.subr.bf16.mxu0 0
        %435 = vmatpush1.bf16.msra.mxu0 %v415
        %436 = vmatprep.subr.bf16.mxu0 0
        %437 = vmatpush1.bf16.msra.mxu0 %v414
        %438 = vmatprep.subr.bf16.mxu0 0
        %439 = vmatpush2.bf16.msra.mxu0 0
        %440 = vmatprep.subr.bf16.mxu0 0
        %441 = vmatpush2.bf16.msra.mxu0 0
        %442 = vmatprep.subr.bf16.mxu0 0
        %443 = vmatpush2.bf16.msra.mxu0 0
        %444 = vmatprep.subr.bf16.mxu0 0
        %445 = vmatpush2.bf16.msra.mxu0 0
        %446 = vmatprep.subr.bf16.mxu0 0
        %447 = vmatpush2.bf16.msra.mxu0 0
        %448 = vmatprep.subr.bf16.mxu0 0
        %449 = vmatpush2.bf16.msra.mxu0 0
        %450 = vmatprep.subr.bf16.mxu0 0
        %451 = vmatpush2.bf16.msra.mxu0 0
        %452 = vmatprep.subr.bf16.mxu0 0
        %453 = vmatpush2.bf16.msra.mxu0 0
        %454 = vmatprep.mubr.bf16.mxu0 0
        %455 = vmatmul.mubr.bf16.gmra.mxu0 %v420
        %v456 = vpop.f32.mrf.mxu0
        %v457 = vadd.f32 0.0, %v456
        %v458 = vpop.f32.mrf.mxu0
        %v459 = vpop.f32.mrf.mxu0
        %v460 = vpop.f32.mrf.mxu0
        %461 = vdwg.mxu0
        %v462 = vmax.f32 %v457, 0.0
        %v463 = vmul.f32 %v462, %v462
        %v464 = vpack.c.bf16 %v463, %v463
        %v465 = vld [vmem:[#allocation4] sm:$0xff]
        %v466 = vld [vmem:[%s317] sm:$0xf]
        %v467 = vld [vmem:[%s317 + $0x4] sm:$0xf]
        %v468 = vld [vmem:[%s317 + $0x8] sm:$0xf]
        %v469 = vld [vmem:[%s317 + $0xc] sm:$0xf]
        %v470 = vld [vmem:[%s317 + $0x10] sm:$0xf]
        %v471 = vld [vmem:[%s317 + $0x14] sm:$0xf]
        %v472 = vld [vmem:[%s317 + $0x18] sm:$0xf]
        %v473 = vld [vmem:[%s317 + $0x1c] sm:$0xf]
        %v474 = vld [vmem:[%s317 + $0x20] sm:$0xf]
        %v475 = vld [vmem:[%s317 + $0x24] sm:$0xf]
        %v476 = vld [vmem:[%s317 + $0x28] sm:$0xf]
        %v477 = vld [vmem:[%s317 + $0x2c] sm:$0xf]
        %v478 = vld [vmem:[%s317 + $0x30] sm:$0xf]
        %v479 = vld [vmem:[%s317 + $0x34] sm:$0xf]
        %v480 = vld [vmem:[%s317 + $0x38] sm:$0xf]
        %v481 = vld [vmem:[%s317 + $0x3c] sm:$0xf]
        %v498 = vunpack.c.l.b16 %v466
        %v499 = vunpack.c.l.b16 %v467
        %v500 = vunpack.c.l.b16 %v468
        %v501 = vunpack.c.l.b16 %v469
        %v502 = vunpack.c.l.b16 %v470
        %v503 = vunpack.c.l.b16 %v471
        %v504 = vunpack.c.l.b16 %v472
        %v505 = vunpack.c.l.b16 %v473
        %v506 = vunpack.c.l.b16 %v474
        %v507 = vunpack.c.l.b16 %v475
        %v508 = vunpack.c.l.b16 %v476
        %v509 = vunpack.c.l.b16 %v477
        %v510 = vunpack.c.l.b16 %v478
        %v511 = vunpack.c.l.b16 %v479
        %v512 = vunpack.c.l.b16 %v480
        %v513 = vunpack.c.l.b16 %v481
        %v514 = vpack.c.b16 %v499, %v498
        %v515 = vpack.c.b16 %v501, %v500
        %v516 = vpack.c.b16 %v503, %v502
        %v517 = vpack.c.b16 %v505, %v504
        %v518 = vpack.c.b16 %v507, %v506
        %v519 = vpack.c.b16 %v509, %v508
        %v520 = vpack.c.b16 %v511, %v510
        %v521 = vpack.c.b16 %v513, %v512
        %530 = vmatprep.subr.bf16.mxu0 0
        %531 = vmatpush1.bf16.msra.mxu0 %v521
        %532 = vmatprep.subr.bf16.mxu0 0
        %533 = vmatpush1.bf16.msra.mxu0 %v520
        %534 = vmatprep.subr.bf16.mxu0 0
        %535 = vmatpush1.bf16.msra.mxu0 %v519
        %536 = vmatprep.subr.bf16.mxu0 0
        %537 = vmatpush1.bf16.msra.mxu0 %v518
        %538 = vmatprep.subr.bf16.mxu0 0
        %539 = vmatpush1.bf16.msra.mxu0 %v517
        %540 = vmatprep.subr.bf16.mxu0 0
        %541 = vmatpush1.bf16.msra.mxu0 %v516
        %542 = vmatprep.subr.bf16.mxu0 0
        %543 = vmatpush1.bf16.msra.mxu0 %v515
        %544 = vmatprep.subr.bf16.mxu0 0
        %545 = vmatpush1.bf16.msra.mxu0 %v514
        %546 = vmatprep.subr.bf16.mxu0 0
        %547 = vmatpush2.bf16.msra.mxu0 0
        %548 = vmatprep.subr.bf16.mxu0 0
        %549 = vmatpush2.bf16.msra.mxu0 0
        %550 = vmatprep.subr.bf16.mxu0 0
        %551 = vmatpush2.bf16.msra.mxu0 0
        %552 = vmatprep.subr.bf16.mxu0 0
        %553 = vmatpush2.bf16.msra.mxu0 0
        %554 = vmatprep.subr.bf16.mxu0 0
        %555 = vmatpush2.bf16.msra.mxu0 0
        %556 = vmatprep.subr.bf16.mxu0 0
        %557 = vmatpush2.bf16.msra.mxu0 0
        %558 = vmatprep.subr.bf16.mxu0 0
        %559 = vmatpush2.bf16.msra.mxu0 0
        %560 = vmatprep.subr.bf16.mxu0 0
        %561 = vmatpush2.bf16.msra.mxu0 0
        %562 = vmatprep.mubr.bf16.mxu0 0
        %563 = vmatmul.mubr.bf16.gmra.mxu0 %v464
        %v564 = vpop.f32.mrf.mxu0
        %v565 = vadd.f32 0.0, %v564
        %v566 = vpop.f32.mrf.mxu0
        %v567 = vpop.f32.mrf.mxu0
        %v568 = vpop.f32.mrf.mxu0
        %569 = vdwg.mxu0
        %v570 = vadd.f32 %v465, %v565
        %571 = vst.msk [vmem:[#allocation4] sm:$0xff] %vm418, %v570
        // Predicated region
        $region45: #{block_forward.5} parent=39 // pred_check
          %p572 = pneg %p320
        $region46: #{block_forward.5} parent=39 // pred_check_branch
          %574 = sbr.rel (%p572) target = $region48
        $region47: #{block_forward.5} parent=39 // pred_region
          %v575 = vld [vmem:[#allocation2] sm:$0xff]
          %v576 = vld [vmem:[#allocation4] sm:$0xff]
          %v577 = vadd.f32 %v575, %v576
          %578 = vst.msk [vmem:[%s294] sm:$0xff] %vm418, %v577
        $region48: #{block_forward.5} parent=39 // pred_fallthru
          _
        %s579 = sand.u32 %s177, 1
        %s580 = scalar_lea.sflag [#allocation6], %s579
        %s581 = sand.u32 %s177, 1
        %s582 = smul.addr %s581, 8
        %s583 = scalar_lea.vmem [#allocation5], %s582
        // Predicated region
        $region49: #{block_forward.5} parent=39 // pred_check
          %p584 = pneg %p187
        $region50: #{block_forward.5} parent=39 // pred_check_branch
          %586 = sbr.rel (%p584) target = $region52
        $region51: #{block_forward.5} parent=39 // pred_region
          %s588 = ssub.s32 128, 128
          %589 = vsyncadd %s580, %s588
          %s590 = sadd.s32 %s25, %s24
          %s591 = smul.addr %s590, 128
          %s592 = scalar_lea.hbm %s5, %s591
          %s594 = sshll.u32 %s583, 4
          %s595 = int_to_ptr.vmem [resolvable:$true] %s594
          %597 = dma.vmem_to_hbm [thread:$0]  %s595, 128, %s592, %s580
        $region52: #{block_forward.5} parent=39 // pred_fallthru
          _
      $region40: #{block_forward.5} parent=5 // pred_fallthru
        _
      %p598 = scmp.le.s32.totalorder 2, %s14
      // Predicated region
      $region53: #{block_forward.5} parent=5 // pred_check
        %p599 = pneg %p598
      $region54: #{block_forward.5} parent=5 // pred_check_branch
        %601 = sbr.rel (%p599) target = $region56
      $region55: #{block_forward.5} parent=5 // pred_region
        %s602 = ssub.s32 %s14, 2
        // Predicated region
        $region57: #{block_forward.5} parent=55 // pred_check
          %p603 = pneg %p193
        $region58: #{block_forward.5} parent=55 // pred_check_branch
          %605 = sbr.rel (%p603) target = $region60
        $region59: #{block_forward.5} parent=55 // pred_region
          %s606 = sand.u32 %s178, 1
          %s607 = scalar_lea.sflag [#allocation6], %s606
          %s608 = sand.u32 %s178, 1
          %s609 = smul.addr %s608, 8
          %s610 = scalar_lea.vmem [#allocation5], %s609
          %611 = dma.done %s607, 128
        $region60: #{block_forward.5} parent=55 // pred_fallthru
          _
      $region56: #{block_forward.5} parent=5 // pred_fallthru
        _
    $region6: #{block_forward.5} parent=1 // loop_footer
      %s18 = sadd.s32 1, %s14
    $region7: #{block_forward.5} parent=1 // loop_footer_branch
      %13 = sbr.rel target = $region3
    $region8: #{block_forward.5} parent=1 // loop_exit
      _
    %612 = vsyncpa [#allocation6], 1
    %s613 = scalar_lea.sflag [#allocation6], 1
    %614 = vsyncpa %s613, 1

// kernel: block_forward.4
$region0: #{block_forward.4}
  #allocation0 [shape = 'u32[]', space=smem, size = 0x4, offset = 0x4, fixed_abs, tag = 'smem constant byte address 0x4 - core index']
  #allocation1 [shape = 'u32[144,128]{1,0:T(1,128)}', space=vmem, size = 0x12000, scoped, tag = 'internal scratch']
  #allocation2 [shape = 'bf16[4,8,8]{2,1,0:T(8,128)(2,1)}', space=vmem, size = 0x2000, scoped, tag = 'scratch operand']
  #allocation3 [shape = 'f32[4,8,1]{2,1,0:T(8,128)}', space=vmem, size = 0x4000, scoped, tag = 'scratch operand']
  #allocation4 [shape = 'f32[4,8,1]{2,1,0:T(8,128)}', space=vmem, size = 0x4000, scoped, tag = 'scratch operand']
  #allocation5 [shape = 'f32[4,8,8]{2,1,0:T(8,128)}', space=vmem, size = 0x4000, scoped, tag = 'scratch operand']
  %s0 = inlined_call_operand.vmem [shape: bf16[2,4,8,8], index: 0, kind: input, shape index: {}]
  %s1 = inlined_call_operand.vmem [shape: bf16[2,4,8,8], index: 1, kind: input, shape index: {}]
  %s2 = inlined_call_operand.vmem [shape: bf16[2,4,8,8], index: 2, kind: input, shape index: {}]
  %s3 = inlined_call_operand.vmem [shape: f32[8,8], index: 3, kind: input, shape index: {}, may-alias: {3,5}]
  %s4 = inlined_call_operand.vmem [shape: f32[8,8], index: 4, kind: input, shape index: {}, may-alias: {4,6}]
  %s5 = inlined_call_operand.vmem [shape: f32[8,8], index: 5, kind: input, shape index: {}, may-alias: {3,5}]
  %s6 = inlined_call_operand.vmem [shape: f32[8,8], index: 6, kind: input, shape index: {}, may-alias: {4,6}]
  %s7 = inlined_call_operand.vmem [shape: bf16[2,4,8,8], index: 7, kind: output, shape index: {}]
  %s8 = sld [smem:[#allocation0]]
  $region73: #{block_forward.4} parent=0
    _
  %s10 = ssub.s32 1, %s8
  %s11 = scalar_select 0, %s10, %s8
  loop: start=0, step=1, limit=4
  $region2: #{block_forward.4} parent=0 // loop_pre_header
    _
  $region3: #{block_forward.4} parent=0 // loop_header
    %s13 = sphi 0, %s17
    %p14 = scmp.ge.s32.totalorder %s13, 4
    %s20 = sphi 0, %s39
    %s21 = sphi 0, %s35
    %s22 = sphi 0, %s31
    %s23 = sphi 0, %s20
    %s24 = sphi 0, %s21
    %s25 = sphi 0, %s22
    %s26 = sphi 0, %s23
    %s27 = sphi 0, %s24
    %s28 = sphi 0, %s25
    %s44 = sphi 0, %s46
    %s47 = sphi 0, %s44
    %s48 = sphi 0, %s47
    %s64 = sphi 0, %s48
    %s72 = sphi 0, %s74
    %s75 = sphi 0, %s72
    %s76 = sphi 0, %s75
    %s92 = sphi 0, %s76
    %s100 = sphi 0, %s102
    %s103 = sphi 0, %s100
    %s104 = sphi 0, %s103
    %s120 = sphi 0, %s104
    %s126 = sphi 0, %s128
    %s129 = sphi 0, %s126
    %s130 = sphi 0, %s129
    %s146 = sphi 0, %s130
    %s152 = sphi 0, %s154
    %s155 = sphi 0, %s152
    %s156 = sphi 0, %s155
    %s172 = sphi 0, %s156
    %s178 = sphi 0, %s180
    %s181 = sphi 0, %s178
    %s182 = sphi 0, %s181
    %s198 = sphi 0, %s182
    %s204 = sphi 0, %s206
    %s207 = sphi 0, %s204
    %s208 = sphi 0, %s207
    %s224 = sphi 0, %s208
    %s232 = sphi 0, %s234
    %s235 = sphi 0, %s232
    %s236 = sphi 0, %s235
    %s252 = sphi 0, %s236
  $region4: #{block_forward.4} parent=0 // loop_header_branch
    %16 = sbr.rel (%p14) target = $region8
  $region5: #{block_forward.4} parent=0 // loop_body
    %s18 = ssub.s32 %s13, 1
    %s19 = ssub.s32 %s13, 2
    %s29 = sadd.s32 1, %s22
    %p30 = scmp.ge.s32.totalorder %s29, 1
    %s31 = scalar_select %p30, 0, %s29
    %s32 = sadd.s32 1, %s21
    %s33 = scalar_select %p30, %s32, %s21
    %p34 = scmp.ge.s32.totalorder %s33, 1
    %s35 = scalar_select %p34, 0, %s33
    %s36 = sadd.s32 1, %s20
    %s37 = scalar_select %p34, %s36, %s20
    %p38 = scmp.ge.s32.totalorder %s37, 2
    %s39 = scalar_select %p38, 0, %s37
    %s40 = ssub.s32 %s20, %s39
    %s41 = ssub.s32 %s21, %s35
    %s42 = sor.u32 %s40, %s41
    %p43 = scmp.eq.s32.totalorder %s42, 0
    %s45 = sadd.s32 %s44, 1
    %s46 = scalar_select %p43, %s44, %s45
    %p49 = pneg %p43
    %p50 = scmp.eq.s32.totalorder %s13, 1
    %p51 = por %p49, %p50
    %p52 = scmp.ne.s32.totalorder %s44, %s47
    %p53 = scmp.eq.s32.totalorder %s13, 0
    %p54 = por %p52, %p53
    %p55 = scmp.ne.s32.totalorder %s44, %s47
    %p56 = scmp.eq.s32.totalorder %s18, 1
    %p57 = por %p55, %p56
    %p58 = scmp.ne.s32.totalorder %s47, %s48
    %p59 = scmp.eq.s32.totalorder %s18, 0
    %p60 = por %p58, %p59
    %p61 = scmp.ne.s32.totalorder %s47, %s48
    %p62 = scmp.eq.s32.totalorder %s19, 1
    %p63 = por %p61, %p62
    %p65 = scmp.ne.s32.totalorder %s48, %s64
    %p66 = scmp.eq.s32.totalorder %s19, 0
    %p67 = por %p65, %p66
    %s68 = ssub.s32 %s20, %s39
    %s69 = ssub.s32 %s22, %s31
    %s70 = sor.u32 %s68, %s69
    %p71 = scmp.eq.s32.totalorder %s70, 0
    %s73 = sadd.s32 %s72, 1
    %s74 = scalar_select %p71, %s72, %s73
    %p77 = pneg %p71
    %p78 = scmp.eq.s32.totalorder %s13, 1
    %p79 = por %p77, %p78
    %p80 = scmp.ne.s32.totalorder %s72, %s75
    %p81 = scmp.eq.s32.totalorder %s13, 0
    %p82 = por %p80, %p81
    %p83 = scmp.ne.s32.totalorder %s72, %s75
    %p84 = scmp.eq.s32.totalorder %s18, 1
    %p85 = por %p83, %p84
    %p86 = scmp.ne.s32.totalorder %s75, %s76
    %p87 = scmp.eq.s32.totalorder %s18, 0
    %p88 = por %p86, %p87
    %p89 = scmp.ne.s32.totalorder %s75, %s76
    %p90 = scmp.eq.s32.totalorder %s19, 1
    %p91 = por %p89, %p90
    %p93 = scmp.ne.s32.totalorder %s76, %s92
    %p94 = scmp.eq.s32.totalorder %s19, 0
    %p95 = por %p93, %p94
    %s96 = ssub.s32 %s20, %s39
    %s97 = ssub.s32 %s22, %s31
    %s98 = sor.u32 %s96, %s97
    %p99 = scmp.eq.s32.totalorder %s98, 0
    %s101 = sadd.s32 %s100, 1
    %s102 = scalar_select %p99, %s100, %s101
    %p105 = pneg %p99
    %p106 = scmp.eq.s32.totalorder %s13, 1
    %p107 = por %p105, %p106
    %p108 = scmp.ne.s32.totalorder %s100, %s103
    %p109 = scmp.eq.s32.totalorder %s13, 0
    %p110 = por %p108, %p109
    %p111 = scmp.ne.s32.totalorder %s100, %s103
    %p112 = scmp.eq.s32.totalorder %s18, 1
    %p113 = por %p111, %p112
    %p114 = scmp.ne.s32.totalorder %s103, %s104
    %p115 = scmp.eq.s32.totalorder %s18, 0
    %p116 = por %p114, %p115
    %p117 = scmp.ne.s32.totalorder %s103, %s104
    %p118 = scmp.eq.s32.totalorder %s19, 1
    %p119 = por %p117, %p118
    %p121 = scmp.ne.s32.totalorder %s104, %s120
    %p122 = scmp.eq.s32.totalorder %s19, 0
    %p123 = por %p121, %p122
    %s124 = ssub.s32 %s21, %s35
    %p125 = scmp.eq.s32.totalorder %s124, 0
    %s127 = sadd.s32 %s126, 1
    %s128 = scalar_select %p125, %s126, %s127
    %p131 = pneg %p125
    %p132 = scmp.eq.s32.totalorder %s13, 1
    %p133 = por %p131, %p132
    %p134 = scmp.ne.s32.totalorder %s126, %s129
    %p135 = scmp.eq.s32.totalorder %s13, 0
    %p136 = por %p134, %p135
    %p137 = scmp.ne.s32.totalorder %s126, %s129
    %p138 = scmp.eq.s32.totalorder %s18, 1
    %p139 = por %p137, %p138
    %p140 = scmp.ne.s32.totalorder %s129, %s130
    %p141 = scmp.eq.s32.totalorder %s18, 0
    %p142 = por %p140, %p141
    %p143 = scmp.ne.s32.totalorder %s129, %s130
    %p144 = scmp.eq.s32.totalorder %s19, 1
    %p145 = por %p143, %p144
    %p147 = scmp.ne.s32.totalorder %s130, %s146
    %p148 = scmp.eq.s32.totalorder %s19, 0
    %p149 = por %p147, %p148
    %s150 = ssub.s32 %s21, %s35
    %p151 = scmp.eq.s32.totalorder %s150, 0
    %s153 = sadd.s32 %s152, 1
    %s154 = scalar_select %p151, %s152, %s153
    %p157 = pneg %p151
    %p158 = scmp.eq.s32.totalorder %s13, 1
    %p159 = por %p157, %p158
    %p160 = scmp.ne.s32.totalorder %s152, %s155
    %p161 = scmp.eq.s32.totalorder %s13, 0
    %p162 = por %p160, %p161
    %p163 = scmp.ne.s32.totalorder %s152, %s155
    %p164 = scmp.eq.s32.totalorder %s18, 1
    %p165 = por %p163, %p164
    %p166 = scmp.ne.s32.totalorder %s155, %s156
    %p167 = scmp.eq.s32.totalorder %s18, 0
    %p168 = por %p166, %p167
    %p169 = scmp.ne.s32.totalorder %s155, %s156
    %p170 = scmp.eq.s32.totalorder %s19, 1
    %p171 = por %p169, %p170
    %p173 = scmp.ne.s32.totalorder %s156, %s172
    %p174 = scmp.eq.s32.totalorder %s19, 0
    %p175 = por %p173, %p174
    %s176 = ssub.s32 %s22, %s31
    %p177 = scmp.eq.s32.totalorder %s176, 0
    %s179 = sadd.s32 %s178, 1
    %s180 = scalar_select %p177, %s178, %s179
    %p183 = pneg %p177
    %p184 = scmp.eq.s32.totalorder %s13, 1
    %p185 = por %p183, %p184
    %p186 = scmp.ne.s32.totalorder %s178, %s181
    %p187 = scmp.eq.s32.totalorder %s13, 0
    %p188 = por %p186, %p187
    %p189 = scmp.ne.s32.totalorder %s178, %s181
    %p190 = scmp.eq.s32.totalorder %s18, 1
    %p191 = por %p189, %p190
    %p192 = scmp.ne.s32.totalorder %s181, %s182
    %p193 = scmp.eq.s32.totalorder %s18, 0
    %p194 = por %p192, %p193
    %p195 = scmp.ne.s32.totalorder %s181, %s182
    %p196 = scmp.eq.s32.totalorder %s19, 1
    %p197 = por %p195, %p196
    %p199 = scmp.ne.s32.totalorder %s182, %s198
    %p200 = scmp.eq.s32.totalorder %s19, 0
    %p201 = por %p199, %p200
    %s202 = ssub.s32 %s22, %s31
    %p203 = scmp.eq.s32.totalorder %s202, 0
    %s205 = sadd.s32 %s204, 1
    %s206 = scalar_select %p203, %s204, %s205
    %p209 = pneg %p203
    %p210 = scmp.eq.s32.totalorder %s13, 1
    %p211 = por %p209, %p210
    %p212 = scmp.ne.s32.totalorder %s204, %s207
    %p213 = scmp.eq.s32.totalorder %s13, 0
    %p214 = por %p212, %p213
    %p215 = scmp.ne.s32.totalorder %s204, %s207
    %p216 = scmp.eq.s32.totalorder %s18, 1
    %p217 = por %p215, %p216
    %p218 = scmp.ne.s32.totalorder %s207, %s208
    %p219 = scmp.eq.s32.totalorder %s18, 0
    %p220 = por %p218, %p219
    %p221 = scmp.ne.s32.totalorder %s207, %s208
    %p222 = scmp.eq.s32.totalorder %s19, 1
    %p223 = por %p221, %p222
    %p225 = scmp.ne.s32.totalorder %s208, %s224
    %p226 = scmp.eq.s32.totalorder %s19, 0
    %p227 = por %p225, %p226
    %s228 = ssub.s32 %s20, %s39
    %s229 = ssub.s32 %s21, %s35
    %s230 = sor.u32 %s228, %s229
    %p231 = scmp.eq.s32.totalorder %s230, 0
    %s233 = sadd.s32 %s232, 1
    %s234 = scalar_select %p231, %s232, %s233
    %p237 = pneg %p231
    %p238 = scmp.eq.s32.totalorder %s13, 1
    %p239 = por %p237, %p238
    %p240 = scmp.ne.s32.totalorder %s232, %s235
    %p241 = scmp.eq.s32.totalorder %s13, 0
    %p242 = por %p240, %p241
    %p243 = scmp.ne.s32.totalorder %s232, %s235
    %p244 = scmp.eq.s32.totalorder %s18, 1
    %p245 = por %p243, %p244
    %p246 = scmp.ne.s32.totalorder %s235, %s236
    %p247 = scmp.eq.s32.totalorder %s18, 0
    %p248 = por %p246, %p247
    %p249 = scmp.ne.s32.totalorder %s235, %s236
    %p250 = scmp.eq.s32.totalorder %s19, 1
    %p251 = por %p249, %p250
    %p253 = scmp.ne.s32.totalorder %s236, %s252
    %p254 = scmp.eq.s32.totalorder %s19, 0
    %p255 = por %p253, %p254
    %p256 = scmp.le.s32.totalorder 1, %s13
    %p257 = scmp.lt.s32.totalorder %s13, 3
    %p258 = pnand %p256, %p257
    %p259 = pneg %p258
    // Predicated region
    $region9: #{block_forward.4} parent=5 // pred_check
      _
    $region10: #{block_forward.4} parent=5 // pred_check_branch
      %261 = sbr.rel (%p258) target = $region12
    $region11: #{block_forward.4} parent=5 // pred_region
      %s262 = ssub.s32 %s13, 1
      // Predicated region
      $region13: #{block_forward.4} parent=11 // pred_check
        %p263 = pneg %p142
      $region14: #{block_forward.4} parent=11 // pred_check_branch
        %265 = sbr.rel (%p263) target = $region16
      $region15: #{block_forward.4} parent=11 // pred_region
        %p266 = scmp.lt.s32.totalorder %s24, 0
        %s267 = scalar_select %p266, %s24, 0
        %s268 = smul.addr %s267, 8
        %s269 = scalar_lea.vmem %s3, %s268
      $region16: #{block_forward.4} parent=11 // pred_fallthru
        _
      // Predicated region
      $region17: #{block_forward.4} parent=11 // pred_check
        %p270 = pneg %p168
      $region18: #{block_forward.4} parent=11 // pred_check_branch
        %272 = sbr.rel (%p270) target = $region20
      $region19: #{block_forward.4} parent=11 // pred_region
        %p273 = scmp.lt.s32.totalorder %s24, 0
        %s274 = scalar_select %p273, %s24, 0
        %s275 = smul.addr %s274, 8
        %s276 = scalar_lea.vmem %s4, %s275
      $region20: #{block_forward.4} parent=11 // pred_fallthru
        _
      // Predicated region
      $region21: #{block_forward.4} parent=11 // pred_check
        %p277 = pneg %p194
      $region22: #{block_forward.4} parent=11 // pred_check_branch
        %279 = sbr.rel (%p277) target = $region24
      $region23: #{block_forward.4} parent=11 // pred_region
        %p280 = scmp.lt.s32.totalorder %s25, 0
        %s281 = scalar_select %p280, %s25, 0
        %s282 = smul.addr %s281, 8
        %s283 = scalar_lea.vmem %s5, %s282
      $region24: #{block_forward.4} parent=11 // pred_fallthru
        _
      // Predicated region
      $region25: #{block_forward.4} parent=11 // pred_check
        %p284 = pneg %p220
      $region26: #{block_forward.4} parent=11 // pred_check_branch
        %286 = sbr.rel (%p284) target = $region28
      $region27: #{block_forward.4} parent=11 // pred_region
        %p287 = scmp.lt.s32.totalorder %s25, 0
        %s288 = scalar_select %p287, %s25, 0
        %s289 = smul.addr %s288, 8
        %s290 = scalar_lea.vmem %s6, %s289
      $region28: #{block_forward.4} parent=11 // pred_fallthru
        _
    $region12: #{block_forward.4} parent=5 // pred_fallthru
      _
    %p291 = scmp.lt.s32.totalorder %s13, 2
    // Predicated region
    $region29: #{block_forward.4} parent=5 // pred_check
      %p292 = pneg %p291
    $region30: #{block_forward.4} parent=5 // pred_check_branch
      %294 = sbr.rel (%p292) target = $region32
    $region31: #{block_forward.4} parent=5 // pred_region
      // Predicated region
      $region33: #{block_forward.4} parent=31 // pred_check
        %p295 = pneg %p54
      $region34: #{block_forward.4} parent=31 // pred_check_branch
        %297 = sbr.rel (%p295) target = $region36
      $region35: #{block_forward.4} parent=31 // pred_region
        %p298 = scmp.lt.s32.totalorder %s20, 1
        %s299 = scalar_select %p298, %s20, 1
        %p300 = scmp.lt.s32.totalorder %s21, 0
        %s301 = scalar_select %p300, %s21, 0
        %s302 = smul.addr %s299, 4
        %s303 = sadd.s32 %s301, %s302
        %s304 = smul.addr %s303, 4
        %s305 = scalar_lea.vmem %s0, %s304
      $region36: #{block_forward.4} parent=31 // pred_fallthru
        _
      // Predicated region
      $region37: #{block_forward.4} parent=31 // pred_check
        %p306 = pneg %p82
      $region38: #{block_forward.4} parent=31 // pred_check_branch
        %308 = sbr.rel (%p306) target = $region40
      $region39: #{block_forward.4} parent=31 // pred_region
        %p309 = scmp.lt.s32.totalorder %s20, 1
        %s310 = scalar_select %p309, %s20, 1
        %p311 = scmp.lt.s32.totalorder %s22, 0
        %s312 = scalar_select %p311, %s22, 0
        %s313 = smul.addr %s310, 4
        %s314 = sadd.s32 %s312, %s313
        %s315 = smul.addr %s314, 4
        %s316 = scalar_lea.vmem %s1, %s315
      $region40: #{block_forward.4} parent=31 // pred_fallthru
        _
      // Predicated region
      $region41: #{block_forward.4} parent=31 // pred_check
        %p317 = pneg %p110
      $region42: #{block_forward.4} parent=31 // pred_check_branch
        %319 = sbr.rel (%p317) target = $region44
      $region43: #{block_forward.4} parent=31 // pred_region
        %p320 = scmp.lt.s32.totalorder %s20, 1
        %s321 = scalar_select %p320, %s20, 1
        %p322 = scmp.lt.s32.totalorder %s22, 0
        %s323 = scalar_select %p322, %s22, 0
        %s324 = smul.addr %s321, 4
        %s325 = sadd.s32 %s323, %s324
        %s326 = smul.addr %s325, 4
        %s327 = scalar_lea.vmem %s2, %s326
      $region44: #{block_forward.4} parent=31 // pred_fallthru
        _
    $region32: #{block_forward.4} parent=5 // pred_fallthru
      _
    %p328 = scmp.le.s32.totalorder 1, %s13
    %p329 = scmp.lt.s32.totalorder %s13, 3
    %p330 = pnand %p328, %p329
    %p331 = pneg %p330
    // Predicated region
    $region45: #{block_forward.4} parent=5 // pred_check
      _
    $region46: #{block_forward.4} parent=5 // pred_check_branch
      %333 = sbr.rel (%p330) target = $region48
    $region47: #{block_forward.4} parent=5 // pred_region
      %s334 = ssub.s32 %s13, 1
      %p335 = scmp.lt.s32.totalorder %s23, 1
      %s336 = scalar_select %p335, %s23, 1
      %p337 = scmp.lt.s32.totalorder %s24, 0
      %s338 = scalar_select %p337, %s24, 0
      %s339 = smul.addr %s336, 4
      %s340 = sadd.s32 %s338, %s339
      %s341 = smul.addr %s340, 4
      %s342 = scalar_lea.vmem %s0, %s341
      %p343 = pneg %p60
      %p344 = pneg %p57
      %p345 = scmp.lt.s32.totalorder %s23, 1
      %s346 = scalar_select %p345, %s23, 1
      %p347 = scmp.lt.s32.totalorder %s25, 0
      %s348 = scalar_select %p347, %s25, 0
      %s349 = smul.addr %s346, 4
      %s350 = sadd.s32 %s348, %s349
      %s351 = smul.addr %s350, 4
      %s352 = scalar_lea.vmem %s1, %s351
      %p353 = pneg %p88
      %p354 = pneg %p85
      %p355 = scmp.lt.s32.totalorder %s23, 1
      %s356 = scalar_select %p355, %s23, 1
      %p357 = scmp.lt.s32.totalorder %s25, 0
      %s358 = scalar_select %p357, %s25, 0
      %s359 = smul.addr %s356, 4
      %s360 = sadd.s32 %s358, %s359
      %s361 = smul.addr %s360, 4
      %s362 = scalar_lea.vmem %s2, %s361
      %p363 = pneg %p116
      %p364 = pneg %p113
      %p365 = scmp.lt.s32.totalorder %s24, 0
      %s366 = scalar_select %p365, %s24, 0
      %s367 = smul.addr %s366, 8
      %s368 = scalar_lea.vmem %s3, %s367
      %p369 = pneg %p142
      %p370 = pneg %p139
      %p371 = scmp.lt.s32.totalorder %s24, 0
      %s372 = scalar_select %p371, %s24, 0
      %s373 = smul.addr %s372, 8
      %s374 = scalar_lea.vmem %s4, %s373
      %p375 = pneg %p168
      %p376 = pneg %p165
      %p377 = scmp.lt.s32.totalorder %s25, 0
      %s378 = scalar_select %p377, %s25, 0
      %s379 = smul.addr %s378, 8
      %s380 = scalar_lea.vmem %s5, %s379
      %p381 = pneg %p194
      %p382 = pneg %p191
      %p383 = scmp.lt.s32.totalorder %s25, 0
      %s384 = scalar_select %p383, %s25, 0
      %s385 = smul.addr %s384, 8
      %s386 = scalar_lea.vmem %s6, %s385
      %p387 = pneg %p220
      %p388 = pneg %p217
      %p389 = pneg %p248
      %p390 = pneg %p245
      %p391 = scmp.lt.s32.totalorder %s23, 1
      %s392 = scalar_select %p391, %s23, 1
      %p393 = scmp.lt.s32.totalorder %s24, 0
      %s394 = scalar_select %p393, %s24, 0
      %s395 = smul.addr %s392, 4
      %s396 = sadd.s32 %s394, %s395
      %s397 = smul.addr %s396, 4
      %s398 = scalar_lea.vmem %s7, %s397
      %p399 = scmp.lt.s32.totalorder %s23, 1
      %s400 = scalar_select %p399, %s23, 1
      %p401 = scmp.lt.s32.totalorder %s24, 0
      %s402 = scalar_select %p401, %s24, 0
      %s403 = smul.addr %s400, 4
      %s404 = sadd.s32 %s402, %s403
      %s405 = smul.addr %s404, 4
      %s406 = scalar_lea.vmem %s0, %s405
      %p407 = scmp.lt.s32.totalorder %s23, 1
      %s408 = scalar_select %p407, %s23, 1
      %p409 = scmp.lt.s32.totalorder %s25, 0
      %s410 = scalar_select %p409, %s25, 0
      %s411 = smul.addr %s408, 4
      %s412 = sadd.s32 %s410, %s411
      %s413 = smul.addr %s412, 4
      %s414 = scalar_lea.vmem %s1, %s413
      %p415 = scmp.lt.s32.totalorder %s23, 1
      %s416 = scalar_select %p415, %s23, 1
      %p417 = scmp.lt.s32.totalorder %s25, 0
      %s418 = scalar_select %p417, %s25, 0
      %s419 = smul.addr %s416, 4
      %s420 = sadd.s32 %s418, %s419
      %s421 = smul.addr %s420, 4
      %s422 = scalar_lea.vmem %s2, %s421
      %p423 = scmp.lt.s32.totalorder %s24, 0
      %s424 = scalar_select %p423, %s24, 0
      %s425 = smul.addr %s424, 8
      %s426 = scalar_lea.vmem %s3, %s425
      %p427 = scmp.lt.s32.totalorder %s24, 0
      %s428 = scalar_select %p427, %s24, 0
      %s429 = smul.addr %s428, 8
      %s430 = scalar_lea.vmem %s4, %s429
      %p431 = scmp.lt.s32.totalorder %s25, 0
      %s432 = scalar_select %p431, %s25, 0
      %s433 = smul.addr %s432, 8
      %s434 = scalar_lea.vmem %s5, %s433
      %p435 = scmp.lt.s32.totalorder %s25, 0
      %s436 = scalar_select %p435, %s25, 0
      %s437 = smul.addr %s436, 8
      %s438 = scalar_lea.vmem %s6, %s437
      %p439 = scmp.lt.s32.totalorder %s23, 1
      %s440 = scalar_select %p439, %s23, 1
      %p441 = scmp.lt.s32.totalorder %s24, 0
      %s442 = scalar_select %p441, %s24, 0
      %s443 = smul.addr %s440, 4
      %s444 = sadd.s32 %s442, %s443
      %s445 = smul.addr %s444, 4
      %s446 = scalar_lea.vmem %s7, %s445
      %p448 = scmp.eq.s32.totalorder %s25, 0
      // Predicated region
      $region49: #{block_forward.4} parent=47 // pred_check
        %p449 = pneg %p448
      $region50: #{block_forward.4} parent=47 // pred_check_branch
        %451 = sbr.rel (%p449) target = $region52
      $region51: #{block_forward.4} parent=47 // pred_region
        %v452 = vld [vmem:[%s406] sm:$0xf]
        %v453 = vld [vmem:[%s406 + $0x4] sm:$0xf]
        %v454 = vld [vmem:[%s406 + $0x8] sm:$0xf]
        %v455 = vld [vmem:[%s406 + $0xc] sm:$0xf]
        %v456 = vunpack.c.l.bf16 %v452
        %v457 = vunpack.c.l.bf16 %v453
        %v458 = vunpack.c.l.bf16 %v454
        %v459 = vunpack.c.l.bf16 %v455
        %v460 = vld [vmem:[%s426] sm:$0xff]
        %v461 = vld [vmem:[%s430] sm:$0xff]
        %v462 = vmul.f32 %v456, %v460
        %v463 = vmul.f32 %v457, %v460
        %v464 = vmul.f32 %v458, %v460
        %v465 = vmul.f32 %v459, %v460
        %467 = vrot.lane.b32.xlu0 %v461, 4
        %v468 = vpop.permute.xlu0 %467
        %v470 = vmul.f32 %v456, %v468
        %v471 = vmul.f32 %v457, %v468
        %v472 = vmul.f32 %v458, %v468
        %v473 = vmul.f32 %v459, %v468
        %478 = vrot.lane.b32.xlu0 %v470, 124
        %v479 = vpop.permute.xlu0 %478
        %480 = vrot.lane.b32.xlu0 %v471, 124
        %v481 = vpop.permute.xlu0 %480
        %482 = vrot.lane.b32.xlu0 %v472, 124
        %v483 = vpop.permute.xlu0 %482
        %484 = vrot.lane.b32.xlu0 %v473, 124
        %v485 = vpop.permute.xlu0 %484
        %v490 = vadd.f32 %v462, %v479
        %v491 = vadd.f32 %v463, %v481
        %v492 = vadd.f32 %v464, %v483
        %v493 = vadd.f32 %v465, %v485
        %v494 = vsub.f32 0.0, %v456
        %v495 = vsub.f32 0.0, %v457
        %v496 = vsub.f32 0.0, %v458
        %v497 = vsub.f32 0.0, %v459
        %v498 = vmul.f32 %v494, %v461
        %v499 = vmul.f32 %v495, %v461
        %v500 = vmul.f32 %v496, %v461
        %v501 = vmul.f32 %v497, %v461
        %503 = vrot.lane.b32.xlu0 %v460, 4
        %v504 = vpop.permute.xlu0 %503
        %v506 = vmul.f32 %v456, %v504
        %v507 = vmul.f32 %v457, %v504
        %v508 = vmul.f32 %v458, %v504
        %v509 = vmul.f32 %v459, %v504
        %514 = vrot.lane.b32.xlu0 %v506, 124
        %v515 = vpop.permute.xlu0 %514
        %516 = vrot.lane.b32.xlu0 %v507, 124
        %v517 = vpop.permute.xlu0 %516
        %518 = vrot.lane.b32.xlu0 %v508, 124
        %v519 = vpop.permute.xlu0 %518
        %520 = vrot.lane.b32.xlu0 %v509, 124
        %v521 = vpop.permute.xlu0 %520
        %v526 = vadd.f32 %v498, %v515
        %v527 = vadd.f32 %v499, %v517
        %v528 = vadd.f32 %v500, %v519
        %v529 = vadd.f32 %v501, %v521
        %534 = vrot.lane.b32.xlu0 %v526, 4
        %v535 = vpop.permute.xlu0 %534
        %536 = vrot.lane.b32.xlu0 %v527, 4
        %v537 = vpop.permute.xlu0 %536
        %538 = vrot.lane.b32.xlu0 %v528, 4
        %v539 = vpop.permute.xlu0 %538
        %540 = vrot.lane.b32.xlu0 %v529, 4
        %v541 = vpop.permute.xlu0 %540
        %vm546 = vcmask 31744
        %v547 = vsel %vm546, %v490, %v535
        %v548 = vsel %vm546, %v491, %v537
        %v549 = vsel %vm546, %v492, %v539
        %v550 = vsel %vm546, %v493, %v541
        %v551 = vmul.f32 %v547, %v547
        %v552 = vmul.f32 %v548, %v548
        %v553 = vmul.f32 %v549, %v549
        %v554 = vmul.f32 %v550, %v550
        %vm555 = vcmask 64512
        %v556 = vsel %vm555, %v551, 0.0
        %557 = vadd.xlane.f32.xlu0 %v556
        %v558 = vpop.xlane.xlu0 %557
        %v559 = vsel %vm555, %v552, 0.0
        %560 = vadd.xlane.f32.xlu0 %v559
        %v561 = vpop.xlane.xlu0 %560
        %v562 = vsel %vm555, %v553, 0.0
        %563 = vadd.xlane.f32.xlu0 %v562
        %v564 = vpop.xlane.xlu0 %563
        %v565 = vsel %vm555, %v554, 0.0
        %566 = vadd.xlane.f32.xlu0 %v565
        %v567 = vpop.xlane.xlu0 %566
        %v568 = vrcp.pop 8.0
        %v569 = vmul.f32 %v558, %v568
        %v570 = vmul.f32 %v561, %v568
        %v571 = vmul.f32 %v564, %v568
        %v572 = vmul.f32 %v567, %v568
        %v573 = vadd.f32 %v569, 1.1920929e-07
        %v574 = vadd.f32 %v570, 1.1920929e-07
        %v575 = vadd.f32 %v571, 1.1920929e-07
        %v576 = vadd.f32 %v572, 1.1920929e-07
        %v577 = vrsqrt.pop %v573
        %v578 = vrsqrt.pop %v574
        %v579 = vrsqrt.pop %v575
        %v580 = vrsqrt.pop %v576
        %v581 = vmul.f32 %v547, %v577
        %v582 = vmul.f32 %v548, %v578
        %v583 = vmul.f32 %v549, %v579
        %v584 = vmul.f32 %v550, %v580
        %v585 = vmul.f32 %v581, 0.35355338
        %v586 = vmul.f32 %v582, 0.35355338
        %v587 = vmul.f32 %v583, 0.35355338
        %v588 = vmul.f32 %v584, 0.35355338
        %v589 = vpack.c.bf16 %v585, %v585
        %v590 = vpack.c.bf16 %v586, %v586
        %v591 = vpack.c.bf16 %v587, %v587
        %v592 = vpack.c.bf16 %v588, %v588
        %vm593 = vcmask 60416
        %594 = vst.msk [vmem:[#allocation2] sm:$0xf] %vm593, %v589
        %595 = vst.msk [vmem:[#allocation2 + $0x4] sm:$0xf] %vm593, %v590
        %596 = vst.msk [vmem:[#allocation2 + $0x8] sm:$0xf] %vm593, %v591
        %597 = vst.msk [vmem:[#allocation2 + $0xc] sm:$0xf] %vm593, %v592
        %vm598 = vcmask 7168
        %599 = vst.msk [vmem:[#allocation3] sm:$0xff] %vm598, -1e+30
        %600 = vst.msk [vmem:[#allocation3 + $0x8] sm:$0xff] %vm598, -1e+30
        %601 = vst.msk [vmem:[#allocation3 + $0x10] sm:$0xff] %vm598, -1e+30
        %602 = vst.msk [vmem:[#allocation3 + $0x18] sm:$0xff] %vm598, -1e+30
        %603 = vst.msk [vmem:[#allocation4] sm:$0xff] %vm598, 0.0
        %604 = vst.msk [vmem:[#allocation4 + $0x8] sm:$0xff] %vm598, 0.0
        %605 = vst.msk [vmem:[#allocation4 + $0x10] sm:$0xff] %vm598, 0.0
        %606 = vst.msk [vmem:[#allocation4 + $0x18] sm:$0xff] %vm598, 0.0
        %607 = vst.msk [vmem:[#allocation5] sm:$0xff] %vm555, 0.0
        %608 = vst.msk [vmem:[#allocation5 + $0x8] sm:$0xff] %vm555, 0.0
        %609 = vst.msk [vmem:[#allocation5 + $0x10] sm:$0xff] %vm555, 0.0
        %610 = vst.msk [vmem:[#allocation5 + $0x18] sm:$0xff] %vm555, 0.0
      $region52: #{block_forward.4} parent=47 // pred_fallthru
        _
      %p611 = scmp.le.s32.totalorder %s25, %s24
      // Predicated region
      $region53: #{block_forward.4} parent=47 // pred_check
        %p612 = pneg %p611
      $region54: #{block_forward.4} parent=47 // pred_check_branch
        %614 = sbr.rel (%p612) target = $region56
      $region55: #{block_forward.4} parent=47 // pred_region
        %v615 = vld [vmem:[%s414] sm:$0xf]
        %v616 = vld [vmem:[%s414 + $0x4] sm:$0xf]
        %v617 = vld [vmem:[%s414 + $0x8] sm:$0xf]
        %v618 = vld [vmem:[%s414 + $0xc] sm:$0xf]
        %v619 = vunpack.c.l.bf16 %v615
        %v620 = vunpack.c.l.bf16 %v616
        %v621 = vunpack.c.l.bf16 %v617
        %v622 = vunpack.c.l.bf16 %v618
        %v623 = vld [vmem:[%s434] sm:$0xff]
        %v624 = vld [vmem:[%s438] sm:$0xff]
        %v625 = vmul.f32 %v619, %v623
        %v626 = vmul.f32 %v620, %v623
        %v627 = vmul.f32 %v621, %v623
        %v628 = vmul.f32 %v622, %v623
        %630 = vrot.lane.b32.xlu0 %v624, 4
        %v631 = vpop.permute.xlu0 %630
        %v633 = vmul.f32 %v619, %v631
        %v634 = vmul.f32 %v620, %v631
        %v635 = vmul.f32 %v621, %v631
        %v636 = vmul.f32 %v622, %v631
        %641 = vrot.lane.b32.xlu0 %v633, 124
        %v642 = vpop.permute.xlu0 %641
        %643 = vrot.lane.b32.xlu0 %v634, 124
        %v644 = vpop.permute.xlu0 %643
        %645 = vrot.lane.b32.xlu0 %v635, 124
        %v646 = vpop.permute.xlu0 %645
        %647 = vrot.lane.b32.xlu0 %v636, 124
        %v648 = vpop.permute.xlu0 %647
        %v653 = vadd.f32 %v625, %v642
        %v654 = vadd.f32 %v626, %v644
        %v655 = vadd.f32 %v627, %v646
        %v656 = vadd.f32 %v628, %v648
        %v657 = vsub.f32 0.0, %v619
        %v658 = vsub.f32 0.0, %v620
        %v659 = vsub.f32 0.0, %v621
        %v660 = vsub.f32 0.0, %v622
        %v661 = vmul.f32 %v657, %v624
        %v662 = vmul.f32 %v658, %v624
        %v663 = vmul.f32 %v659, %v624
        %v664 = vmul.f32 %v660, %v624
        %666 = vrot.lane.b32.xlu0 %v623, 4
        %v667 = vpop.permute.xlu0 %666
        %v669 = vmul.f32 %v619, %v667
        %v670 = vmul.f32 %v620, %v667
        %v671 = vmul.f32 %v621, %v667
        %v672 = vmul.f32 %v622, %v667
        %677 = vrot.lane.b32.xlu0 %v669, 124
        %v678 = vpop.permute.xlu0 %677
        %679 = vrot.lane.b32.xlu0 %v670, 124
        %v680 = vpop.permute.xlu0 %679
        %681 = vrot.lane.b32.xlu0 %v671, 124
        %v682 = vpop.permute.xlu0 %681
        %683 = vrot.lane.b32.xlu0 %v672, 124
        %v684 = vpop.permute.xlu0 %683
        %v689 = vadd.f32 %v661, %v678
        %v690 = vadd.f32 %v662, %v680
        %v691 = vadd.f32 %v663, %v682
        %v692 = vadd.f32 %v664, %v684
        %697 = vrot.lane.b32.xlu0 %v689, 4
        %v698 = vpop.permute.xlu0 %697
        %699 = vrot.lane.b32.xlu0 %v690, 4
        %v700 = vpop.permute.xlu0 %699
        %701 = vrot.lane.b32.xlu0 %v691, 4
        %v702 = vpop.permute.xlu0 %701
        %703 = vrot.lane.b32.xlu0 %v692, 4
        %v704 = vpop.permute.xlu0 %703
        %vm709 = vcmask 31744
        %v710 = vsel %vm709, %v653, %v698
        %v711 = vsel %vm709, %v654, %v700
        %v712 = vsel %vm709, %v655, %v702
        %v713 = vsel %vm709, %v656, %v704
        %v714 = vmul.f32 %v710, %v710
        %v715 = vmul.f32 %v711, %v711
        %v716 = vmul.f32 %v712, %v712
        %v717 = vmul.f32 %v713, %v713
        %vm718 = vcmask 64512
        %v719 = vsel %vm718, %v714, 0.0
        %720 = vadd.xlane.f32.xlu0 %v719
        %v721 = vpop.xlane.xlu0 %720
        %v722 = vsel %vm718, %v715, 0.0
        %723 = vadd.xlane.f32.xlu0 %v722
        %v724 = vpop.xlane.xlu0 %723
        %v725 = vsel %vm718, %v716, 0.0
        %726 = vadd.xlane.f32.xlu0 %v725
        %v727 = vpop.xlane.xlu0 %726
        %v728 = vsel %vm718, %v717, 0.0
        %729 = vadd.xlane.f32.xlu0 %v728
        %v730 = vpop.xlane.xlu0 %729
        %v731 = vrcp.pop 8.0
        %v732 = vmul.f32 %v721, %v731
        %v733 = vmul.f32 %v724, %v731
        %v734 = vmul.f32 %v727, %v731
        %v735 = vmul.f32 %v730, %v731
        %v736 = vadd.f32 %v732, 1.1920929e-07
        %v737 = vadd.f32 %v733, 1.1920929e-07
        %v738 = vadd.f32 %v734, 1.1920929e-07
        %v739 = vadd.f32 %v735, 1.1920929e-07
        %v740 = vrsqrt.pop %v736
        %v741 = vrsqrt.pop %v737
        %v742 = vrsqrt.pop %v738
        %v743 = vrsqrt.pop %v739
        %v744 = vmul.f32 %v710, %v740
        %v745 = vmul.f32 %v711, %v741
        %v746 = vmul.f32 %v712, %v742
        %v747 = vmul.f32 %v713, %v743
        %v748 = vpack.c.bf16 %v744, %v744
        %v749 = vpack.c.bf16 %v745, %v745
        %v750 = vpack.c.bf16 %v746, %v746
        %v751 = vpack.c.bf16 %v747, %v747
        %v752 = vld [vmem:[#allocation2] sm:$0xf]
        %v753 = vld [vmem:[#allocation2 + $0x4] sm:$0xf]
        %v754 = vld [vmem:[#allocation2 + $0x8] sm:$0xf]
        %v755 = vld [vmem:[#allocation2 + $0xc] sm:$0xf]
        %v757 = vsel %vm718, %v752, 0
        %v760 = vsel %vm718, %v748, 0
        %762 = vmatprep.subr.bf16.mxu0 0
        %763 = vmatpush1.bf16.xpose.msra.mxu0 0
        %764 = vmatprep.subr.bf16.mxu0 0
        %765 = vmatpush1.bf16.xpose.msra.mxu0 0
        %766 = vmatprep.subr.bf16.mxu0 0
        %767 = vmatpush1.bf16.xpose.msra.mxu0 0
        %768 = vmatprep.subr.bf16.mxu0 0
        %769 = vmatpush1.bf16.xpose.msra.mxu0 0
        %770 = vmatprep.subr.bf16.mxu0 0
        %771 = vmatpush1.bf16.xpose.msra.mxu0 0
        %772 = vmatprep.subr.bf16.mxu0 0
        %773 = vmatpush1.bf16.xpose.msra.mxu0 0
        %774 = vmatprep.subr.bf16.mxu0 0
        %775 = vmatpush1.bf16.xpose.msra.mxu0 0
        %776 = vmatprep.subr.bf16.mxu0 0
        %777 = vmatpush1.bf16.xpose.msra.mxu0 %v760
        %778 = vmatprep.subr.bf16.mxu0 0
        %779 = vmatpush2.bf16.xpose.msra.mxu0 0
        %780 = vmatprep.subr.bf16.mxu0 0
        %781 = vmatpush2.bf16.xpose.msra.mxu0 0
        %782 = vmatprep.subr.bf16.mxu0 0
        %783 = vmatpush2.bf16.xpose.msra.mxu0 0
        %784 = vmatprep.subr.bf16.mxu0 0
        %785 = vmatpush2.bf16.xpose.msra.mxu0 0
        %786 = vmatprep.subr.bf16.mxu0 0
        %787 = vmatpush2.bf16.xpose.msra.mxu0 0
        %788 = vmatprep.subr.bf16.mxu0 0
        %789 = vmatpush2.bf16.xpose.msra.mxu0 0
        %790 = vmatprep.subr.bf16.mxu0 0
        %791 = vmatpush2.bf16.xpose.msra.mxu0 0
        %792 = vmatprep.subr.bf16.mxu0 0
        %793 = vmatpush2.bf16.xpose.msra.mxu0 0
        %794 = vmatprep.mubr.bf16.mxu0 0
        %795 = vmatmul.mubr.bf16.gmra.mxu0 %v757
        %v796 = vpop.f32.mrf.mxu0
        %v797 = vadd.f32 0.0, %v796
        %v798 = vpop.f32.mrf.mxu0
        %v799 = vpop.f32.mrf.mxu0
        %v800 = vpop.f32.mrf.mxu0
        %801 = vdwg.mxu0
        %v803 = vsel %vm718, %v753, 0
        %v806 = vsel %vm718, %v749, 0
        %808 = vmatprep.subr.bf16.mxu0 0
        %809 = vmatpush1.bf16.xpose.msra.mxu0 0
        %810 = vmatprep.subr.bf16.mxu0 0
        %811 = vmatpush1.bf16.xpose.msra.mxu0 0
        %812 = vmatprep.subr.bf16.mxu0 0
        %813 = vmatpush1.bf16.xpose.msra.mxu0 0
        %814 = vmatprep.subr.bf16.mxu0 0
        %815 = vmatpush1.bf16.xpose.msra.mxu0 0
        %816 = vmatprep.subr.bf16.mxu0 0
        %817 = vmatpush1.bf16.xpose.msra.mxu0 0
        %818 = vmatprep.subr.bf16.mxu0 0
        %819 = vmatpush1.bf16.xpose.msra.mxu0 0
        %820 = vmatprep.subr.bf16.mxu0 0
        %821 = vmatpush1.bf16.xpose.msra.mxu0 0
        %822 = vmatprep.subr.bf16.mxu0 0
        %823 = vmatpush1.bf16.xpose.msra.mxu0 %v806
        %824 = vmatprep.subr.bf16.mxu0 0
        %825 = vmatpush2.bf16.xpose.msra.mxu0 0
        %826 = vmatprep.subr.bf16.mxu0 0
        %827 = vmatpush2.bf16.xpose.msra.mxu0 0
        %828 = vmatprep.subr.bf16.mxu0 0
        %829 = vmatpush2.bf16.xpose.msra.mxu0 0
        %830 = vmatprep.subr.bf16.mxu0 0
        %831 = vmatpush2.bf16.xpose.msra.mxu0 0
        %832 = vmatprep.subr.bf16.mxu0 0
        %833 = vmatpush2.bf16.xpose.msra.mxu0 0
        %834 = vmatprep.subr.bf16.mxu0 0
        %835 = vmatpush2.bf16.xpose.msra.mxu0 0
        %836 = vmatprep.subr.bf16.mxu0 0
        %837 = vmatpush2.bf16.xpose.msra.mxu0 0
        %838 = vmatprep.subr.bf16.mxu0 0
        %839 = vmatpush2.bf16.xpose.msra.mxu0 0
        %840 = vmatprep.mubr.bf16.mxu0 0
        %841 = vmatmul.mubr.bf16.gmra.mxu0 %v803
        %v842 = vpop.f32.mrf.mxu0
        %v843 = vadd.f32 0.0, %v842
        %v844 = vpop.f32.mrf.mxu0
        %v845 = vpop.f32.mrf.mxu0
        %v846 = vpop.f32.mrf.mxu0
        %847 = vdwg.mxu0
        %v849 = vsel %vm718, %v754, 0
        %v852 = vsel %vm718, %v750, 0
        %854 = vmatprep.subr.bf16.mxu0 0
        %855 = vmatpush1.bf16.xpose.msra.mxu0 0
        %856 = vmatprep.subr.bf16.mxu0 0
        %857 = vmatpush1.bf16.xpose.msra.mxu0 0
        %858 = vmatprep.subr.bf16.mxu0 0
        %859 = vmatpush1.bf16.xpose.msra.mxu0 0
        %860 = vmatprep.subr.bf16.mxu0 0
        %861 = vmatpush1.bf16.xpose.msra.mxu0 0
        %862 = vmatprep.subr.bf16.mxu0 0
        %863 = vmatpush1.bf16.xpose.msra.mxu0 0
        %864 = vmatprep.subr.bf16.mxu0 0
        %865 = vmatpush1.bf16.xpose.msra.mxu0 0
        %866 = vmatprep.subr.bf16.mxu0 0
        %867 = vmatpush1.bf16.xpose.msra.mxu0 0
        %868 = vmatprep.subr.bf16.mxu0 0
        %869 = vmatpush1.bf16.xpose.msra.mxu0 %v852
        %870 = vmatprep.subr.bf16.mxu0 0
        %871 = vmatpush2.bf16.xpose.msra.mxu0 0
        %872 = vmatprep.subr.bf16.mxu0 0
        %873 = vmatpush2.bf16.xpose.msra.mxu0 0
        %874 = vmatprep.subr.bf16.mxu0 0
        %875 = vmatpush2.bf16.xpose.msra.mxu0 0
        %876 = vmatprep.subr.bf16.mxu0 0
        %877 = vmatpush2.bf16.xpose.msra.mxu0 0
        %878 = vmatprep.subr.bf16.mxu0 0
        %879 = vmatpush2.bf16.xpose.msra.mxu0 0
        %880 = vmatprep.subr.bf16.mxu0 0
        %881 = vmatpush2.bf16.xpose.msra.mxu0 0
        %882 = vmatprep.subr.bf16.mxu0 0
        %883 = vmatpush2.bf16.xpose.msra.mxu0 0
        %884 = vmatprep.subr.bf16.mxu0 0
        %885 = vmatpush2.bf16.xpose.msra.mxu0 0
        %886 = vmatprep.mubr.bf16.mxu0 0
        %887 = vmatmul.mubr.bf16.gmra.mxu0 %v849
        %v888 = vpop.f32.mrf.mxu0
        %v889 = vadd.f32 0.0, %v888
        %v890 = vpop.f32.mrf.mxu0
        %v891 = vpop.f32.mrf.mxu0
        %v892 = vpop.f32.mrf.mxu0
        %893 = vdwg.mxu0
        %v895 = vsel %vm718, %v755, 0
        %v898 = vsel %vm718, %v751, 0
        %900 = vmatprep.subr.bf16.mxu0 0
        %901 = vmatpush1.bf16.xpose.msra.mxu0 0
        %902 = vmatprep.subr.bf16.mxu0 0
        %903 = vmatpush1.bf16.xpose.msra.mxu0 0
        %904 = vmatprep.subr.bf16.mxu0 0
        %905 = vmatpush1.bf16.xpose.msra.mxu0 0
        %906 = vmatprep.subr.bf16.mxu0 0
        %907 = vmatpush1.bf16.xpose.msra.mxu0 0
        %908 = vmatprep.subr.bf16.mxu0 0
        %909 = vmatpush1.bf16.xpose.msra.mxu0 0
        %910 = vmatprep.subr.bf16.mxu0 0
        %911 = vmatpush1.bf16.xpose.msra.mxu0 0
        %912 = vmatprep.subr.bf16.mxu0 0
        %913 = vmatpush1.bf16.xpose.msra.mxu0 0
        %914 = vmatprep.subr.bf16.mxu0 0
        %915 = vmatpush1.bf16.xpose.msra.mxu0 %v898
        %916 = vmatprep.subr.bf16.mxu0 0
        %917 = vmatpush2.bf16.xpose.msra.mxu0 0
        %918 = vmatprep.subr.bf16.mxu0 0
        %919 = vmatpush2.bf16.xpose.msra.mxu0 0
        %920 = vmatprep.subr.bf16.mxu0 0
        %921 = vmatpush2.bf16.xpose.msra.mxu0 0
        %922 = vmatprep.subr.bf16.mxu0 0
        %923 = vmatpush2.bf16.xpose.msra.mxu0 0
        %924 = vmatprep.subr.bf16.mxu0 0
        %925 = vmatpush2.bf16.xpose.msra.mxu0 0
        %926 = vmatprep.subr.bf16.mxu0 0
        %927 = vmatpush2.bf16.xpose.msra.mxu0 0
        %928 = vmatprep.subr.bf16.mxu0 0
        %929 = vmatpush2.bf16.xpose.msra.mxu0 0
        %930 = vmatprep.subr.bf16.mxu0 0
        %931 = vmatpush2.bf16.xpose.msra.mxu0 0
        %932 = vmatprep.mubr.bf16.mxu0 0
        %933 = vmatmul.mubr.bf16.gmra.mxu0 %v895
        %v934 = vpop.f32.mrf.mxu0
        %v935 = vadd.f32 0.0, %v934
        %v936 = vpop.f32.mrf.mxu0
        %v937 = vpop.f32.mrf.mxu0
        %v938 = vpop.f32.mrf.mxu0
        %939 = vdwg.mxu0
        %s940 = smul.u32 %s24, 8
        %v941 = vlaneseq
        %v942 = vshrl.u32 %v941, 7
        %v943 = vstv %s940
        %v944 = vadd.s32 %v943, %v942
        %s945 = smul.u32 %s25, 8
        %v946 = vlaneseq
        %v947 = vand.u32 %v946, 127
        %v948 = vstv %s945
        %v949 = vadd.s32 %v948, %v947
        %vm950 = vcmp.le.s32.totalorder %v949, %v944
        %v951 = vsel %vm950, 1, 0
        %vm952 = vcmp.eq.s32.totalorder %v951, 1
        %v953 = vsel %vm952, %v797, -1e+30
        %v954 = vsel %vm952, %v843, -1e+30
        %v955 = vsel %vm952, %v889, -1e+30
        %v956 = vsel %vm952, %v935, -1e+30
        %v957 = vld [vmem:[#allocation3] sm:$0xff]
        %v958 = vld [vmem:[#allocation3 + $0x8] sm:$0xff]
        %v959 = vld [vmem:[#allocation3 + $0x10] sm:$0xff]
        %v960 = vld [vmem:[#allocation3 + $0x18] sm:$0xff]
        %v961 = vsel %vm718, %v953, -inf
        %962 = vmax.xlane.f32.xlu0 %v961
        %v963 = vpop.xlane.xlu0 %962
        %v964 = vsel %vm718, %v954, -inf
        %965 = vmax.xlane.f32.xlu0 %v964
        %v966 = vpop.xlane.xlu0 %965
        %v967 = vsel %vm718, %v955, -inf
        %968 = vmax.xlane.f32.xlu0 %v967
        %v969 = vpop.xlane.xlu0 %968
        %v970 = vsel %vm718, %v956, -inf
        %971 = vmax.xlane.f32.xlu0 %v970
        %v972 = vpop.xlane.xlu0 %971
        %v973 = vmax.f32 %v957, %v963
        %v974 = vmax.f32 %v958, %v966
        %v975 = vmax.f32 %v959, %v969
        %v976 = vmax.f32 %v960, %v972
        %v977 = vsub.f32 %v957, %v973
        %v978 = vsub.f32 %v958, %v974
        %v979 = vsub.f32 %v959, %v975
        %v980 = vsub.f32 %v960, %v976
        %v981 = vmul.f32 %v977, 1.442695
        %v982 = vpow.pop %v981
        %v983 = vmul.f32 %v978, 1.442695
        %v984 = vpow.pop %v983
        %v985 = vmul.f32 %v979, 1.442695
        %v986 = vpow.pop %v985
        %v987 = vmul.f32 %v980, 1.442695
        %v988 = vpow.pop %v987
        %990 = vset.pattern.permute.xlu0 0
        %991 = vperm.xlu0 %990, %v973
        %v992 = vpop.permute.xlu0 %991
        %995 = vset.pattern.permute.xlu0 0
        %996 = vperm.xlu0 %995, %v974
        %v997 = vpop.permute.xlu0 %996
        %1000 = vset.pattern.permute.xlu0 0
        %1001 = vperm.xlu0 %1000, %v975
        %v1002 = vpop.permute.xlu0 %1001
        %1005 = vset.pattern.permute.xlu0 0
        %1006 = vperm.xlu0 %1005, %v976
        %v1007 = vpop.permute.xlu0 %1006
        %v1009 = vsub.f32 %v953, %v992
        %v1010 = vsub.f32 %v954, %v997
        %v1011 = vsub.f32 %v955, %v1002
        %v1012 = vsub.f32 %v956, %v1007
        %v1013 = vmul.f32 %v1009, 1.442695
        %v1014 = vpow.pop %v1013
        %v1015 = vmul.f32 %v1010, 1.442695
        %v1016 = vpow.pop %v1015
        %v1017 = vmul.f32 %v1011, 1.442695
        %v1018 = vpow.pop %v1017
        %v1019 = vmul.f32 %v1012, 1.442695
        %v1020 = vpow.pop %v1019
        %v1021 = vld [vmem:[#allocation4] sm:$0xff]
        %v1022 = vld [vmem:[#allocation4 + $0x8] sm:$0xff]
        %v1023 = vld [vmem:[#allocation4 + $0x10] sm:$0xff]
        %v1024 = vld [vmem:[#allocation4 + $0x18] sm:$0xff]
        %v1025 = vmul.f32 %v982, %v1021
        %v1026 = vmul.f32 %v984, %v1022
        %v1027 = vmul.f32 %v986, %v1023
        %v1028 = vmul.f32 %v988, %v1024
        %v1029 = vsel %vm718, %v1014, 0.0
        %1030 = vadd.xlane.f32.xlu0 %v1029
        %v1031 = vpop.xlane.xlu0 %1030
        %v1032 = vsel %vm718, %v1016, 0.0
        %1033 = vadd.xlane.f32.xlu0 %v1032
        %v1034 = vpop.xlane.xlu0 %1033
        %v1035 = vsel %vm718, %v1018, 0.0
        %1036 = vadd.xlane.f32.xlu0 %v1035
        %v1037 = vpop.xlane.xlu0 %1036
        %v1038 = vsel %vm718, %v1020, 0.0
        %1039 = vadd.xlane.f32.xlu0 %v1038
        %v1040 = vpop.xlane.xlu0 %1039
        %v1041 = vadd.f32 %v1025, %v1031
        %v1042 = vadd.f32 %v1026, %v1034
        %v1043 = vadd.f32 %v1027, %v1037
        %v1044 = vadd.f32 %v1028, %v1040
        %vm1045 = vcmask 7168
        %1046 = vst.msk [vmem:[#allocation4] sm:$0xff] %vm1045, %v1041
        %1047 = vst.msk [vmem:[#allocation4 + $0x8] sm:$0xff] %vm1045, %v1042
        %1048 = vst.msk [vmem:[#allocation4 + $0x10] sm:$0xff] %vm1045, %v1043
        %1049 = vst.msk [vmem:[#allocation4 + $0x18] sm:$0xff] %vm1045, %v1044
        %v1050 = vld [vmem:[#allocation5] sm:$0xff]
        %v1051 = vld [vmem:[#allocation5 + $0x8] sm:$0xff]
        %v1052 = vld [vmem:[#allocation5 + $0x10] sm:$0xff]
        %v1053 = vld [vmem:[#allocation5 + $0x18] sm:$0xff]
        %1055 = vset.pattern.permute.xlu0 0
        %1056 = vperm.xlu0 %1055, %v982
        %v1057 = vpop.permute.xlu0 %1056
        %1060 = vset.pattern.permute.xlu0 0
        %1061 = vperm.xlu0 %1060, %v984
        %v1062 = vpop.permute.xlu0 %1061
        %1065 = vset.pattern.permute.xlu0 0
        %1066 = vperm.xlu0 %1065, %v986
        %v1067 = vpop.permute.xlu0 %1066
        %1070 = vset.pattern.permute.xlu0 0
        %1071 = vperm.xlu0 %1070, %v988
        %v1072 = vpop.permute.xlu0 %1071
        %v1074 = vmul.f32 %v1057, %v1050
        %v1075 = vmul.f32 %v1062, %v1051
        %v1076 = vmul.f32 %v1067, %v1052
        %v1077 = vmul.f32 %v1072, %v1053
        %v1078 = vpack.c.bf16 %v1014, %v1014
        %v1079 = vpack.c.bf16 %v1016, %v1016
        %v1080 = vpack.c.bf16 %v1018, %v1018
        %v1081 = vpack.c.bf16 %v1020, %v1020
        %v1082 = vld [vmem:[%s422] sm:$0xf]
        %v1083 = vld [vmem:[%s422 + $0x4] sm:$0xf]
        %v1084 = vld [vmem:[%s422 + $0x8] sm:$0xf]
        %v1085 = vld [vmem:[%s422 + $0xc] sm:$0xf]
        %v1087 = vsel %vm718, %v1078, 0
        %vm1089 = vcmask 1043456
        %v1091 = vsel %vm1089, %v1082, 0
        %1093 = vmatprep.subr.bf16.mxu0 0
        %1094 = vmatpush1.bf16.msra.mxu0 0
        %1095 = vmatprep.subr.bf16.mxu0 0
        %1096 = vmatpush1.bf16.msra.mxu0 0
        %1097 = vmatprep.subr.bf16.mxu0 0
        %1098 = vmatpush1.bf16.msra.mxu0 0
        %1099 = vmatprep.subr.bf16.mxu0 0
        %1100 = vmatpush1.bf16.msra.mxu0 0
        %1101 = vmatprep.subr.bf16.mxu0 0
        %1102 = vmatpush1.bf16.msra.mxu0 0
        %1103 = vmatprep.subr.bf16.mxu0 0
        %1104 = vmatpush1.bf16.msra.mxu0 0
        %1105 = vmatprep.subr.bf16.mxu0 0
        %1106 = vmatpush1.bf16.msra.mxu0 0
        %1107 = vmatprep.subr.bf16.mxu0 0
        %1108 = vmatpush1.bf16.msra.mxu0 %v1091
        %1109 = vmatprep.subr.bf16.mxu0 0
        %1110 = vmatpush2.bf16.msra.mxu0 0
        %1111 = vmatprep.subr.bf16.mxu0 0
        %1112 = vmatpush2.bf16.msra.mxu0 0
        %1113 = vmatprep.subr.bf16.mxu0 0
        %1114 = vmatpush2.bf16.msra.mxu0 0
        %1115 = vmatprep.subr.bf16.mxu0 0
        %1116 = vmatpush2.bf16.msra.mxu0 0
        %1117 = vmatprep.subr.bf16.mxu0 0
        %1118 = vmatpush2.bf16.msra.mxu0 0
        %1119 = vmatprep.subr.bf16.mxu0 0
        %1120 = vmatpush2.bf16.msra.mxu0 0
        %1121 = vmatprep.subr.bf16.mxu0 0
        %1122 = vmatpush2.bf16.msra.mxu0 0
        %1123 = vmatprep.subr.bf16.mxu0 0
        %1124 = vmatpush2.bf16.msra.mxu0 0
        %1125 = vmatprep.mubr.bf16.mxu0 0
        %1126 = vmatmul.mubr.bf16.gmra.mxu0 %v1087
        %v1127 = vpop.f32.mrf.mxu0
        %v1128 = vadd.f32 0.0, %v1127
        %v1129 = vpop.f32.mrf.mxu0
        %v1130 = vpop.f32.mrf.mxu0
        %v1131 = vpop.f32.mrf.mxu0
        %1132 = vdwg.mxu0
        %v1134 = vsel %vm718, %v1079, 0
        %v1137 = vsel %vm1089, %v1083, 0
        %1139 = vmatprep.subr.bf16.mxu0 0
        %1140 = vmatpush1.bf16.msra.mxu0 0
        %1141 = vmatprep.subr.bf16.mxu0 0
        %1142 = vmatpush1.bf16.msra.mxu0 0
        %1143 = vmatprep.subr.bf16.mxu0 0
        %1144 = vmatpush1.bf16.msra.mxu0 0
        %1145 = vmatprep.subr.bf16.mxu0 0
        %1146 = vmatpush1.bf16.msra.mxu0 0
        %1147 = vmatprep.subr.bf16.mxu0 0
        %1148 = vmatpush1.bf16.msra.mxu0 0
        %1149 = vmatprep.subr.bf16.mxu0 0
        %1150 = vmatpush1.bf16.msra.mxu0 0
        %1151 = vmatprep.subr.bf16.mxu0 0
        %1152 = vmatpush1.bf16.msra.mxu0 0
        %1153 = vmatprep.subr.bf16.mxu0 0
        %1154 = vmatpush1.bf16.msra.mxu0 %v1137
        %1155 = vmatprep.subr.bf16.mxu0 0
        %1156 = vmatpush2.bf16.msra.mxu0 0
        %1157 = vmatprep.subr.bf16.mxu0 0
        %1158 = vmatpush2.bf16.msra.mxu0 0
        %1159 = vmatprep.subr.bf16.mxu0 0
        %1160 = vmatpush2.bf16.msra.mxu0 0
        %1161 = vmatprep.subr.bf16.mxu0 0
        %1162 = vmatpush2.bf16.msra.mxu0 0
        %1163 = vmatprep.subr.bf16.mxu0 0
        %1164 = vmatpush2.bf16.msra.mxu0 0
        %1165 = vmatprep.subr.bf16.mxu0 0
        %1166 = vmatpush2.bf16.msra.mxu0 0
        %1167 = vmatprep.subr.bf16.mxu0 0
        %1168 = vmatpush2.bf16.msra.mxu0 0
        %1169 = vmatprep.subr.bf16.mxu0 0
        %1170 = vmatpush2.bf16.msra.mxu0 0
        %1171 = vmatprep.mubr.bf16.mxu0 0
        %1172 = vmatmul.mubr.bf16.gmra.mxu0 %v1134
        %v1173 = vpop.f32.mrf.mxu0
        %v1174 = vadd.f32 0.0, %v1173
        %v1175 = vpop.f32.mrf.mxu0
        %v1176 = vpop.f32.mrf.mxu0
        %v1177 = vpop.f32.mrf.mxu0
        %1178 = vdwg.mxu0
        %v1180 = vsel %vm718, %v1080, 0
        %v1183 = vsel %vm1089, %v1084, 0
        %1185 = vmatprep.subr.bf16.mxu0 0
        %1186 = vmatpush1.bf16.msra.mxu0 0
        %1187 = vmatprep.subr.bf16.mxu0 0
        %1188 = vmatpush1.bf16.msra.mxu0 0
        %1189 = vmatprep.subr.bf16.mxu0 0
        %1190 = vmatpush1.bf16.msra.mxu0 0
        %1191 = vmatprep.subr.bf16.mxu0 0
        %1192 = vmatpush1.bf16.msra.mxu0 0
        %1193 = vmatprep.subr.bf16.mxu0 0
        %1194 = vmatpush1.bf16.msra.mxu0 0
        %1195 = vmatprep.subr.bf16.mxu0 0
        %1196 = vmatpush1.bf16.msra.mxu0 0
        %1197 = vmatprep.subr.bf16.mxu0 0
        %1198 = vmatpush1.bf16.msra.mxu0 0
        %1199 = vmatprep.subr.bf16.mxu0 0
        %1200 = vmatpush1.bf16.msra.mxu0 %v1183
        %1201 = vmatprep.subr.bf16.mxu0 0
        %1202 = vmatpush2.bf16.msra.mxu0 0
        %1203 = vmatprep.subr.bf16.mxu0 0
        %1204 = vmatpush2.bf16.msra.mxu0 0
        %1205 = vmatprep.subr.bf16.mxu0 0
        %1206 = vmatpush2.bf16.msra.mxu0 0
        %1207 = vmatprep.subr.bf16.mxu0 0
        %1208 = vmatpush2.bf16.msra.mxu0 0
        %1209 = vmatprep.subr.bf16.mxu0 0
        %1210 = vmatpush2.bf16.msra.mxu0 0
        %1211 = vmatprep.subr.bf16.mxu0 0
        %1212 = vmatpush2.bf16.msra.mxu0 0
        %1213 = vmatprep.subr.bf16.mxu0 0
        %1214 = vmatpush2.bf16.msra.mxu0 0
        %1215 = vmatprep.subr.bf16.mxu0 0
        %1216 = vmatpush2.bf16.msra.mxu0 0
        %1217 = vmatprep.mubr.bf16.mxu0 0
        %1218 = vmatmul.mubr.bf16.gmra.mxu0 %v1180
        %v1219 = vpop.f32.mrf.mxu0
        %v1220 = vadd.f32 0.0, %v1219
        %v1221 = vpop.f32.mrf.mxu0
        %v1222 = vpop.f32.mrf.mxu0
        %v1223 = vpop.f32.mrf.mxu0
        %1224 = vdwg.mxu0
        %v1226 = vsel %vm718, %v1081, 0
        %v1229 = vsel %vm1089, %v1085, 0
        %1231 = vmatprep.subr.bf16.mxu0 0
        %1232 = vmatpush1.bf16.msra.mxu0 0
        %1233 = vmatprep.subr.bf16.mxu0 0
        %1234 = vmatpush1.bf16.msra.mxu0 0
        %1235 = vmatprep.subr.bf16.mxu0 0
        %1236 = vmatpush1.bf16.msra.mxu0 0
        %1237 = vmatprep.subr.bf16.mxu0 0
        %1238 = vmatpush1.bf16.msra.mxu0 0
        %1239 = vmatprep.subr.bf16.mxu0 0
        %1240 = vmatpush1.bf16.msra.mxu0 0
        %1241 = vmatprep.subr.bf16.mxu0 0
        %1242 = vmatpush1.bf16.msra.mxu0 0
        %1243 = vmatprep.subr.bf16.mxu0 0
        %1244 = vmatpush1.bf16.msra.mxu0 0
        %1245 = vmatprep.subr.bf16.mxu0 0
        %1246 = vmatpush1.bf16.msra.mxu0 %v1229
        %1247 = vmatprep.subr.bf16.mxu0 0
        %1248 = vmatpush2.bf16.msra.mxu0 0
        %1249 = vmatprep.subr.bf16.mxu0 0
        %1250 = vmatpush2.bf16.msra.mxu0 0
        %1251 = vmatprep.subr.bf16.mxu0 0
        %1252 = vmatpush2.bf16.msra.mxu0 0
        %1253 = vmatprep.subr.bf16.mxu0 0
        %1254 = vmatpush2.bf16.msra.mxu0 0
        %1255 = vmatprep.subr.bf16.mxu0 0
        %1256 = vmatpush2.bf16.msra.mxu0 0
        %1257 = vmatprep.subr.bf16.mxu0 0
        %1258 = vmatpush2.bf16.msra.mxu0 0
        %1259 = vmatprep.subr.bf16.mxu0 0
        %1260 = vmatpush2.bf16.msra.mxu0 0
        %1261 = vmatprep.subr.bf16.mxu0 0
        %1262 = vmatpush2.bf16.msra.mxu0 0
        %1263 = vmatprep.mubr.bf16.mxu0 0
        %1264 = vmatmul.mubr.bf16.gmra.mxu0 %v1226
        %v1265 = vpop.f32.mrf.mxu0
        %v1266 = vadd.f32 0.0, %v1265
        %v1267 = vpop.f32.mrf.mxu0
        %v1268 = vpop.f32.mrf.mxu0
        %v1269 = vpop.f32.mrf.mxu0
        %1270 = vdwg.mxu0
        %v1271 = vadd.f32 %v1074, %v1128
        %v1272 = vadd.f32 %v1075, %v1174
        %v1273 = vadd.f32 %v1076, %v1220
        %v1274 = vadd.f32 %v1077, %v1266
        %1275 = vst.msk [vmem:[#allocation5] sm:$0xff] %vm718, %v1271
        %1276 = vst.msk [vmem:[#allocation5 + $0x8] sm:$0xff] %vm718, %v1272
        %1277 = vst.msk [vmem:[#allocation5 + $0x10] sm:$0xff] %vm718, %v1273
        %1278 = vst.msk [vmem:[#allocation5 + $0x18] sm:$0xff] %vm718, %v1274
        %1279 = vst.msk [vmem:[#allocation3] sm:$0xff] %vm1045, %v973
        %1280 = vst.msk [vmem:[#allocation3 + $0x8] sm:$0xff] %vm1045, %v974
        %1281 = vst.msk [vmem:[#allocation3 + $0x10] sm:$0xff] %vm1045, %v975
        %1282 = vst.msk [vmem:[#allocation3 + $0x18] sm:$0xff] %vm1045, %v976
      $region56: #{block_forward.4} parent=47 // pred_fallthru
        _
      // Predicated region
      $region57: #{block_forward.4} parent=47 // pred_check
        %p1283 = pneg %p448
      $region58: #{block_forward.4} parent=47 // pred_check_branch
        %1285 = sbr.rel (%p1283) target = $region60
      $region59: #{block_forward.4} parent=47 // pred_region
        %v1286 = vld [vmem:[#allocation4] sm:$0xff]
        %v1287 = vld [vmem:[#allocation4 + $0x8] sm:$0xff]
        %v1288 = vld [vmem:[#allocation4 + $0x10] sm:$0xff]
        %v1289 = vld [vmem:[#allocation4 + $0x18] sm:$0xff]
        %v1290 = vrcp.pop %v1286
        %v1291 = vrcp.pop %v1287
        %v1292 = vrcp.pop %v1288
        %v1293 = vrcp.pop %v1289
        %v1294 = vld [vmem:[#allocation5] sm:$0xff]
        %v1295 = vld [vmem:[#allocation5 + $0x8] sm:$0xff]
        %v1296 = vld [vmem:[#allocation5 + $0x10] sm:$0xff]
        %v1297 = vld [vmem:[#allocation5 + $0x18] sm:$0xff]
        %1299 = vset.pattern.permute.xlu0 0
        %1300 = vperm.xlu0 %1299, %v1290
        %v1301 = vpop.permute.xlu0 %1300
        %1304 = vset.pattern.permute.xlu0 0
        %1305 = vperm.xlu0 %1304, %v1291
        %v1306 = vpop.permute.xlu0 %1305
        %1309 = vset.pattern.permute.xlu0 0
        %1310 = vperm.xlu0 %1309, %v1292
        %v1311 = vpop.permute.xlu0 %1310
        %1314 = vset.pattern.permute.xlu0 0
        %1315 = vperm.xlu0 %1314, %v1293
        %v1316 = vpop.permute.xlu0 %1315
        %v1318 = vmul.f32 %v1294, %v1301
        %v1319 = vmul.f32 %v1295, %v1306
        %v1320 = vmul.f32 %v1296, %v1311
        %v1321 = vmul.f32 %v1297, %v1316
        %v1322 = vpack.c.bf16 %v1318, %v1318
        %v1323 = vpack.c.bf16 %v1319, %v1319
        %v1324 = vpack.c.bf16 %v1320, %v1320
        %v1325 = vpack.c.bf16 %v1321, %v1321
        %vm1326 = vcmask 60416
        %1327 = vst.msk [vmem:[%s446] sm:$0xf] %vm1326, %v1322
        %1328 = vst.msk [vmem:[%s446 + $0x4] sm:$0xf] %vm1326, %v1323
        %1329 = vst.msk [vmem:[%s446 + $0x8] sm:$0xf] %vm1326, %v1324
        %1330 = vst.msk [vmem:[%s446 + $0xc] sm:$0xf] %vm1326, %v1325
      $region60: #{block_forward.4} parent=47 // pred_fallthru
        _
      %p1331 = scmp.lt.s32.totalorder %s23, 1
      %s1332 = scalar_select %p1331, %s23, 1
      %p1333 = scmp.lt.s32.totalorder %s24, 0
      %s1334 = scalar_select %p1333, %s24, 0
      %s1335 = smul.addr %s1332, 4
      %s1336 = sadd.s32 %s1334, %s1335
      %s1337 = smul.addr %s1336, 4
      %s1338 = scalar_lea.vmem %s7, %s1337
      // Predicated region
      $region61: #{block_forward.4} parent=47 // pred_check
        %p1339 = pneg %p245
      $region62: #{block_forward.4} parent=47 // pred_check_branch
        %1341 = sbr.rel (%p1339) target = $region64
      $region63: #{block_forward.4} parent=47 // pred_region
        _
      $region64: #{block_forward.4} parent=47 // pred_fallthru
        _
    $region48: #{block_forward.4} parent=5 // pred_fallthru
      _
    %p1342 = scmp.le.s32.totalorder 2, %s13
    // Predicated region
    $region65: #{block_forward.4} parent=5 // pred_check
      %p1343 = pneg %p1342
    $region66: #{block_forward.4} parent=5 // pred_check_branch
      %1345 = sbr.rel (%p1343) target = $region68
    $region67: #{block_forward.4} parent=5 // pred_region
      %s1346 = ssub.s32 %s13, 2
      // Predicated region
      $region69: #{block_forward.4} parent=67 // pred_check
        %p1347 = pneg %p251
      $region70: #{block_forward.4} parent=67 // pred_check_branch
        %1349 = sbr.rel (%p1347) target = $region72
      $region71: #{block_forward.4} parent=67 // pred_region
        %p1350 = scmp.lt.s32.totalorder %s26, 1
        %s1351 = scalar_select %p1350, %s26, 1
        %p1352 = scmp.lt.s32.totalorder %s27, 0
        %s1353 = scalar_select %p1352, %s27, 0
        %s1354 = smul.addr %s1351, 4
        %s1355 = sadd.s32 %s1353, %s1354
        %s1356 = smul.addr %s1355, 4
        %s1357 = scalar_lea.vmem %s7, %s1356
      $region72: #{block_forward.4} parent=67 // pred_fallthru
        _
    $region68: #{block_forward.4} parent=5 // pred_fallthru
      _
  $region6: #{block_forward.4} parent=0 // loop_footer
    %s17 = sadd.s32 1, %s13
  $region7: #{block_forward.4} parent=0 // loop_footer_branch
    %12 = sbr.rel target = $region3
  $region8: #{block_forward.4} parent=0 // loop_exit
    _

</llo_original>
